<compile_context>
chip_gen: v7x
topology: tpu7x:2x2x1
jax: 0.10.0
libtpu: 0.0.40
codegen_flags: <defaults>
</compile_context>

<pallas_src>
import functools

import jax
import jax.numpy as jnp
from jax.experimental import pallas as pl
from jax.experimental.pallas import tpu as pltpu

EPS = 1e-5  # nn.GroupNorm default eps


# ------------------------------ Pallas kernel ------------------------------

def _odefunc_kernel(x_ref, t1_ref, t2_ref,
                    g1w_ref, g1b_ref, w1_ref,
                    g2w_ref, g2b_ref, w2_ref,
                    g3w_ref, g3b_ref,
                    o_ref, *, C, G, H, W):
    """Fused GN+ReLU -> ConcatConv -> GN+ReLU -> ConcatConv -> GN.

    x_ref / o_ref : (1, C, bn, H*W) VMEM blocks; sample s of the block lives on
                    sublane s, its flattened (H*W) image along the lanes.
    t*_ref        : (C, H*W) VMEM maps = conv(t-channel) + bias (precomputed).
    g*w / g*b     : (C,) SMEM GroupNorm affine params (unbroadcast).
    w*_ref        : (C*C*9,) SMEM flattened conv weights for the data channels
                    only (co, ci, ky, kx), t channel excluded.
    """
    CG = C // G
    HW = H * W
    inv_cnt = 1.0 / float(CG * HW)

    # ---- hoisted constants: spatial-boundary masks in the flattened layout ----
    lane = jax.lax.broadcasted_iota(jnp.int32, (1, HW), 1)
    col = lane % W
    m_xp = jnp.where(col < (W - 1), 1.0, 0.0)        # valid taps for dx = +1
    m_xm = jnp.where(col > 0, 1.0, 0.0)              # dx = -1
    m_yp = jnp.where(lane < (H - 1) * W, 1.0, 0.0)   # dy = +1
    m_ym = jnp.where(lane >= W, 1.0, 0.0)            # dy = -1

    def shift(p, d):
        # result[..., i] = p[..., i + d] (cyclic along lanes); callers mask the
        # wrapped / out-of-image lanes.  XLU op -> overlaps with the VALU FMAs.
        return pltpu.roll(p, shift=(-d) % HW, axis=1)

    def group_norm(planes, gamma_ref, beta_ref, relu):
        out = [None] * C
        for g in range(G):
            chans = range(g * CG, (g + 1) * CG)
            s1 = None
            s2 = None
            for c in chans:                       # one traversal: sum & sum-of-squares
                p = planes[c]
                a = jnp.sum(p, axis=1, keepdims=True)          # (bn, 1) per sample
                b = jnp.sum(p * p, axis=1, keepdims=True)
                s1 = a if s1 is None else s1 + a
                s2 = b if s2 is None else s2 + b
            mean = s1 * inv_cnt
            var = s2 * inv_cnt - mean * mean                   # biased variance
            inv = jax.lax.rsqrt(var + EPS)                     # (bn, 1)
            for c in chans:                       # folded affine: y = p*scale + off
                scale = inv * gamma_ref[c]
                off = beta_ref[c] - mean * scale
                y = planes[c] * scale + off
                out[c] = jnp.maximum(y, 0.0) if relu else y
        return out

    def concat_conv(planes, w_ref, tmap_ref):
        # Accumulators start at the precomputed (t-channel conv + bias) map; only
        # the C data channels are accumulated here.  Each SMEM weight is read
        # exactly once per grid step.
        accs = [tmap_ref[co:co + 1, :] for co in range(C)]     # (1, HW), broadcasts
        for ci in range(C):
            p = planes[ci]
            rows = (shift(p, -W) * m_ym, p, shift(p, W) * m_yp)          # ky = 0,1,2
            for ky in range(3):
                base = rows[ky]
                taps = (shift(base, -1) * m_xm, base, shift(base, 1) * m_xp)  # kx = 0,1,2
                for kx in range(3):
                    tap = taps[kx]
                    k = ky * 3 + kx
                    for co in range(C):
                        accs[co] = accs[co] + w_ref[(co * C + ci) * 9 + k] * tap
        return accs

    planes = [x_ref[0, c, :, :] for c in range(C)]             # (bn, HW) each
    act = group_norm(planes, g1w_ref, g1b_ref, relu=True)      # norm1 + relu
    act = concat_conv(act, w1_ref, t1_ref)                     # conv1 (+ bias + t)
    act = group_norm(act, g2w_ref, g2b_ref, relu=True)         # norm2 + relu
    act = concat_conv(act, w2_ref, t2_ref)                     # conv2 (+ bias + t)
    act = group_norm(act, g3w_ref, g3b_ref, relu=False)        # norm3
    for c in range(C):
        o_ref[0, c, :, :] = act[c]                             # full-width stores


# ------------------------------ wrapper ------------------------------------

def odefunc_forward(params, t, x):
    """ODEfunc forward (NCHW in / NCHW out) as one fused lane-packed Pallas call."""
    # TODO(synk): self.nfe (Python-side call counter) has no device equivalent.
    n, c, h, w = x.shape
    g = min(32, c)
    assert c % g == 0, "channels must be divisible by num_groups"
    assert x.dtype == jnp.float32
    if c > 8:
        # TODO(synk): odenet_mnist's default dim=64 needs an in-kernel im2col +
        # MXU matmul lowering; the VPU shift-accumulate path below targets the
        # small channel counts it is efficient for (<= 8).
        raise NotImplementedError(
            "fused VPU shift-accumulate path only supports small channel counts")

    hw = h * w
    bn = 8                      # samples per block = f32 sublane tile -> dense vregs
    n_pad = (-n) % bn
    if n_pad:
        x = jnp.concatenate([x, jnp.zeros((n_pad, c, h, w), x.dtype)], axis=0)
    nb = (n + n_pad) // bn

    # Lane/sublane packing (wrapper-side layout plumbing): each channel of a block
    # of bn samples becomes a (bn, H*W) slab.
    xp = x.reshape(nb, bn, c, h, w).transpose(0, 2, 1, 3, 4).reshape(nb, c, bn, hw)

    # Hoist the constant-t channel + bias out of the kernel: per conv, their joint
    # contribution is a fixed (C, H*W) map (zero-padding boundary effects included).
    t_arr = jnp.asarray(t, jnp.float32)
    t_plane = jnp.full((1, 1, h, w), t_arr, dtype=jnp.float32)

    def t_channel_map(wgt, bias):
        m = jax.lax.conv_general_dilated(
            t_plane, wgt[:, :1], window_strides=(1, 1), padding=((1, 1), (1, 1)),
            dimension_numbers=("NCHW", "OIHW", "NCHW"),
            precision=jax.lax.Precision.HIGHEST)[0]            # (C, h, w)
        return (m + bias[:, None, None]).reshape(c, hw)

    t1 = t_channel_map(params["c1_w"], params["c1_b"])
    t2 = t_channel_map(params["c2_w"], params["c2_b"])
    w1f = params["c1_w"][:, 1:].reshape(-1)                    # data-channel weights
    w2f = params["c2_w"][:, 1:].reshape(-1)

    blk = pl.BlockSpec((1, c, bn, hw), lambda i: (i, 0, 0, 0))
    tmap_spec = pl.BlockSpec((c, hw), lambda i: (0, 0))
    smem = pl.BlockSpec(memory_space=pltpu.MemorySpace.SMEM)

    fused = pl.pallas_call(
        functools.partial(_odefunc_kernel, C=c, G=g, H=h, W=w),
        out_shape=jax.ShapeDtypeStruct((nb, c, bn, hw), jnp.float32),
        grid=(nb,),
        in_specs=[blk, tmap_spec, tmap_spec] + [smem] * 8,
        out_specs=blk,
        compiler_params=pltpu.CompilerParams(
            dimension_semantics=("parallel",)),
    )
    out = fused(xp, t1, t2,
                params["g1_w"], params["g1_b"], w1f,
                params["g2_w"], params["g2_b"], w2f,
                params["g3_w"], params["g3_b"])

    out = out.reshape(nb, c, bn, h, w).transpose(0, 2, 1, 3, 4)
    out = out.reshape(nb * bn, c, h, w)
    return out[:n]


# ------------------------------ parameters ---------------------------------

def init_odefunc_params(key, dim):
    """Deterministic synthetic parameters matching ODEfunc(dim).__init__ shapes."""
    ks = jax.random.split(key, 5)

    def conv_init(k, co, ci):
        fan_in = ci * 3 * 3
        bound = 1.0 / jnp.sqrt(jnp.float32(fan_in))
        kw_, kb_ = jax.random.split(k)
        wgt = jax.random.uniform(kw_, (co, ci, 3, 3), jnp.float32, -bound, bound)
        bias = jax.random.uniform(kb_, (co,), jnp.float32, -bound, bound)
        return wgt, bias

    def gn_init(k, c):
        kg, kb = jax.random.split(k)
        gamma = 1.0 + 0.1 * jax.random.normal(kg, (c,), jnp.float32)
        beta = 0.1 * jax.random.normal(kb, (c,), jnp.float32)
        return gamma, beta

    g1w, g1b = gn_init(ks[0], dim)
    g2w, g2b = gn_init(ks[1], dim)
    g3w, g3b = gn_init(ks[2], dim)
    c1w, c1b = conv_init(ks[3], dim, dim + 1)
    c2w, c2b = conv_init(ks[4], dim, dim + 1)
    return dict(g1_w=g1w, g1_b=g1b, g2_w=g2w, g2_b=g2b, g3_w=g3w, g3_b=g3b,
                c1_w=c1w, c1_b=c1b, c2_w=c2w, c2_b=c2b)


# --------------------------- pure-JAX reference ----------------------------

def _ref_group_norm(x, gamma, beta, g, relu):
    n, c, h, w = x.shape
    xg = x.reshape(n, g, -1)
    mean = xg.mean(-1, keepdims=True)
    var = ((xg - mean) ** 2).mean(-1, keepdims=True)
    y = ((xg - mean) / jnp.sqrt(var + EPS)).reshape(n, c, h, w)
    y = y * gamma.reshape(1, c, 1, 1) + beta.reshape(1, c, 1, 1)
    return jnp.maximum(y, 0.0) if relu else y


def _ref_concat_conv(t, x, w, b):
    n, _, h, wd = x.shape
    tt = jnp.full((n, 1, h, wd), t, dtype=x.dtype)
    ttx = jnp.concatenate([tt, x], axis=1)
    y = jax.lax.conv_general_dilated(
        ttx, w, window_strides=(1, 1), padding=((1, 1), (1, 1)),
        dimension_numbers=("NCHW", "OIHW", "NCHW"),
        precision=jax.lax.Precision.HIGHEST)
    return y + b.reshape(1, -1, 1, 1)


def ref_forward(params, t, x):
    g = min(32, x.shape[1])
    out = _ref_group_norm(x, params["g1_w"], params["g1_b"], g, True)
    out = _ref_concat_conv(t, out, params["c1_w"], params["c1_b"])
    out = _ref_group_norm(out, params["g2_w"], params["g2_b"], g, True)
    out = _ref_concat_conv(t, out, params["c2_w"], params["c2_b"])
    out = _ref_group_norm(out, params["g3_w"], params["g3_b"], g, False)
    return out


# ----------------------------------- main -----------------------------------

if __name__ == "__main__":
    key = jax.random.PRNGKey(0)
    pkey, xkey = jax.random.split(key)

    dim = 4                       # channels (PyTorch module's `dim`)
    batch, spatial = 16, 16       # 16 samples -> two 8-sample blocks -> grid=(2,)
    params = init_odefunc_params(pkey, dim)
    x = jax.random.normal(xkey, (batch, dim, spatial, spatial), jnp.float32)
    t = jnp.float32(0.5)

    fwd = jax.jit(odefunc_forward)
    out = jax.block_until_ready(fwd(params, t, x))
    ref = ref_forward(params, t, x)
    assert out.shape == x.shape and out.dtype == x.dtype
    max_err = float(jnp.max(jnp.abs(out - ref)))
    assert jnp.allclose(out, ref, rtol=1e-3, atol=1e-3), f"max abs err {max_err}"

    # Ragged batch: exercises the zero-padding path (2 samples -> one 8-wide block).
    x2 = jax.random.normal(jax.random.PRNGKey(1),
                           (2, dim, spatial, spatial), jnp.float32)
    out2 = jax.block_until_ready(fwd(params, t, x2))
    ref2 = ref_forward(params, t, x2)
    max_err2 = float(jnp.max(jnp.abs(out2 - ref2)))
    assert jnp.allclose(out2, ref2, rtol=1e-3, atol=1e-3), f"max abs err {max_err2}"

    print("KERNEL_OK")
</pallas_src>

<mosaic_0001>
module attributes {stable_mosaic.version = 11 : i64} {
  func.func @_odefunc_kernel(%arg0: i32, %arg1: memref<1x4x8x256xf32, #tpu.memory_space<vmem>>, %arg2: memref<4x256xf32, #tpu.memory_space<vmem>>, %arg3: memref<4x256xf32, #tpu.memory_space<vmem>>, %arg4: memref<4xf32, #tpu.memory_space<smem>>, %arg5: memref<4xf32, #tpu.memory_space<smem>>, %arg6: memref<144xf32, #tpu.memory_space<smem>>, %arg7: memref<4xf32, #tpu.memory_space<smem>>, %arg8: memref<4xf32, #tpu.memory_space<smem>>, %arg9: memref<144xf32, #tpu.memory_space<smem>>, %arg10: memref<4xf32, #tpu.memory_space<smem>>, %arg11: memref<4xf32, #tpu.memory_space<smem>>, %arg12: memref<1x4x8x256xf32, #tpu.memory_space<vmem>>) attributes {dimension_semantics = [#tpu.dimension_semantics<parallel>], iteration_bounds = array<i64: 2>, scalar_prefetch = 0 : i64, scratch_operands = 0 : i64, tpu.core_type = #tpu.core_type<tc>, window_params = [{transform_indices = @transform_0, window_bounds = array<i64: 1, 4, 8, 256>}, {pipeline_mode = #tpu.pipeline_mode<synchronous>, transform_indices = @transform_1, window_bounds = array<i64: 4, 256>}, {pipeline_mode = #tpu.pipeline_mode<synchronous>, transform_indices = @transform_2, window_bounds = array<i64: 4, 256>}, {transform_indices = @transform_3, window_bounds = array<i64: 4>}, {transform_indices = @transform_4, window_bounds = array<i64: 4>}, {transform_indices = @transform_5, window_bounds = array<i64: 144>}, {transform_indices = @transform_6, window_bounds = array<i64: 4>}, {transform_indices = @transform_7, window_bounds = array<i64: 4>}, {transform_indices = @transform_8, window_bounds = array<i64: 144>}, {transform_indices = @transform_9, window_bounds = array<i64: 4>}, {transform_indices = @transform_10, window_bounds = array<i64: 4>}, {transform_indices = @transform_11, window_bounds = array<i64: 1, 4, 8, 256>}]} {
    %0 = tpu.iota {dimensions = array<i32: 1>} : vector<1x256xi32>
    %c16_i32 = arith.constant 16 : i32
    %c0_i32 = arith.constant 0 : i32
    %1 = arith.cmpi eq, %c16_i32, %c0_i32 : i32
    %c1_i32 = arith.constant 1 : i32
    %2 = arith.select %1, %c1_i32, %c16_i32 : i32
    %3 = vector.broadcast %2 : i32 to vector<1x256xi32>
    %4 = arith.remsi %0, %3 : vector<1x256xi32>
    %c0_i32_0 = arith.constant 0 : i32
    %5 = vector.broadcast %c0_i32_0 : i32 to vector<1x256xi32>
    %6 = arith.cmpi ne, %4, %5 : vector<1x256xi32>
    %c0_i32_1 = arith.constant 0 : i32
    %7 = vector.broadcast %c0_i32_1 : i32 to vector<1x256xi32>
    %8 = arith.cmpi slt, %4, %7 : vector<1x256xi32>
    %c0_i32_2 = arith.constant 0 : i32
    %9 = arith.cmpi slt, %2, %c0_i32_2 : i32
    %10 = vector.broadcast %9 : i1 to vector<1x256xi1>
    %11 = vector.broadcast %10 : vector<1x256xi1> to vector<1x256xi1>
    %12 = arith.xori %8, %11 : vector<1x256xi1>
    %13 = arith.andi %12, %6 : vector<1x256xi1>
    %14 = vector.broadcast %2 : i32 to vector<1x256xi32>
    %15 = arith.addi %4, %14 : vector<1x256xi32>
    %16 = arith.select %13, %15, %4 : vector<1x256xi1>, vector<1x256xi32>
    %c15_i32 = arith.constant 15 : i32
    %17 = vector.broadcast %c15_i32 : i32 to vector<1x256xi32>
    %18 = arith.cmpi slt, %16, %17 : vector<1x256xi32>
    %cst = arith.constant 1.000000e+00 : f32
    %cst_3 = arith.constant 0.000000e+00 : f32
    %19 = vector.broadcast %cst : f32 to vector<1x256xf32>
    %20 = vector.broadcast %cst_3 : f32 to vector<1x256xf32>
    %21 = arith.select %18, %19, %20 : vector<1x256xi1>, vector<1x256xf32>
    %c0_i32_4 = arith.constant 0 : i32
    %22 = vector.broadcast %c0_i32_4 : i32 to vector<1x256xi32>
    %23 = arith.cmpi sgt, %16, %22 : vector<1x256xi32>
    %cst_5 = arith.constant 1.000000e+00 : f32
    %cst_6 = arith.constant 0.000000e+00 : f32
    %24 = vector.broadcast %cst_5 : f32 to vector<1x256xf32>
    %25 = vector.broadcast %cst_6 : f32 to vector<1x256xf32>
    %26 = arith.select %23, %24, %25 : vector<1x256xi1>, vector<1x256xf32>
    %c240_i32 = arith.constant 240 : i32
    %27 = vector.broadcast %c240_i32 : i32 to vector<1x256xi32>
    %28 = arith.cmpi slt, %0, %27 : vector<1x256xi32>
    %cst_7 = arith.constant 1.000000e+00 : f32
    %cst_8 = arith.constant 0.000000e+00 : f32
    %29 = vector.broadcast %cst_7 : f32 to vector<1x256xf32>
    %30 = vector.broadcast %cst_8 : f32 to vector<1x256xf32>
    %31 = arith.select %28, %29, %30 : vector<1x256xi1>, vector<1x256xf32>
    %c16_i32_9 = arith.constant 16 : i32
    %32 = vector.broadcast %c16_i32_9 : i32 to vector<1x256xi32>
    %33 = arith.cmpi sge, %0, %32 : vector<1x256xi32>
    %cst_10 = arith.constant 1.000000e+00 : f32
    %cst_11 = arith.constant 0.000000e+00 : f32
    %34 = vector.broadcast %cst_10 : f32 to vector<1x256xf32>
    %35 = vector.broadcast %cst_11 : f32 to vector<1x256xf32>
    %36 = arith.select %33, %34, %35 : vector<1x256xi1>, vector<1x256xf32>
    %c0 = arith.constant 0 : index
    %c0_12 = arith.constant 0 : index
    %c0_13 = arith.constant 0 : index
    %c0_14 = arith.constant 0 : index
    %37 = vector.load %arg1[%c0, %c0_12, %c0_13, %c0_14] : memref<1x4x8x256xf32, #tpu.memory_space<vmem>>, vector<1x1x8x256xf32>
    %38 = vector.shape_cast %37 : vector<1x1x8x256xf32> to vector<8x256xf32>
    %c0_15 = arith.constant 0 : index
    %c1 = arith.constant 1 : index
    %c0_16 = arith.constant 0 : index
    %c0_17 = arith.constant 0 : index
    %39 = vector.load %arg1[%c0_15, %c1, %c0_16, %c0_17] : memref<1x4x8x256xf32, #tpu.memory_space<vmem>>, vector<1x1x8x256xf32>
    %40 = vector.shape_cast %39 : vector<1x1x8x256xf32> to vector<8x256xf32>
    %c0_18 = arith.constant 0 : index
    %c2 = arith.constant 2 : index
    %c0_19 = arith.constant 0 : index
    %c0_20 = arith.constant 0 : index
    %41 = vector.load %arg1[%c0_18, %c2, %c0_19, %c0_20] : memref<1x4x8x256xf32, #tpu.memory_space<vmem>>, vector<1x1x8x256xf32>
    %42 = vector.shape_cast %41 : vector<1x1x8x256xf32> to vector<8x256xf32>
    %c0_21 = arith.constant 0 : index
    %c3 = arith.constant 3 : index
    %c0_22 = arith.constant 0 : index
    %c0_23 = arith.constant 0 : index
    %43 = vector.load %arg1[%c0_21, %c3, %c0_22, %c0_23] : memref<1x4x8x256xf32, #tpu.memory_space<vmem>>, vector<1x1x8x256xf32>
    %44 = vector.shape_cast %43 : vector<1x1x8x256xf32> to vector<8x256xf32>
    %cst_24 = arith.constant dense<0.000000e+00> : vector<8xf32>
    %45 = vector.multi_reduction <add>, %38, %cst_24 [1] : vector<8x256xf32> to vector<8xf32>
    %46 = vector.shape_cast %45 : vector<8xf32> to vector<8x1xf32>
    %47 = arith.mulf %38, %38 : vector<8x256xf32>
    %cst_25 = arith.constant dense<0.000000e+00> : vector<8xf32>
    %48 = vector.multi_reduction <add>, %47, %cst_25 [1] : vector<8x256xf32> to vector<8xf32>
    %49 = vector.shape_cast %48 : vector<8xf32> to vector<8x1xf32>
    %cst_26 = arith.constant 3.906250e-03 : f32
    %50 = vector.broadcast %cst_26 : f32 to vector<8x1xf32>
    %51 = arith.mulf %46, %50 : vector<8x1xf32>
    %cst_27 = arith.constant 3.906250e-03 : f32
    %52 = vector.broadcast %cst_27 : f32 to vector<8x1xf32>
    %53 = arith.mulf %49, %52 : vector<8x1xf32>
    %54 = arith.mulf %51, %51 : vector<8x1xf32>
    %55 = arith.subf %53, %54 : vector<8x1xf32>
    %cst_28 = arith.constant 9.99999974E-6 : f32
    %56 = vector.broadcast %cst_28 : f32 to vector<8x1xf32>
    %57 = arith.addf %55, %56 : vector<8x1xf32>
    %58 = math.rsqrt %57 : vector<8x1xf32>
    %c0_29 = arith.constant 0 : index
    %59 = memref.load %arg4[%c0_29] : memref<4xf32, #tpu.memory_space<smem>>
    %60 = vector.broadcast %59 : f32 to vector<8x1xf32>
    %61 = arith.mulf %58, %60 : vector<8x1xf32>
    %c0_30 = arith.constant 0 : index
    %62 = memref.load %arg5[%c0_30] : memref<4xf32, #tpu.memory_space<smem>>
    %63 = arith.mulf %51, %61 : vector<8x1xf32>
    %64 = vector.broadcast %62 : f32 to vector<8x1xf32>
    %65 = arith.subf %64, %63 : vector<8x1xf32>
    %66 = vector.broadcast %61 : vector<8x1xf32> to vector<8x256xf32>
    %67 = arith.mulf %38, %66 : vector<8x256xf32>
    %68 = vector.broadcast %65 : vector<8x1xf32> to vector<8x256xf32>
    %69 = arith.addf %67, %68 : vector<8x256xf32>
    %cst_31 = arith.constant 0.000000e+00 : f32
    %70 = vector.broadcast %cst_31 : f32 to vector<8x256xf32>
    %71 = arith.maximumf %69, %70 : vector<8x256xf32>
    %cst_32 = arith.constant dense<0.000000e+00> : vector<8xf32>
    %72 = vector.multi_reduction <add>, %40, %cst_32 [1] : vector<8x256xf32> to vector<8xf32>
    %73 = vector.shape_cast %72 : vector<8xf32> to vector<8x1xf32>
    %74 = arith.mulf %40, %40 : vector<8x256xf32>
    %cst_33 = arith.constant dense<0.000000e+00> : vector<8xf32>
    %75 = vector.multi_reduction <add>, %74, %cst_33 [1] : vector<8x256xf32> to vector<8xf32>
    %76 = vector.shape_cast %75 : vector<8xf32> to vector<8x1xf32>
    %cst_34 = arith.constant 3.906250e-03 : f32
    %77 = vector.broadcast %cst_34 : f32 to vector<8x1xf32>
    %78 = arith.mulf %73, %77 : vector<8x1xf32>
    %cst_35 = arith.constant 3.906250e-03 : f32
    %79 = vector.broadcast %cst_35 : f32 to vector<8x1xf32>
    %80 = arith.mulf %76, %79 : vector<8x1xf32>
    %81 = arith.mulf %78, %78 : vector<8x1xf32>
    %82 = arith.subf %80, %81 : vector<8x1xf32>
    %cst_36 = arith.constant 9.99999974E-6 : f32
    %83 = vector.broadcast %cst_36 : f32 to vector<8x1xf32>
    %84 = arith.addf %82, %83 : vector<8x1xf32>
    %85 = math.rsqrt %84 : vector<8x1xf32>
    %c1_37 = arith.constant 1 : index
    %86 = memref.load %arg4[%c1_37] : memref<4xf32, #tpu.memory_space<smem>>
    %87 = vector.broadcast %86 : f32 to vector<8x1xf32>
    %88 = arith.mulf %85, %87 : vector<8x1xf32>
    %c1_38 = arith.constant 1 : index
    %89 = memref.load %arg5[%c1_38] : memref<4xf32, #tpu.memory_space<smem>>
    %90 = arith.mulf %78, %88 : vector<8x1xf32>
    %91 = vector.broadcast %89 : f32 to vector<8x1xf32>
    %92 = arith.subf %91, %90 : vector<8x1xf32>
    %93 = vector.broadcast %88 : vector<8x1xf32> to vector<8x256xf32>
    %94 = arith.mulf %40, %93 : vector<8x256xf32>
    %95 = vector.broadcast %92 : vector<8x1xf32> to vector<8x256xf32>
    %96 = arith.addf %94, %95 : vector<8x256xf32>
    %cst_39 = arith.constant 0.000000e+00 : f32
    %97 = vector.broadcast %cst_39 : f32 to vector<8x256xf32>
    %98 = arith.maximumf %96, %97 : vector<8x256xf32>
    %cst_40 = arith.constant dense<0.000000e+00> : vector<8xf32>
    %99 = vector.multi_reduction <add>, %42, %cst_40 [1] : vector<8x256xf32> to vector<8xf32>
    %100 = vector.shape_cast %99 : vector<8xf32> to vector<8x1xf32>
    %101 = arith.mulf %42, %42 : vector<8x256xf32>
    %cst_41 = arith.constant dense<0.000000e+00> : vector<8xf32>
    %102 = vector.multi_reduction <add>, %101, %cst_41 [1] : vector<8x256xf32> to vector<8xf32>
    %103 = vector.shape_cast %102 : vector<8xf32> to vector<8x1xf32>
    %cst_42 = arith.constant 3.906250e-03 : f32
    %104 = vector.broadcast %cst_42 : f32 to vector<8x1xf32>
    %105 = arith.mulf %100, %104 : vector<8x1xf32>
    %cst_43 = arith.constant 3.906250e-03 : f32
    %106 = vector.broadcast %cst_43 : f32 to vector<8x1xf32>
    %107 = arith.mulf %103, %106 : vector<8x1xf32>
    %108 = arith.mulf %105, %105 : vector<8x1xf32>
    %109 = arith.subf %107, %108 : vector<8x1xf32>
    %cst_44 = arith.constant 9.99999974E-6 : f32
    %110 = vector.broadcast %cst_44 : f32 to vector<8x1xf32>
    %111 = arith.addf %109, %110 : vector<8x1xf32>
    %112 = math.rsqrt %111 : vector<8x1xf32>
    %c2_45 = arith.constant 2 : index
    %113 = memref.load %arg4[%c2_45] : memref<4xf32, #tpu.memory_space<smem>>
    %114 = vector.broadcast %113 : f32 to vector<8x1xf32>
    %115 = arith.mulf %112, %114 : vector<8x1xf32>
    %c2_46 = arith.constant 2 : index
    %116 = memref.load %arg5[%c2_46] : memref<4xf32, #tpu.memory_space<smem>>
    %117 = arith.mulf %105, %115 : vector<8x1xf32>
    %118 = vector.broadcast %116 : f32 to vector<8x1xf32>
    %119 = arith.subf %118, %117 : vector<8x1xf32>
    %120 = vector.broadcast %115 : vector<8x1xf32> to vector<8x256xf32>
    %121 = arith.mulf %42, %120 : vector<8x256xf32>
    %122 = vector.broadcast %119 : vector<8x1xf32> to vector<8x256xf32>
    %123 = arith.addf %121, %122 : vector<8x256xf32>
    %cst_47 = arith.constant 0.000000e+00 : f32
    %124 = vector.broadcast %cst_47 : f32 to vector<8x256xf32>
    %125 = arith.maximumf %123, %124 : vector<8x256xf32>
    %cst_48 = arith.constant dense<0.000000e+00> : vector<8xf32>
    %126 = vector.multi_reduction <add>, %44, %cst_48 [1] : vector<8x256xf32> to vector<8xf32>
    %127 = vector.shape_cast %126 : vector<8xf32> to vector<8x1xf32>
    %128 = arith.mulf %44, %44 : vector<8x256xf32>
    %cst_49 = arith.constant dense<0.000000e+00> : vector<8xf32>
    %129 = vector.multi_reduction <add>, %128, %cst_49 [1] : vector<8x256xf32> to vector<8xf32>
    %130 = vector.shape_cast %129 : vector<8xf32> to vector<8x1xf32>
    %cst_50 = arith.constant 3.906250e-03 : f32
    %131 = vector.broadcast %cst_50 : f32 to vector<8x1xf32>
    %132 = arith.mulf %127, %131 : vector<8x1xf32>
    %cst_51 = arith.constant 3.906250e-03 : f32
    %133 = vector.broadcast %cst_51 : f32 to vector<8x1xf32>
    %134 = arith.mulf %130, %133 : vector<8x1xf32>
    %135 = arith.mulf %132, %132 : vector<8x1xf32>
    %136 = arith.subf %134, %135 : vector<8x1xf32>
    %cst_52 = arith.constant 9.99999974E-6 : f32
    %137 = vector.broadcast %cst_52 : f32 to vector<8x1xf32>
    %138 = arith.addf %136, %137 : vector<8x1xf32>
    %139 = math.rsqrt %138 : vector<8x1xf32>
    %c3_53 = arith.constant 3 : index
    %140 = memref.load %arg4[%c3_53] : memref<4xf32, #tpu.memory_space<smem>>
    %141 = vector.broadcast %140 : f32 to vector<8x1xf32>
    %142 = arith.mulf %139, %141 : vector<8x1xf32>
    %c3_54 = arith.constant 3 : index
    %143 = memref.load %arg5[%c3_54] : memref<4xf32, #tpu.memory_space<smem>>
    %144 = arith.mulf %132, %142 : vector<8x1xf32>
    %145 = vector.broadcast %143 : f32 to vector<8x1xf32>
    %146 = arith.subf %145, %144 : vector<8x1xf32>
    %147 = vector.broadcast %142 : vector<8x1xf32> to vector<8x256xf32>
    %148 = arith.mulf %44, %147 : vector<8x256xf32>
    %149 = vector.broadcast %146 : vector<8x1xf32> to vector<8x256xf32>
    %150 = arith.addf %148, %149 : vector<8x256xf32>
    %cst_55 = arith.constant 0.000000e+00 : f32
    %151 = vector.broadcast %cst_55 : f32 to vector<8x256xf32>
    %152 = arith.maximumf %150, %151 : vector<8x256xf32>
    %c0_56 = arith.constant 0 : index
    %c0_57 = arith.constant 0 : index
    %153 = vector.load %arg2[%c0_56, %c0_57] : memref<4x256xf32, #tpu.memory_space<vmem>>, vector<1x256xf32>
    %c1_58 = arith.constant 1 : index
    %c0_59 = arith.constant 0 : index
    %154 = vector.load %arg2[%c1_58, %c0_59] : memref<4x256xf32, #tpu.memory_space<vmem>>, vector<1x256xf32>
    %c2_60 = arith.constant 2 : index
    %c0_61 = arith.constant 0 : index
    %155 = vector.load %arg2[%c2_60, %c0_61] : memref<4x256xf32, #tpu.memory_space<vmem>>, vector<1x256xf32>
    %c3_62 = arith.constant 3 : index
    %c0_63 = arith.constant 0 : index
    %156 = vector.load %arg2[%c3_62, %c0_63] : memref<4x256xf32, #tpu.memory_space<vmem>>, vector<1x256xf32>
    %c16_i32_64 = arith.constant 16 : i32
    %157 = tpu.dynamic_rotate %71 by %c16_i32_64 dim 1 : vector<8x256xf32>, i32 -> vector<8x256xf32>
    %158 = vector.broadcast %36 : vector<1x256xf32> to vector<8x256xf32>
    %159 = arith.mulf %157, %158 : vector<8x256xf32>
    %c240_i32_65 = arith.constant 240 : i32
    %160 = tpu.dynamic_rotate %71 by %c240_i32_65 dim 1 : vector<8x256xf32>, i32 -> vector<8x256xf32>
    %161 = vector.broadcast %31 : vector<1x256xf32> to vector<8x256xf32>
    %162 = arith.mulf %160, %161 : vector<8x256xf32>
    %c1_i32_66 = arith.constant 1 : i32
    %163 = tpu.dynamic_rotate %159 by %c1_i32_66 dim 1 : vector<8x256xf32>, i32 -> vector<8x256xf32>
    %164 = vector.broadcast %26 : vector<1x256xf32> to vector<8x256xf32>
    %165 = arith.mulf %163, %164 : vector<8x256xf32>
    %c255_i32 = arith.constant 255 : i32
    %166 = tpu.dynamic_rotate %159 by %c255_i32 dim 1 : vector<8x256xf32>, i32 -> vector<8x256xf32>
    %167 = vector.broadcast %21 : vector<1x256xf32> to vector<8x256xf32>
    %168 = arith.mulf %166, %167 : vector<8x256xf32>
    %c0_67 = arith.constant 0 : index
    %169 = memref.load %arg6[%c0_67] : memref<144xf32, #tpu.memory_space<smem>>
    %170 = vector.broadcast %169 : f32 to vector<8x256xf32>
    %171 = arith.mulf %170, %165 : vector<8x256xf32>
    %172 = vector.broadcast %153 : vector<1x256xf32> to vector<8x256xf32>
    %173 = arith.addf %172, %171 : vector<8x256xf32>
    %c36 = arith.constant 36 : index
    %174 = memref.load %arg6[%c36] : memref<144xf32, #tpu.memory_space<smem>>
    %175 = vector.broadcast %174 : f32 to vector<8x256xf32>
    %176 = arith.mulf %175, %165 : vector<8x256xf32>
    %177 = vector.broadcast %154 : vector<1x256xf32> to vector<8x256xf32>
    %178 = arith.addf %177, %176 : vector<8x256xf32>
    %c72 = arith.constant 72 : index
    %179 = memref.load %arg6[%c72] : memref<144xf32, #tpu.memory_space<smem>>
    %180 = vector.broadcast %179 : f32 to vector<8x256xf32>
    %181 = arith.mulf %180, %165 : vector<8x256xf32>
    %182 = vector.broadcast %155 : vector<1x256xf32> to vector<8x256xf32>
    %183 = arith.addf %182, %181 : vector<8x256xf32>
    %c108 = arith.constant 108 : index
    %184 = memref.load %arg6[%c108] : memref<144xf32, #tpu.memory_space<smem>>
    %185 = vector.broadcast %184 : f32 to vector<8x256xf32>
    %186 = arith.mulf %185, %165 : vector<8x256xf32>
    %187 = vector.broadcast %156 : vector<1x256xf32> to vector<8x256xf32>
    %188 = arith.addf %187, %186 : vector<8x256xf32>
    %c1_68 = arith.constant 1 : index
    %189 = memref.load %arg6[%c1_68] : memref<144xf32, #tpu.memory_space<smem>>
    %190 = vector.broadcast %189 : f32 to vector<8x256xf32>
    %191 = arith.mulf %190, %159 : vector<8x256xf32>
    %192 = arith.addf %173, %191 : vector<8x256xf32>
    %c37 = arith.constant 37 : index
    %193 = memref.load %arg6[%c37] : memref<144xf32, #tpu.memory_space<smem>>
    %194 = vector.broadcast %193 : f32 to vector<8x256xf32>
    %195 = arith.mulf %194, %159 : vector<8x256xf32>
    %196 = arith.addf %178, %195 : vector<8x256xf32>
    %c73 = arith.constant 73 : index
    %197 = memref.load %arg6[%c73] : memref<144xf32, #tpu.memory_space<smem>>
    %198 = vector.broadcast %197 : f32 to vector<8x256xf32>
    %199 = arith.mulf %198, %159 : vector<8x256xf32>
    %200 = arith.addf %183, %199 : vector<8x256xf32>
    %c109 = arith.constant 109 : index
    %201 = memref.load %arg6[%c109] : memref<144xf32, #tpu.memory_space<smem>>
    %202 = vector.broadcast %201 : f32 to vector<8x256xf32>
    %203 = arith.mulf %202, %159 : vector<8x256xf32>
    %204 = arith.addf %188, %203 : vector<8x256xf32>
    %c2_69 = arith.constant 2 : index
    %205 = memref.load %arg6[%c2_69] : memref<144xf32, #tpu.memory_space<smem>>
    %206 = vector.broadcast %205 : f32 to vector<8x256xf32>
    %207 = arith.mulf %206, %168 : vector<8x256xf32>
    %208 = arith.addf %192, %207 : vector<8x256xf32>
    %c38 = arith.constant 38 : index
    %209 = memref.load %arg6[%c38] : memref<144xf32, #tpu.memory_space<smem>>
    %210 = vector.broadcast %209 : f32 to vector<8x256xf32>
    %211 = arith.mulf %210, %168 : vector<8x256xf32>
    %212 = arith.addf %196, %211 : vector<8x256xf32>
    %c74 = arith.constant 74 : index
    %213 = memref.load %arg6[%c74] : memref<144xf32, #tpu.memory_space<smem>>
    %214 = vector.broadcast %213 : f32 to vector<8x256xf32>
    %215 = arith.mulf %214, %168 : vector<8x256xf32>
    %216 = arith.addf %200, %215 : vector<8x256xf32>
    %c110 = arith.constant 110 : index
    %217 = memref.load %arg6[%c110] : memref<144xf32, #tpu.memory_space<smem>>
    %218 = vector.broadcast %217 : f32 to vector<8x256xf32>
    %219 = arith.mulf %218, %168 : vector<8x256xf32>
    %220 = arith.addf %204, %219 : vector<8x256xf32>
    %c1_i32_70 = arith.constant 1 : i32
    %221 = tpu.dynamic_rotate %71 by %c1_i32_70 dim 1 : vector<8x256xf32>, i32 -> vector<8x256xf32>
    %222 = vector.broadcast %26 : vector<1x256xf32> to vector<8x256xf32>
    %223 = arith.mulf %221, %222 : vector<8x256xf32>
    %c255_i32_71 = arith.constant 255 : i32
    %224 = tpu.dynamic_rotate %71 by %c255_i32_71 dim 1 : vector<8x256xf32>, i32 -> vector<8x256xf32>
    %225 = vector.broadcast %21 : vector<1x256xf32> to vector<8x256xf32>
    %226 = arith.mulf %224, %225 : vector<8x256xf32>
    %c3_72 = arith.constant 3 : index
    %227 = memref.load %arg6[%c3_72] : memref<144xf32, #tpu.memory_space<smem>>
    %228 = vector.broadcast %227 : f32 to vector<8x256xf32>
    %229 = arith.mulf %228, %223 : vector<8x256xf32>
    %230 = arith.addf %208, %229 : vector<8x256xf32>
    %c39 = arith.constant 39 : index
    %231 = memref.load %arg6[%c39] : memref<144xf32, #tpu.memory_space<smem>>
    %232 = vector.broadcast %231 : f32 to vector<8x256xf32>
    %233 = arith.mulf %232, %223 : vector<8x256xf32>
    %234 = arith.addf %212, %233 : vector<8x256xf32>
    %c75 = arith.constant 75 : index
    %235 = memref.load %arg6[%c75] : memref<144xf32, #tpu.memory_space<smem>>
    %236 = vector.broadcast %235 : f32 to vector<8x256xf32>
    %237 = arith.mulf %236, %223 : vector<8x256xf32>
    %238 = arith.addf %216, %237 : vector<8x256xf32>
    %c111 = arith.constant 111 : index
    %239 = memref.load %arg6[%c111] : memref<144xf32, #tpu.memory_space<smem>>
    %240 = vector.broadcast %239 : f32 to vector<8x256xf32>
    %241 = arith.mulf %240, %223 : vector<8x256xf32>
    %242 = arith.addf %220, %241 : vector<8x256xf32>
    %c4 = arith.constant 4 : index
    %243 = memref.load %arg6[%c4] : memref<144xf32, #tpu.memory_space<smem>>
    %244 = vector.broadcast %243 : f32 to vector<8x256xf32>
    %245 = arith.mulf %244, %71 : vector<8x256xf32>
    %246 = arith.addf %230, %245 : vector<8x256xf32>
    %c40 = arith.constant 40 : index
    %247 = memref.load %arg6[%c40] : memref<144xf32, #tpu.memory_space<smem>>
    %248 = vector.broadcast %247 : f32 to vector<8x256xf32>
    %249 = arith.mulf %248, %71 : vector<8x256xf32>
    %250 = arith.addf %234, %249 : vector<8x256xf32>
    %c76 = arith.constant 76 : index
    %251 = memref.load %arg6[%c76] : memref<144xf32, #tpu.memory_space<smem>>
    %252 = vector.broadcast %251 : f32 to vector<8x256xf32>
    %253 = arith.mulf %252, %71 : vector<8x256xf32>
    %254 = arith.addf %238, %253 : vector<8x256xf32>
    %c112 = arith.constant 112 : index
    %255 = memref.load %arg6[%c112] : memref<144xf32, #tpu.memory_space<smem>>
    %256 = vector.broadcast %255 : f32 to vector<8x256xf32>
    %257 = arith.mulf %256, %71 : vector<8x256xf32>
    %258 = arith.addf %242, %257 : vector<8x256xf32>
    %c5 = arith.constant 5 : index
    %259 = memref.load %arg6[%c5] : memref<144xf32, #tpu.memory_space<smem>>
    %260 = vector.broadcast %259 : f32 to vector<8x256xf32>
    %261 = arith.mulf %260, %226 : vector<8x256xf32>
    %262 = arith.addf %246, %261 : vector<8x256xf32>
    %c41 = arith.constant 41 : index
    %263 = memref.load %arg6[%c41] : memref<144xf32, #tpu.memory_space<smem>>
    %264 = vector.broadcast %263 : f32 to vector<8x256xf32>
    %265 = arith.mulf %264, %226 : vector<8x256xf32>
    %266 = arith.addf %250, %265 : vector<8x256xf32>
    %c77 = arith.constant 77 : index
    %267 = memref.load %arg6[%c77] : memref<144xf32, #tpu.memory_space<smem>>
    %268 = vector.broadcast %267 : f32 to vector<8x256xf32>
    %269 = arith.mulf %268, %226 : vector<8x256xf32>
    %270 = arith.addf %254, %269 : vector<8x256xf32>
    %c113 = arith.constant 113 : index
    %271 = memref.load %arg6[%c113] : memref<144xf32, #tpu.memory_space<smem>>
    %272 = vector.broadcast %271 : f32 to vector<8x256xf32>
    %273 = arith.mulf %272, %226 : vector<8x256xf32>
    %274 = arith.addf %258, %273 : vector<8x256xf32>
    %c1_i32_73 = arith.constant 1 : i32
    %275 = tpu.dynamic_rotate %162 by %c1_i32_73 dim 1 : vector<8x256xf32>, i32 -> vector<8x256xf32>
    %276 = vector.broadcast %26 : vector<1x256xf32> to vector<8x256xf32>
    %277 = arith.mulf %275, %276 : vector<8x256xf32>
    %c255_i32_74 = arith.constant 255 : i32
    %278 = tpu.dynamic_rotate %162 by %c255_i32_74 dim 1 : vector<8x256xf32>, i32 -> vector<8x256xf32>
    %279 = vector.broadcast %21 : vector<1x256xf32> to vector<8x256xf32>
    %280 = arith.mulf %278, %279 : vector<8x256xf32>
    %c6 = arith.constant 6 : index
    %281 = memref.load %arg6[%c6] : memref<144xf32, #tpu.memory_space<smem>>
    %282 = vector.broadcast %281 : f32 to vector<8x256xf32>
    %283 = arith.mulf %282, %277 : vector<8x256xf32>
    %284 = arith.addf %262, %283 : vector<8x256xf32>
    %c42 = arith.constant 42 : index
    %285 = memref.load %arg6[%c42] : memref<144xf32, #tpu.memory_space<smem>>
    %286 = vector.broadcast %285 : f32 to vector<8x256xf32>
    %287 = arith.mulf %286, %277 : vector<8x256xf32>
    %288 = arith.addf %266, %287 : vector<8x256xf32>
    %c78 = arith.constant 78 : index
    %289 = memref.load %arg6[%c78] : memref<144xf32, #tpu.memory_space<smem>>
    %290 = vector.broadcast %289 : f32 to vector<8x256xf32>
    %291 = arith.mulf %290, %277 : vector<8x256xf32>
    %292 = arith.addf %270, %291 : vector<8x256xf32>
    %c114 = arith.constant 114 : index
    %293 = memref.load %arg6[%c114] : memref<144xf32, #tpu.memory_space<smem>>
    %294 = vector.broadcast %293 : f32 to vector<8x256xf32>
    %295 = arith.mulf %294, %277 : vector<8x256xf32>
    %296 = arith.addf %274, %295 : vector<8x256xf32>
    %c7 = arith.constant 7 : index
    %297 = memref.load %arg6[%c7] : memref<144xf32, #tpu.memory_space<smem>>
    %298 = vector.broadcast %297 : f32 to vector<8x256xf32>
    %299 = arith.mulf %298, %162 : vector<8x256xf32>
    %300 = arith.addf %284, %299 : vector<8x256xf32>
    %c43 = arith.constant 43 : index
    %301 = memref.load %arg6[%c43] : memref<144xf32, #tpu.memory_space<smem>>
    %302 = vector.broadcast %301 : f32 to vector<8x256xf32>
    %303 = arith.mulf %302, %162 : vector<8x256xf32>
    %304 = arith.addf %288, %303 : vector<8x256xf32>
    %c79 = arith.constant 79 : index
    %305 = memref.load %arg6[%c79] : memref<144xf32, #tpu.memory_space<smem>>
    %306 = vector.broadcast %305 : f32 to vector<8x256xf32>
    %307 = arith.mulf %306, %162 : vector<8x256xf32>
    %308 = arith.addf %292, %307 : vector<8x256xf32>
    %c115 = arith.constant 115 : index
    %309 = memref.load %arg6[%c115] : memref<144xf32, #tpu.memory_space<smem>>
    %310 = vector.broadcast %309 : f32 to vector<8x256xf32>
    %311 = arith.mulf %310, %162 : vector<8x256xf32>
    %312 = arith.addf %296, %311 : vector<8x256xf32>
    %c8 = arith.constant 8 : index
    %313 = memref.load %arg6[%c8] : memref<144xf32, #tpu.memory_space<smem>>
    %314 = vector.broadcast %313 : f32 to vector<8x256xf32>
    %315 = arith.mulf %314, %280 : vector<8x256xf32>
    %316 = arith.addf %300, %315 : vector<8x256xf32>
    %c44 = arith.constant 44 : index
    %317 = memref.load %arg6[%c44] : memref<144xf32, #tpu.memory_space<smem>>
    %318 = vector.broadcast %317 : f32 to vector<8x256xf32>
    %319 = arith.mulf %318, %280 : vector<8x256xf32>
    %320 = arith.addf %304, %319 : vector<8x256xf32>
    %c80 = arith.constant 80 : index
    %321 = memref.load %arg6[%c80] : memref<144xf32, #tpu.memory_space<smem>>
    %322 = vector.broadcast %321 : f32 to vector<8x256xf32>
    %323 = arith.mulf %322, %280 : vector<8x256xf32>
    %324 = arith.addf %308, %323 : vector<8x256xf32>
    %c116 = arith.constant 116 : index
    %325 = memref.load %arg6[%c116] : memref<144xf32, #tpu.memory_space<smem>>
    %326 = vector.broadcast %325 : f32 to vector<8x256xf32>
    %327 = arith.mulf %326, %280 : vector<8x256xf32>
    %328 = arith.addf %312, %327 : vector<8x256xf32>
    %c16_i32_75 = arith.constant 16 : i32
    %329 = tpu.dynamic_rotate %98 by %c16_i32_75 dim 1 : vector<8x256xf32>, i32 -> vector<8x256xf32>
    %330 = vector.broadcast %36 : vector<1x256xf32> to vector<8x256xf32>
    %331 = arith.mulf %329, %330 : vector<8x256xf32>
    %c240_i32_76 = arith.constant 240 : i32
    %332 = tpu.dynamic_rotate %98 by %c240_i32_76 dim 1 : vector<8x256xf32>, i32 -> vector<8x256xf32>
    %333 = vector.broadcast %31 : vector<1x256xf32> to vector<8x256xf32>
    %334 = arith.mulf %332, %333 : vector<8x256xf32>
    %c1_i32_77 = arith.constant 1 : i32
    %335 = tpu.dynamic_rotate %331 by %c1_i32_77 dim 1 : vector<8x256xf32>, i32 -> vector<8x256xf32>
    %336 = vector.broadcast %26 : vector<1x256xf32> to vector<8x256xf32>
    %337 = arith.mulf %335, %336 : vector<8x256xf32>
    %c255_i32_78 = arith.constant 255 : i32
    %338 = tpu.dynamic_rotate %331 by %c255_i32_78 dim 1 : vector<8x256xf32>, i32 -> vector<8x256xf32>
    %339 = vector.broadcast %21 : vector<1x256xf32> to vector<8x256xf32>
    %340 = arith.mulf %338, %339 : vector<8x256xf32>
    %c9 = arith.constant 9 : index
    %341 = memref.load %arg6[%c9] : memref<144xf32, #tpu.memory_space<smem>>
    %342 = vector.broadcast %341 : f32 to vector<8x256xf32>
    %343 = arith.mulf %342, %337 : vector<8x256xf32>
    %344 = arith.addf %316, %343 : vector<8x256xf32>
    %c45 = arith.constant 45 : index
    %345 = memref.load %arg6[%c45] : memref<144xf32, #tpu.memory_space<smem>>
    %346 = vector.broadcast %345 : f32 to vector<8x256xf32>
    %347 = arith.mulf %346, %337 : vector<8x256xf32>
    %348 = arith.addf %320, %347 : vector<8x256xf32>
    %c81 = arith.constant 81 : index
    %349 = memref.load %arg6[%c81] : memref<144xf32, #tpu.memory_space<smem>>
    %350 = vector.broadcast %349 : f32 to vector<8x256xf32>
    %351 = arith.mulf %350, %337 : vector<8x256xf32>
    %352 = arith.addf %324, %351 : vector<8x256xf32>
    %c117 = arith.constant 117 : index
    %353 = memref.load %arg6[%c117] : memref<144xf32, #tpu.memory_space<smem>>
    %354 = vector.broadcast %353 : f32 to vector<8x256xf32>
    %355 = arith.mulf %354, %337 : vector<8x256xf32>
    %356 = arith.addf %328, %355 : vector<8x256xf32>
    %c10 = arith.constant 10 : index
    %357 = memref.load %arg6[%c10] : memref<144xf32, #tpu.memory_space<smem>>
    %358 = vector.broadcast %357 : f32 to vector<8x256xf32>
    %359 = arith.mulf %358, %331 : vector<8x256xf32>
    %360 = arith.addf %344, %359 : vector<8x256xf32>
    %c46 = arith.constant 46 : index
    %361 = memref.load %arg6[%c46] : memref<144xf32, #tpu.memory_space<smem>>
    %362 = vector.broadcast %361 : f32 to vector<8x256xf32>
    %363 = arith.mulf %362, %331 : vector<8x256xf32>
    %364 = arith.addf %348, %363 : vector<8x256xf32>
    %c82 = arith.constant 82 : index
    %365 = memref.load %arg6[%c82] : memref<144xf32, #tpu.memory_space<smem>>
    %366 = vector.broadcast %365 : f32 to vector<8x256xf32>
    %367 = arith.mulf %366, %331 : vector<8x256xf32>
    %368 = arith.addf %352, %367 : vector<8x256xf32>
    %c118 = arith.constant 118 : index
    %369 = memref.load %arg6[%c118] : memref<144xf32, #tpu.memory_space<smem>>
    %370 = vector.broadcast %369 : f32 to vector<8x256xf32>
    %371 = arith.mulf %370, %331 : vector<8x256xf32>
    %372 = arith.addf %356, %371 : vector<8x256xf32>
    %c11 = arith.constant 11 : index
    %373 = memref.load %arg6[%c11] : memref<144xf32, #tpu.memory_space<smem>>
    %374 = vector.broadcast %373 : f32 to vector<8x256xf32>
    %375 = arith.mulf %374, %340 : vector<8x256xf32>
    %376 = arith.addf %360, %375 : vector<8x256xf32>
    %c47 = arith.constant 47 : index
    %377 = memref.load %arg6[%c47] : memref<144xf32, #tpu.memory_space<smem>>
    %378 = vector.broadcast %377 : f32 to vector<8x256xf32>
    %379 = arith.mulf %378, %340 : vector<8x256xf32>
    %380 = arith.addf %364, %379 : vector<8x256xf32>
    %c83 = arith.constant 83 : index
    %381 = memref.load %arg6[%c83] : memref<144xf32, #tpu.memory_space<smem>>
    %382 = vector.broadcast %381 : f32 to vector<8x256xf32>
    %383 = arith.mulf %382, %340 : vector<8x256xf32>
    %384 = arith.addf %368, %383 : vector<8x256xf32>
    %c119 = arith.constant 119 : index
    %385 = memref.load %arg6[%c119] : memref<144xf32, #tpu.memory_space<smem>>
    %386 = vector.broadcast %385 : f32 to vector<8x256xf32>
    %387 = arith.mulf %386, %340 : vector<8x256xf32>
    %388 = arith.addf %372, %387 : vector<8x256xf32>
    %c1_i32_79 = arith.constant 1 : i32
    %389 = tpu.dynamic_rotate %98 by %c1_i32_79 dim 1 : vector<8x256xf32>, i32 -> vector<8x256xf32>
    %390 = vector.broadcast %26 : vector<1x256xf32> to vector<8x256xf32>
    %391 = arith.mulf %389, %390 : vector<8x256xf32>
    %c255_i32_80 = arith.constant 255 : i32
    %392 = tpu.dynamic_rotate %98 by %c255_i32_80 dim 1 : vector<8x256xf32>, i32 -> vector<8x256xf32>
    %393 = vector.broadcast %21 : vector<1x256xf32> to vector<8x256xf32>
    %394 = arith.mulf %392, %393 : vector<8x256xf32>
    %c12 = arith.constant 12 : index
    %395 = memref.load %arg6[%c12] : memref<144xf32, #tpu.memory_space<smem>>
    %396 = vector.broadcast %395 : f32 to vector<8x256xf32>
    %397 = arith.mulf %396, %391 : vector<8x256xf32>
    %398 = arith.addf %376, %397 : vector<8x256xf32>
    %c48 = arith.constant 48 : index
    %399 = memref.load %arg6[%c48] : memref<144xf32, #tpu.memory_space<smem>>
    %400 = vector.broadcast %399 : f32 to vector<8x256xf32>
    %401 = arith.mulf %400, %391 : vector<8x256xf32>
    %402 = arith.addf %380, %401 : vector<8x256xf32>
    %c84 = arith.constant 84 : index
    %403 = memref.load %arg6[%c84] : memref<144xf32, #tpu.memory_space<smem>>
    %404 = vector.broadcast %403 : f32 to vector<8x256xf32>
    %405 = arith.mulf %404, %391 : vector<8x256xf32>
    %406 = arith.addf %384, %405 : vector<8x256xf32>
    %c120 = arith.constant 120 : index
    %407 = memref.load %arg6[%c120] : memref<144xf32, #tpu.memory_space<smem>>
    %408 = vector.broadcast %407 : f32 to vector<8x256xf32>
    %409 = arith.mulf %408, %391 : vector<8x256xf32>
    %410 = arith.addf %388, %409 : vector<8x256xf32>
    %c13 = arith.constant 13 : index
    %411 = memref.load %arg6[%c13] : memref<144xf32, #tpu.memory_space<smem>>
    %412 = vector.broadcast %411 : f32 to vector<8x256xf32>
    %413 = arith.mulf %412, %98 : vector<8x256xf32>
    %414 = arith.addf %398, %413 : vector<8x256xf32>
    %c49 = arith.constant 49 : index
    %415 = memref.load %arg6[%c49] : memref<144xf32, #tpu.memory_space<smem>>
    %416 = vector.broadcast %415 : f32 to vector<8x256xf32>
    %417 = arith.mulf %416, %98 : vector<8x256xf32>
    %418 = arith.addf %402, %417 : vector<8x256xf32>
    %c85 = arith.constant 85 : index
    %419 = memref.load %arg6[%c85] : memref<144xf32, #tpu.memory_space<smem>>
    %420 = vector.broadcast %419 : f32 to vector<8x256xf32>
    %421 = arith.mulf %420, %98 : vector<8x256xf32>
    %422 = arith.addf %406, %421 : vector<8x256xf32>
    %c121 = arith.constant 121 : index
    %423 = memref.load %arg6[%c121] : memref<144xf32, #tpu.memory_space<smem>>
    %424 = vector.broadcast %423 : f32 to vector<8x256xf32>
    %425 = arith.mulf %424, %98 : vector<8x256xf32>
    %426 = arith.addf %410, %425 : vector<8x256xf32>
    %c14 = arith.constant 14 : index
    %427 = memref.load %arg6[%c14] : memref<144xf32, #tpu.memory_space<smem>>
    %428 = vector.broadcast %427 : f32 to vector<8x256xf32>
    %429 = arith.mulf %428, %394 : vector<8x256xf32>
    %430 = arith.addf %414, %429 : vector<8x256xf32>
    %c50 = arith.constant 50 : index
    %431 = memref.load %arg6[%c50] : memref<144xf32, #tpu.memory_space<smem>>
    %432 = vector.broadcast %431 : f32 to vector<8x256xf32>
    %433 = arith.mulf %432, %394 : vector<8x256xf32>
    %434 = arith.addf %418, %433 : vector<8x256xf32>
    %c86 = arith.constant 86 : index
    %435 = memref.load %arg6[%c86] : memref<144xf32, #tpu.memory_space<smem>>
    %436 = vector.broadcast %435 : f32 to vector<8x256xf32>
    %437 = arith.mulf %436, %394 : vector<8x256xf32>
    %438 = arith.addf %422, %437 : vector<8x256xf32>
    %c122 = arith.constant 122 : index
    %439 = memref.load %arg6[%c122] : memref<144xf32, #tpu.memory_space<smem>>
    %440 = vector.broadcast %439 : f32 to vector<8x256xf32>
    %441 = arith.mulf %440, %394 : vector<8x256xf32>
    %442 = arith.addf %426, %441 : vector<8x256xf32>
    %c1_i32_81 = arith.constant 1 : i32
    %443 = tpu.dynamic_rotate %334 by %c1_i32_81 dim 1 : vector<8x256xf32>, i32 -> vector<8x256xf32>
    %444 = vector.broadcast %26 : vector<1x256xf32> to vector<8x256xf32>
    %445 = arith.mulf %443, %444 : vector<8x256xf32>
    %c255_i32_82 = arith.constant 255 : i32
    %446 = tpu.dynamic_rotate %334 by %c255_i32_82 dim 1 : vector<8x256xf32>, i32 -> vector<8x256xf32>
    %447 = vector.broadcast %21 : vector<1x256xf32> to vector<8x256xf32>
    %448 = arith.mulf %446, %447 : vector<8x256xf32>
    %c15 = arith.constant 15 : index
    %449 = memref.load %arg6[%c15] : memref<144xf32, #tpu.memory_space<smem>>
    %450 = vector.broadcast %449 : f32 to vector<8x256xf32>
    %451 = arith.mulf %450, %445 : vector<8x256xf32>
    %452 = arith.addf %430, %451 : vector<8x256xf32>
    %c51 = arith.constant 51 : index
    %453 = memref.load %arg6[%c51] : memref<144xf32, #tpu.memory_space<smem>>
    %454 = vector.broadcast %453 : f32 to vector<8x256xf32>
    %455 = arith.mulf %454, %445 : vector<8x256xf32>
    %456 = arith.addf %434, %455 : vector<8x256xf32>
    %c87 = arith.constant 87 : index
    %457 = memref.load %arg6[%c87] : memref<144xf32, #tpu.memory_space<smem>>
    %458 = vector.broadcast %457 : f32 to vector<8x256xf32>
    %459 = arith.mulf %458, %445 : vector<8x256xf32>
    %460 = arith.addf %438, %459 : vector<8x256xf32>
    %c123 = arith.constant 123 : index
    %461 = memref.load %arg6[%c123] : memref<144xf32, #tpu.memory_space<smem>>
    %462 = vector.broadcast %461 : f32 to vector<8x256xf32>
    %463 = arith.mulf %462, %445 : vector<8x256xf32>
    %464 = arith.addf %442, %463 : vector<8x256xf32>
    %c16 = arith.constant 16 : index
    %465 = memref.load %arg6[%c16] : memref<144xf32, #tpu.memory_space<smem>>
    %466 = vector.broadcast %465 : f32 to vector<8x256xf32>
    %467 = arith.mulf %466, %334 : vector<8x256xf32>
    %468 = arith.addf %452, %467 : vector<8x256xf32>
    %c52 = arith.constant 52 : index
    %469 = memref.load %arg6[%c52] : memref<144xf32, #tpu.memory_space<smem>>
    %470 = vector.broadcast %469 : f32 to vector<8x256xf32>
    %471 = arith.mulf %470, %334 : vector<8x256xf32>
    %472 = arith.addf %456, %471 : vector<8x256xf32>
    %c88 = arith.constant 88 : index
    %473 = memref.load %arg6[%c88] : memref<144xf32, #tpu.memory_space<smem>>
    %474 = vector.broadcast %473 : f32 to vector<8x256xf32>
    %475 = arith.mulf %474, %334 : vector<8x256xf32>
    %476 = arith.addf %460, %475 : vector<8x256xf32>
    %c124 = arith.constant 124 : index
    %477 = memref.load %arg6[%c124] : memref<144xf32, #tpu.memory_space<smem>>
    %478 = vector.broadcast %477 : f32 to vector<8x256xf32>
    %479 = arith.mulf %478, %334 : vector<8x256xf32>
    %480 = arith.addf %464, %479 : vector<8x256xf32>
    %c17 = arith.constant 17 : index
    %481 = memref.load %arg6[%c17] : memref<144xf32, #tpu.memory_space<smem>>
    %482 = vector.broadcast %481 : f32 to vector<8x256xf32>
    %483 = arith.mulf %482, %448 : vector<8x256xf32>
    %484 = arith.addf %468, %483 : vector<8x256xf32>
    %c53 = arith.constant 53 : index
    %485 = memref.load %arg6[%c53] : memref<144xf32, #tpu.memory_space<smem>>
    %486 = vector.broadcast %485 : f32 to vector<8x256xf32>
    %487 = arith.mulf %486, %448 : vector<8x256xf32>
    %488 = arith.addf %472, %487 : vector<8x256xf32>
    %c89 = arith.constant 89 : index
    %489 = memref.load %arg6[%c89] : memref<144xf32, #tpu.memory_space<smem>>
    %490 = vector.broadcast %489 : f32 to vector<8x256xf32>
    %491 = arith.mulf %490, %448 : vector<8x256xf32>
    %492 = arith.addf %476, %491 : vector<8x256xf32>
    %c125 = arith.constant 125 : index
    %493 = memref.load %arg6[%c125] : memref<144xf32, #tpu.memory_space<smem>>
    %494 = vector.broadcast %493 : f32 to vector<8x256xf32>
    %495 = arith.mulf %494, %448 : vector<8x256xf32>
    %496 = arith.addf %480, %495 : vector<8x256xf32>
    %c16_i32_83 = arith.constant 16 : i32
    %497 = tpu.dynamic_rotate %125 by %c16_i32_83 dim 1 : vector<8x256xf32>, i32 -> vector<8x256xf32>
    %498 = vector.broadcast %36 : vector<1x256xf32> to vector<8x256xf32>
    %499 = arith.mulf %497, %498 : vector<8x256xf32>
    %c240_i32_84 = arith.constant 240 : i32
    %500 = tpu.dynamic_rotate %125 by %c240_i32_84 dim 1 : vector<8x256xf32>, i32 -> vector<8x256xf32>
    %501 = vector.broadcast %31 : vector<1x256xf32> to vector<8x256xf32>
    %502 = arith.mulf %500, %501 : vector<8x256xf32>
    %c1_i32_85 = arith.constant 1 : i32
    %503 = tpu.dynamic_rotate %499 by %c1_i32_85 dim 1 : vector<8x256xf32>, i32 -> vector<8x256xf32>
    %504 = vector.broadcast %26 : vector<1x256xf32> to vector<8x256xf32>
    %505 = arith.mulf %503, %504 : vector<8x256xf32>
    %c255_i32_86 = arith.constant 255 : i32
    %506 = tpu.dynamic_rotate %499 by %c255_i32_86 dim 1 : vector<8x256xf32>, i32 -> vector<8x256xf32>
    %507 = vector.broadcast %21 : vector<1x256xf32> to vector<8x256xf32>
    %508 = arith.mulf %506, %507 : vector<8x256xf32>
    %c18 = arith.constant 18 : index
    %509 = memref.load %arg6[%c18] : memref<144xf32, #tpu.memory_space<smem>>
    %510 = vector.broadcast %509 : f32 to vector<8x256xf32>
    %511 = arith.mulf %510, %505 : vector<8x256xf32>
    %512 = arith.addf %484, %511 : vector<8x256xf32>
    %c54 = arith.constant 54 : index
    %513 = memref.load %arg6[%c54] : memref<144xf32, #tpu.memory_space<smem>>
    %514 = vector.broadcast %513 : f32 to vector<8x256xf32>
    %515 = arith.mulf %514, %505 : vector<8x256xf32>
    %516 = arith.addf %488, %515 : vector<8x256xf32>
    %c90 = arith.constant 90 : index
    %517 = memref.load %arg6[%c90] : memref<144xf32, #tpu.memory_space<smem>>
    %518 = vector.broadcast %517 : f32 to vector<8x256xf32>
    %519 = arith.mulf %518, %505 : vector<8x256xf32>
    %520 = arith.addf %492, %519 : vector<8x256xf32>
    %c126 = arith.constant 126 : index
    %521 = memref.load %arg6[%c126] : memref<144xf32, #tpu.memory_space<smem>>
    %522 = vector.broadcast %521 : f32 to vector<8x256xf32>
    %523 = arith.mulf %522, %505 : vector<8x256xf32>
    %524 = arith.addf %496, %523 : vector<8x256xf32>
    %c19 = arith.constant 19 : index
    %525 = memref.load %arg6[%c19] : memref<144xf32, #tpu.memory_space<smem>>
    %526 = vector.broadcast %525 : f32 to vector<8x256xf32>
    %527 = arith.mulf %526, %499 : vector<8x256xf32>
    %528 = arith.addf %512, %527 : vector<8x256xf32>
    %c55 = arith.constant 55 : index
    %529 = memref.load %arg6[%c55] : memref<144xf32, #tpu.memory_space<smem>>
    %530 = vector.broadcast %529 : f32 to vector<8x256xf32>
    %531 = arith.mulf %530, %499 : vector<8x256xf32>
    %532 = arith.addf %516, %531 : vector<8x256xf32>
    %c91 = arith.constant 91 : index
    %533 = memref.load %arg6[%c91] : memref<144xf32, #tpu.memory_space<smem>>
    %534 = vector.broadcast %533 : f32 to vector<8x256xf32>
    %535 = arith.mulf %534, %499 : vector<8x256xf32>
    %536 = arith.addf %520, %535 : vector<8x256xf32>
    %c127 = arith.constant 127 : index
    %537 = memref.load %arg6[%c127] : memref<144xf32, #tpu.memory_space<smem>>
    %538 = vector.broadcast %537 : f32 to vector<8x256xf32>
    %539 = arith.mulf %538, %499 : vector<8x256xf32>
    %540 = arith.addf %524, %539 : vector<8x256xf32>
    %c20 = arith.constant 20 : index
    %541 = memref.load %arg6[%c20] : memref<144xf32, #tpu.memory_space<smem>>
    %542 = vector.broadcast %541 : f32 to vector<8x256xf32>
    %543 = arith.mulf %542, %508 : vector<8x256xf32>
    %544 = arith.addf %528, %543 : vector<8x256xf32>
    %c56 = arith.constant 56 : index
    %545 = memref.load %arg6[%c56] : memref<144xf32, #tpu.memory_space<smem>>
    %546 = vector.broadcast %545 : f32 to vector<8x256xf32>
    %547 = arith.mulf %546, %508 : vector<8x256xf32>
    %548 = arith.addf %532, %547 : vector<8x256xf32>
    %c92 = arith.constant 92 : index
    %549 = memref.load %arg6[%c92] : memref<144xf32, #tpu.memory_space<smem>>
    %550 = vector.broadcast %549 : f32 to vector<8x256xf32>
    %551 = arith.mulf %550, %508 : vector<8x256xf32>
    %552 = arith.addf %536, %551 : vector<8x256xf32>
    %c128 = arith.constant 128 : index
    %553 = memref.load %arg6[%c128] : memref<144xf32, #tpu.memory_space<smem>>
    %554 = vector.broadcast %553 : f32 to vector<8x256xf32>
    %555 = arith.mulf %554, %508 : vector<8x256xf32>
    %556 = arith.addf %540, %555 : vector<8x256xf32>
    %c1_i32_87 = arith.constant 1 : i32
    %557 = tpu.dynamic_rotate %125 by %c1_i32_87 dim 1 : vector<8x256xf32>, i32 -> vector<8x256xf32>
    %558 = vector.broadcast %26 : vector<1x256xf32> to vector<8x256xf32>
    %559 = arith.mulf %557, %558 : vector<8x256xf32>
    %c255_i32_88 = arith.constant 255 : i32
    %560 = tpu.dynamic_rotate %125 by %c255_i32_88 dim 1 : vector<8x256xf32>, i32 -> vector<8x256xf32>
    %561 = vector.broadcast %21 : vector<1x256xf32> to vector<8x256xf32>
    %562 = arith.mulf %560, %561 : vector<8x256xf32>
    %c21 = arith.constant 21 : index
    %563 = memref.load %arg6[%c21] : memref<144xf32, #tpu.memory_space<smem>>
    %564 = vector.broadcast %563 : f32 to vector<8x256xf32>
    %565 = arith.mulf %564, %559 : vector<8x256xf32>
    %566 = arith.addf %544, %565 : vector<8x256xf32>
    %c57 = arith.constant 57 : index
    %567 = memref.load %arg6[%c57] : memref<144xf32, #tpu.memory_space<smem>>
    %568 = vector.broadcast %567 : f32 to vector<8x256xf32>
    %569 = arith.mulf %568, %559 : vector<8x256xf32>
    %570 = arith.addf %548, %569 : vector<8x256xf32>
    %c93 = arith.constant 93 : index
    %571 = memref.load %arg6[%c93] : memref<144xf32, #tpu.memory_space<smem>>
    %572 = vector.broadcast %571 : f32 to vector<8x256xf32>
    %573 = arith.mulf %572, %559 : vector<8x256xf32>
    %574 = arith.addf %552, %573 : vector<8x256xf32>
    %c129 = arith.constant 129 : index
    %575 = memref.load %arg6[%c129] : memref<144xf32, #tpu.memory_space<smem>>
    %576 = vector.broadcast %575 : f32 to vector<8x256xf32>
    %577 = arith.mulf %576, %559 : vector<8x256xf32>
    %578 = arith.addf %556, %577 : vector<8x256xf32>
    %c22 = arith.constant 22 : index
    %579 = memref.load %arg6[%c22] : memref<144xf32, #tpu.memory_space<smem>>
    %580 = vector.broadcast %579 : f32 to vector<8x256xf32>
    %581 = arith.mulf %580, %125 : vector<8x256xf32>
    %582 = arith.addf %566, %581 : vector<8x256xf32>
    %c58 = arith.constant 58 : index
    %583 = memref.load %arg6[%c58] : memref<144xf32, #tpu.memory_space<smem>>
    %584 = vector.broadcast %583 : f32 to vector<8x256xf32>
    %585 = arith.mulf %584, %125 : vector<8x256xf32>
    %586 = arith.addf %570, %585 : vector<8x256xf32>
    %c94 = arith.constant 94 : index
    %587 = memref.load %arg6[%c94] : memref<144xf32, #tpu.memory_space<smem>>
    %588 = vector.broadcast %587 : f32 to vector<8x256xf32>
    %589 = arith.mulf %588, %125 : vector<8x256xf32>
    %590 = arith.addf %574, %589 : vector<8x256xf32>
    %c130 = arith.constant 130 : index
    %591 = memref.load %arg6[%c130] : memref<144xf32, #tpu.memory_space<smem>>
    %592 = vector.broadcast %591 : f32 to vector<8x256xf32>
    %593 = arith.mulf %592, %125 : vector<8x256xf32>
    %594 = arith.addf %578, %593 : vector<8x256xf32>
    %c23 = arith.constant 23 : index
    %595 = memref.load %arg6[%c23] : memref<144xf32, #tpu.memory_space<smem>>
    %596 = vector.broadcast %595 : f32 to vector<8x256xf32>
    %597 = arith.mulf %596, %562 : vector<8x256xf32>
    %598 = arith.addf %582, %597 : vector<8x256xf32>
    %c59 = arith.constant 59 : index
    %599 = memref.load %arg6[%c59] : memref<144xf32, #tpu.memory_space<smem>>
    %600 = vector.broadcast %599 : f32 to vector<8x256xf32>
    %601 = arith.mulf %600, %562 : vector<8x256xf32>
    %602 = arith.addf %586, %601 : vector<8x256xf32>
    %c95 = arith.constant 95 : index
    %603 = memref.load %arg6[%c95] : memref<144xf32, #tpu.memory_space<smem>>
    %604 = vector.broadcast %603 : f32 to vector<8x256xf32>
    %605 = arith.mulf %604, %562 : vector<8x256xf32>
    %606 = arith.addf %590, %605 : vector<8x256xf32>
    %c131 = arith.constant 131 : index
    %607 = memref.load %arg6[%c131] : memref<144xf32, #tpu.memory_space<smem>>
    %608 = vector.broadcast %607 : f32 to vector<8x256xf32>
    %609 = arith.mulf %608, %562 : vector<8x256xf32>
    %610 = arith.addf %594, %609 : vector<8x256xf32>
    %c1_i32_89 = arith.constant 1 : i32
    %611 = tpu.dynamic_rotate %502 by %c1_i32_89 dim 1 : vector<8x256xf32>, i32 -> vector<8x256xf32>
    %612 = vector.broadcast %26 : vector<1x256xf32> to vector<8x256xf32>
    %613 = arith.mulf %611, %612 : vector<8x256xf32>
    %c255_i32_90 = arith.constant 255 : i32
    %614 = tpu.dynamic_rotate %502 by %c255_i32_90 dim 1 : vector<8x256xf32>, i32 -> vector<8x256xf32>
    %615 = vector.broadcast %21 : vector<1x256xf32> to vector<8x256xf32>
    %616 = arith.mulf %614, %615 : vector<8x256xf32>
    %c24 = arith.constant 24 : index
    %617 = memref.load %arg6[%c24] : memref<144xf32, #tpu.memory_space<smem>>
    %618 = vector.broadcast %617 : f32 to vector<8x256xf32>
    %619 = arith.mulf %618, %613 : vector<8x256xf32>
    %620 = arith.addf %598, %619 : vector<8x256xf32>
    %c60 = arith.constant 60 : index
    %621 = memref.load %arg6[%c60] : memref<144xf32, #tpu.memory_space<smem>>
    %622 = vector.broadcast %621 : f32 to vector<8x256xf32>
    %623 = arith.mulf %622, %613 : vector<8x256xf32>
    %624 = arith.addf %602, %623 : vector<8x256xf32>
    %c96 = arith.constant 96 : index
    %625 = memref.load %arg6[%c96] : memref<144xf32, #tpu.memory_space<smem>>
    %626 = vector.broadcast %625 : f32 to vector<8x256xf32>
    %627 = arith.mulf %626, %613 : vector<8x256xf32>
    %628 = arith.addf %606, %627 : vector<8x256xf32>
    %c132 = arith.constant 132 : index
    %629 = memref.load %arg6[%c132] : memref<144xf32, #tpu.memory_space<smem>>
    %630 = vector.broadcast %629 : f32 to vector<8x256xf32>
    %631 = arith.mulf %630, %613 : vector<8x256xf32>
    %632 = arith.addf %610, %631 : vector<8x256xf32>
    %c25 = arith.constant 25 : index
    %633 = memref.load %arg6[%c25] : memref<144xf32, #tpu.memory_space<smem>>
    %634 = vector.broadcast %633 : f32 to vector<8x256xf32>
    %635 = arith.mulf %634, %502 : vector<8x256xf32>
    %636 = arith.addf %620, %635 : vector<8x256xf32>
    %c61 = arith.constant 61 : index
    %637 = memref.load %arg6[%c61] : memref<144xf32, #tpu.memory_space<smem>>
    %638 = vector.broadcast %637 : f32 to vector<8x256xf32>
    %639 = arith.mulf %638, %502 : vector<8x256xf32>
    %640 = arith.addf %624, %639 : vector<8x256xf32>
    %c97 = arith.constant 97 : index
    %641 = memref.load %arg6[%c97] : memref<144xf32, #tpu.memory_space<smem>>
    %642 = vector.broadcast %641 : f32 to vector<8x256xf32>
    %643 = arith.mulf %642, %502 : vector<8x256xf32>
    %644 = arith.addf %628, %643 : vector<8x256xf32>
    %c133 = arith.constant 133 : index
    %645 = memref.load %arg6[%c133] : memref<144xf32, #tpu.memory_space<smem>>
    %646 = vector.broadcast %645 : f32 to vector<8x256xf32>
    %647 = arith.mulf %646, %502 : vector<8x256xf32>
    %648 = arith.addf %632, %647 : vector<8x256xf32>
    %c26 = arith.constant 26 : index
    %649 = memref.load %arg6[%c26] : memref<144xf32, #tpu.memory_space<smem>>
    %650 = vector.broadcast %649 : f32 to vector<8x256xf32>
    %651 = arith.mulf %650, %616 : vector<8x256xf32>
    %652 = arith.addf %636, %651 : vector<8x256xf32>
    %c62 = arith.constant 62 : index
    %653 = memref.load %arg6[%c62] : memref<144xf32, #tpu.memory_space<smem>>
    %654 = vector.broadcast %653 : f32 to vector<8x256xf32>
    %655 = arith.mulf %654, %616 : vector<8x256xf32>
    %656 = arith.addf %640, %655 : vector<8x256xf32>
    %c98 = arith.constant 98 : index
    %657 = memref.load %arg6[%c98] : memref<144xf32, #tpu.memory_space<smem>>
    %658 = vector.broadcast %657 : f32 to vector<8x256xf32>
    %659 = arith.mulf %658, %616 : vector<8x256xf32>
    %660 = arith.addf %644, %659 : vector<8x256xf32>
    %c134 = arith.constant 134 : index
    %661 = memref.load %arg6[%c134] : memref<144xf32, #tpu.memory_space<smem>>
    %662 = vector.broadcast %661 : f32 to vector<8x256xf32>
    %663 = arith.mulf %662, %616 : vector<8x256xf32>
    %664 = arith.addf %648, %663 : vector<8x256xf32>
    %c16_i32_91 = arith.constant 16 : i32
    %665 = tpu.dynamic_rotate %152 by %c16_i32_91 dim 1 : vector<8x256xf32>, i32 -> vector<8x256xf32>
    %666 = vector.broadcast %36 : vector<1x256xf32> to vector<8x256xf32>
    %667 = arith.mulf %665, %666 : vector<8x256xf32>
    %c240_i32_92 = arith.constant 240 : i32
    %668 = tpu.dynamic_rotate %152 by %c240_i32_92 dim 1 : vector<8x256xf32>, i32 -> vector<8x256xf32>
    %669 = vector.broadcast %31 : vector<1x256xf32> to vector<8x256xf32>
    %670 = arith.mulf %668, %669 : vector<8x256xf32>
    %c1_i32_93 = arith.constant 1 : i32
    %671 = tpu.dynamic_rotate %667 by %c1_i32_93 dim 1 : vector<8x256xf32>, i32 -> vector<8x256xf32>
    %672 = vector.broadcast %26 : vector<1x256xf32> to vector<8x256xf32>
    %673 = arith.mulf %671, %672 : vector<8x256xf32>
    %c255_i32_94 = arith.constant 255 : i32
    %674 = tpu.dynamic_rotate %667 by %c255_i32_94 dim 1 : vector<8x256xf32>, i32 -> vector<8x256xf32>
    %675 = vector.broadcast %21 : vector<1x256xf32> to vector<8x256xf32>
    %676 = arith.mulf %674, %675 : vector<8x256xf32>
    %c27 = arith.constant 27 : index
    %677 = memref.load %arg6[%c27] : memref<144xf32, #tpu.memory_space<smem>>
    %678 = vector.broadcast %677 : f32 to vector<8x256xf32>
    %679 = arith.mulf %678, %673 : vector<8x256xf32>
    %680 = arith.addf %652, %679 : vector<8x256xf32>
    %c63 = arith.constant 63 : index
    %681 = memref.load %arg6[%c63] : memref<144xf32, #tpu.memory_space<smem>>
    %682 = vector.broadcast %681 : f32 to vector<8x256xf32>
    %683 = arith.mulf %682, %673 : vector<8x256xf32>
    %684 = arith.addf %656, %683 : vector<8x256xf32>
    %c99 = arith.constant 99 : index
    %685 = memref.load %arg6[%c99] : memref<144xf32, #tpu.memory_space<smem>>
    %686 = vector.broadcast %685 : f32 to vector<8x256xf32>
    %687 = arith.mulf %686, %673 : vector<8x256xf32>
    %688 = arith.addf %660, %687 : vector<8x256xf32>
    %c135 = arith.constant 135 : index
    %689 = memref.load %arg6[%c135] : memref<144xf32, #tpu.memory_space<smem>>
    %690 = vector.broadcast %689 : f32 to vector<8x256xf32>
    %691 = arith.mulf %690, %673 : vector<8x256xf32>
    %692 = arith.addf %664, %691 : vector<8x256xf32>
    %c28 = arith.constant 28 : index
    %693 = memref.load %arg6[%c28] : memref<144xf32, #tpu.memory_space<smem>>
    %694 = vector.broadcast %693 : f32 to vector<8x256xf32>
    %695 = arith.mulf %694, %667 : vector<8x256xf32>
    %696 = arith.addf %680, %695 : vector<8x256xf32>
    %c64 = arith.constant 64 : index
    %697 = memref.load %arg6[%c64] : memref<144xf32, #tpu.memory_space<smem>>
    %698 = vector.broadcast %697 : f32 to vector<8x256xf32>
    %699 = arith.mulf %698, %667 : vector<8x256xf32>
    %700 = arith.addf %684, %699 : vector<8x256xf32>
    %c100 = arith.constant 100 : index
    %701 = memref.load %arg6[%c100] : memref<144xf32, #tpu.memory_space<smem>>
    %702 = vector.broadcast %701 : f32 to vector<8x256xf32>
    %703 = arith.mulf %702, %667 : vector<8x256xf32>
    %704 = arith.addf %688, %703 : vector<8x256xf32>
    %c136 = arith.constant 136 : index
    %705 = memref.load %arg6[%c136] : memref<144xf32, #tpu.memory_space<smem>>
    %706 = vector.broadcast %705 : f32 to vector<8x256xf32>
    %707 = arith.mulf %706, %667 : vector<8x256xf32>
    %708 = arith.addf %692, %707 : vector<8x256xf32>
    %c29 = arith.constant 29 : index
    %709 = memref.load %arg6[%c29] : memref<144xf32, #tpu.memory_space<smem>>
    %710 = vector.broadcast %709 : f32 to vector<8x256xf32>
    %711 = arith.mulf %710, %676 : vector<8x256xf32>
    %712 = arith.addf %696, %711 : vector<8x256xf32>
    %c65 = arith.constant 65 : index
    %713 = memref.load %arg6[%c65] : memref<144xf32, #tpu.memory_space<smem>>
    %714 = vector.broadcast %713 : f32 to vector<8x256xf32>
    %715 = arith.mulf %714, %676 : vector<8x256xf32>
    %716 = arith.addf %700, %715 : vector<8x256xf32>
    %c101 = arith.constant 101 : index
    %717 = memref.load %arg6[%c101] : memref<144xf32, #tpu.memory_space<smem>>
    %718 = vector.broadcast %717 : f32 to vector<8x256xf32>
    %719 = arith.mulf %718, %676 : vector<8x256xf32>
    %720 = arith.addf %704, %719 : vector<8x256xf32>
    %c137 = arith.constant 137 : index
    %721 = memref.load %arg6[%c137] : memref<144xf32, #tpu.memory_space<smem>>
    %722 = vector.broadcast %721 : f32 to vector<8x256xf32>
    %723 = arith.mulf %722, %676 : vector<8x256xf32>
    %724 = arith.addf %708, %723 : vector<8x256xf32>
    %c1_i32_95 = arith.constant 1 : i32
    %725 = tpu.dynamic_rotate %152 by %c1_i32_95 dim 1 : vector<8x256xf32>, i32 -> vector<8x256xf32>
    %726 = vector.broadcast %26 : vector<1x256xf32> to vector<8x256xf32>
    %727 = arith.mulf %725, %726 : vector<8x256xf32>
    %c255_i32_96 = arith.constant 255 : i32
    %728 = tpu.dynamic_rotate %152 by %c255_i32_96 dim 1 : vector<8x256xf32>, i32 -> vector<8x256xf32>
    %729 = vector.broadcast %21 : vector<1x256xf32> to vector<8x256xf32>
    %730 = arith.mulf %728, %729 : vector<8x256xf32>
    %c30 = arith.constant 30 : index
    %731 = memref.load %arg6[%c30] : memref<144xf32, #tpu.memory_space<smem>>
    %732 = vector.broadcast %731 : f32 to vector<8x256xf32>
    %733 = arith.mulf %732, %727 : vector<8x256xf32>
    %734 = arith.addf %712, %733 : vector<8x256xf32>
    %c66 = arith.constant 66 : index
    %735 = memref.load %arg6[%c66] : memref<144xf32, #tpu.memory_space<smem>>
    %736 = vector.broadcast %735 : f32 to vector<8x256xf32>
    %737 = arith.mulf %736, %727 : vector<8x256xf32>
    %738 = arith.addf %716, %737 : vector<8x256xf32>
    %c102 = arith.constant 102 : index
    %739 = memref.load %arg6[%c102] : memref<144xf32, #tpu.memory_space<smem>>
    %740 = vector.broadcast %739 : f32 to vector<8x256xf32>
    %741 = arith.mulf %740, %727 : vector<8x256xf32>
    %742 = arith.addf %720, %741 : vector<8x256xf32>
    %c138 = arith.constant 138 : index
    %743 = memref.load %arg6[%c138] : memref<144xf32, #tpu.memory_space<smem>>
    %744 = vector.broadcast %743 : f32 to vector<8x256xf32>
    %745 = arith.mulf %744, %727 : vector<8x256xf32>
    %746 = arith.addf %724, %745 : vector<8x256xf32>
    %c31 = arith.constant 31 : index
    %747 = memref.load %arg6[%c31] : memref<144xf32, #tpu.memory_space<smem>>
    %748 = vector.broadcast %747 : f32 to vector<8x256xf32>
    %749 = arith.mulf %748, %152 : vector<8x256xf32>
    %750 = arith.addf %734, %749 : vector<8x256xf32>
    %c67 = arith.constant 67 : index
    %751 = memref.load %arg6[%c67] : memref<144xf32, #tpu.memory_space<smem>>
    %752 = vector.broadcast %751 : f32 to vector<8x256xf32>
    %753 = arith.mulf %752, %152 : vector<8x256xf32>
    %754 = arith.addf %738, %753 : vector<8x256xf32>
    %c103 = arith.constant 103 : index
    %755 = memref.load %arg6[%c103] : memref<144xf32, #tpu.memory_space<smem>>
    %756 = vector.broadcast %755 : f32 to vector<8x256xf32>
    %757 = arith.mulf %756, %152 : vector<8x256xf32>
    %758 = arith.addf %742, %757 : vector<8x256xf32>
    %c139 = arith.constant 139 : index
    %759 = memref.load %arg6[%c139] : memref<144xf32, #tpu.memory_space<smem>>
    %760 = vector.broadcast %759 : f32 to vector<8x256xf32>
    %761 = arith.mulf %760, %152 : vector<8x256xf32>
    %762 = arith.addf %746, %761 : vector<8x256xf32>
    %c32 = arith.constant 32 : index
    %763 = memref.load %arg6[%c32] : memref<144xf32, #tpu.memory_space<smem>>
    %764 = vector.broadcast %763 : f32 to vector<8x256xf32>
    %765 = arith.mulf %764, %730 : vector<8x256xf32>
    %766 = arith.addf %750, %765 : vector<8x256xf32>
    %c68 = arith.constant 68 : index
    %767 = memref.load %arg6[%c68] : memref<144xf32, #tpu.memory_space<smem>>
    %768 = vector.broadcast %767 : f32 to vector<8x256xf32>
    %769 = arith.mulf %768, %730 : vector<8x256xf32>
    %770 = arith.addf %754, %769 : vector<8x256xf32>
    %c104 = arith.constant 104 : index
    %771 = memref.load %arg6[%c104] : memref<144xf32, #tpu.memory_space<smem>>
    %772 = vector.broadcast %771 : f32 to vector<8x256xf32>
    %773 = arith.mulf %772, %730 : vector<8x256xf32>
    %774 = arith.addf %758, %773 : vector<8x256xf32>
    %c140 = arith.constant 140 : index
    %775 = memref.load %arg6[%c140] : memref<144xf32, #tpu.memory_space<smem>>
    %776 = vector.broadcast %775 : f32 to vector<8x256xf32>
    %777 = arith.mulf %776, %730 : vector<8x256xf32>
    %778 = arith.addf %762, %777 : vector<8x256xf32>
    %c1_i32_97 = arith.constant 1 : i32
    %779 = tpu.dynamic_rotate %670 by %c1_i32_97 dim 1 : vector<8x256xf32>, i32 -> vector<8x256xf32>
    %780 = vector.broadcast %26 : vector<1x256xf32> to vector<8x256xf32>
    %781 = arith.mulf %779, %780 : vector<8x256xf32>
    %c255_i32_98 = arith.constant 255 : i32
    %782 = tpu.dynamic_rotate %670 by %c255_i32_98 dim 1 : vector<8x256xf32>, i32 -> vector<8x256xf32>
    %783 = vector.broadcast %21 : vector<1x256xf32> to vector<8x256xf32>
    %784 = arith.mulf %782, %783 : vector<8x256xf32>
    %c33 = arith.constant 33 : index
    %785 = memref.load %arg6[%c33] : memref<144xf32, #tpu.memory_space<smem>>
    %786 = vector.broadcast %785 : f32 to vector<8x256xf32>
    %787 = arith.mulf %786, %781 : vector<8x256xf32>
    %788 = arith.addf %766, %787 : vector<8x256xf32>
    %c69 = arith.constant 69 : index
    %789 = memref.load %arg6[%c69] : memref<144xf32, #tpu.memory_space<smem>>
    %790 = vector.broadcast %789 : f32 to vector<8x256xf32>
    %791 = arith.mulf %790, %781 : vector<8x256xf32>
    %792 = arith.addf %770, %791 : vector<8x256xf32>
    %c105 = arith.constant 105 : index
    %793 = memref.load %arg6[%c105] : memref<144xf32, #tpu.memory_space<smem>>
    %794 = vector.broadcast %793 : f32 to vector<8x256xf32>
    %795 = arith.mulf %794, %781 : vector<8x256xf32>
    %796 = arith.addf %774, %795 : vector<8x256xf32>
    %c141 = arith.constant 141 : index
    %797 = memref.load %arg6[%c141] : memref<144xf32, #tpu.memory_space<smem>>
    %798 = vector.broadcast %797 : f32 to vector<8x256xf32>
    %799 = arith.mulf %798, %781 : vector<8x256xf32>
    %800 = arith.addf %778, %799 : vector<8x256xf32>
    %c34 = arith.constant 34 : index
    %801 = memref.load %arg6[%c34] : memref<144xf32, #tpu.memory_space<smem>>
    %802 = vector.broadcast %801 : f32 to vector<8x256xf32>
    %803 = arith.mulf %802, %670 : vector<8x256xf32>
    %804 = arith.addf %788, %803 : vector<8x256xf32>
    %c70 = arith.constant 70 : index
    %805 = memref.load %arg6[%c70] : memref<144xf32, #tpu.memory_space<smem>>
    %806 = vector.broadcast %805 : f32 to vector<8x256xf32>
    %807 = arith.mulf %806, %670 : vector<8x256xf32>
    %808 = arith.addf %792, %807 : vector<8x256xf32>
    %c106 = arith.constant 106 : index
    %809 = memref.load %arg6[%c106] : memref<144xf32, #tpu.memory_space<smem>>
    %810 = vector.broadcast %809 : f32 to vector<8x256xf32>
    %811 = arith.mulf %810, %670 : vector<8x256xf32>
    %812 = arith.addf %796, %811 : vector<8x256xf32>
    %c142 = arith.constant 142 : index
    %813 = memref.load %arg6[%c142] : memref<144xf32, #tpu.memory_space<smem>>
    %814 = vector.broadcast %813 : f32 to vector<8x256xf32>
    %815 = arith.mulf %814, %670 : vector<8x256xf32>
    %816 = arith.addf %800, %815 : vector<8x256xf32>
    %c35 = arith.constant 35 : index
    %817 = memref.load %arg6[%c35] : memref<144xf32, #tpu.memory_space<smem>>
    %818 = vector.broadcast %817 : f32 to vector<8x256xf32>
    %819 = arith.mulf %818, %784 : vector<8x256xf32>
    %820 = arith.addf %804, %819 : vector<8x256xf32>
    %c71 = arith.constant 71 : index
    %821 = memref.load %arg6[%c71] : memref<144xf32, #tpu.memory_space<smem>>
    %822 = vector.broadcast %821 : f32 to vector<8x256xf32>
    %823 = arith.mulf %822, %784 : vector<8x256xf32>
    %824 = arith.addf %808, %823 : vector<8x256xf32>
    %c107 = arith.constant 107 : index
    %825 = memref.load %arg6[%c107] : memref<144xf32, #tpu.memory_space<smem>>
    %826 = vector.broadcast %825 : f32 to vector<8x256xf32>
    %827 = arith.mulf %826, %784 : vector<8x256xf32>
    %828 = arith.addf %812, %827 : vector<8x256xf32>
    %c143 = arith.constant 143 : index
    %829 = memref.load %arg6[%c143] : memref<144xf32, #tpu.memory_space<smem>>
    %830 = vector.broadcast %829 : f32 to vector<8x256xf32>
    %831 = arith.mulf %830, %784 : vector<8x256xf32>
    %832 = arith.addf %816, %831 : vector<8x256xf32>
    %cst_99 = arith.constant dense<0.000000e+00> : vector<8xf32>
    %833 = vector.multi_reduction <add>, %820, %cst_99 [1] : vector<8x256xf32> to vector<8xf32>
    %834 = vector.shape_cast %833 : vector<8xf32> to vector<8x1xf32>
    %835 = arith.mulf %820, %820 : vector<8x256xf32>
    %cst_100 = arith.constant dense<0.000000e+00> : vector<8xf32>
    %836 = vector.multi_reduction <add>, %835, %cst_100 [1] : vector<8x256xf32> to vector<8xf32>
    %837 = vector.shape_cast %836 : vector<8xf32> to vector<8x1xf32>
    %cst_101 = arith.constant 3.906250e-03 : f32
    %838 = vector.broadcast %cst_101 : f32 to vector<8x1xf32>
    %839 = arith.mulf %834, %838 : vector<8x1xf32>
    %cst_102 = arith.constant 3.906250e-03 : f32
    %840 = vector.broadcast %cst_102 : f32 to vector<8x1xf32>
    %841 = arith.mulf %837, %840 : vector<8x1xf32>
    %842 = arith.mulf %839, %839 : vector<8x1xf32>
    %843 = arith.subf %841, %842 : vector<8x1xf32>
    %cst_103 = arith.constant 9.99999974E-6 : f32
    %844 = vector.broadcast %cst_103 : f32 to vector<8x1xf32>
    %845 = arith.addf %843, %844 : vector<8x1xf32>
    %846 = math.rsqrt %845 : vector<8x1xf32>
    %c0_104 = arith.constant 0 : index
    %847 = memref.load %arg7[%c0_104] : memref<4xf32, #tpu.memory_space<smem>>
    %848 = vector.broadcast %847 : f32 to vector<8x1xf32>
    %849 = arith.mulf %846, %848 : vector<8x1xf32>
    %c0_105 = arith.constant 0 : index
    %850 = memref.load %arg8[%c0_105] : memref<4xf32, #tpu.memory_space<smem>>
    %851 = arith.mulf %839, %849 : vector<8x1xf32>
    %852 = vector.broadcast %850 : f32 to vector<8x1xf32>
    %853 = arith.subf %852, %851 : vector<8x1xf32>
    %854 = vector.broadcast %849 : vector<8x1xf32> to vector<8x256xf32>
    %855 = arith.mulf %820, %854 : vector<8x256xf32>
    %856 = vector.broadcast %853 : vector<8x1xf32> to vector<8x256xf32>
    %857 = arith.addf %855, %856 : vector<8x256xf32>
    %cst_106 = arith.constant 0.000000e+00 : f32
    %858 = vector.broadcast %cst_106 : f32 to vector<8x256xf32>
    %859 = arith.maximumf %857, %858 : vector<8x256xf32>
    %cst_107 = arith.constant dense<0.000000e+00> : vector<8xf32>
    %860 = vector.multi_reduction <add>, %824, %cst_107 [1] : vector<8x256xf32> to vector<8xf32>
    %861 = vector.shape_cast %860 : vector<8xf32> to vector<8x1xf32>
    %862 = arith.mulf %824, %824 : vector<8x256xf32>
    %cst_108 = arith.constant dense<0.000000e+00> : vector<8xf32>
    %863 = vector.multi_reduction <add>, %862, %cst_108 [1] : vector<8x256xf32> to vector<8xf32>
    %864 = vector.shape_cast %863 : vector<8xf32> to vector<8x1xf32>
    %cst_109 = arith.constant 3.906250e-03 : f32
    %865 = vector.broadcast %cst_109 : f32 to vector<8x1xf32>
    %866 = arith.mulf %861, %865 : vector<8x1xf32>
    %cst_110 = arith.constant 3.906250e-03 : f32
    %867 = vector.broadcast %cst_110 : f32 to vector<8x1xf32>
    %868 = arith.mulf %864, %867 : vector<8x1xf32>
    %869 = arith.mulf %866, %866 : vector<8x1xf32>
    %870 = arith.subf %868, %869 : vector<8x1xf32>
    %cst_111 = arith.constant 9.99999974E-6 : f32
    %871 = vector.broadcast %cst_111 : f32 to vector<8x1xf32>
    %872 = arith.addf %870, %871 : vector<8x1xf32>
    %873 = math.rsqrt %872 : vector<8x1xf32>
    %c1_112 = arith.constant 1 : index
    %874 = memref.load %arg7[%c1_112] : memref<4xf32, #tpu.memory_space<smem>>
    %875 = vector.broadcast %874 : f32 to vector<8x1xf32>
    %876 = arith.mulf %873, %875 : vector<8x1xf32>
    %c1_113 = arith.constant 1 : index
    %877 = memref.load %arg8[%c1_113] : memref<4xf32, #tpu.memory_space<smem>>
    %878 = arith.mulf %866, %876 : vector<8x1xf32>
    %879 = vector.broadcast %877 : f32 to vector<8x1xf32>
    %880 = arith.subf %879, %878 : vector<8x1xf32>
    %881 = vector.broadcast %876 : vector<8x1xf32> to vector<8x256xf32>
    %882 = arith.mulf %824, %881 : vector<8x256xf32>
    %883 = vector.broadcast %880 : vector<8x1xf32> to vector<8x256xf32>
    %884 = arith.addf %882, %883 : vector<8x256xf32>
    %cst_114 = arith.constant 0.000000e+00 : f32
    %885 = vector.broadcast %cst_114 : f32 to vector<8x256xf32>
    %886 = arith.maximumf %884, %885 : vector<8x256xf32>
    %cst_115 = arith.constant dense<0.000000e+00> : vector<8xf32>
    %887 = vector.multi_reduction <add>, %828, %cst_115 [1] : vector<8x256xf32> to vector<8xf32>
    %888 = vector.shape_cast %887 : vector<8xf32> to vector<8x1xf32>
    %889 = arith.mulf %828, %828 : vector<8x256xf32>
    %cst_116 = arith.constant dense<0.000000e+00> : vector<8xf32>
    %890 = vector.multi_reduction <add>, %889, %cst_116 [1] : vector<8x256xf32> to vector<8xf32>
    %891 = vector.shape_cast %890 : vector<8xf32> to vector<8x1xf32>
    %cst_117 = arith.constant 3.906250e-03 : f32
    %892 = vector.broadcast %cst_117 : f32 to vector<8x1xf32>
    %893 = arith.mulf %888, %892 : vector<8x1xf32>
    %cst_118 = arith.constant 3.906250e-03 : f32
    %894 = vector.broadcast %cst_118 : f32 to vector<8x1xf32>
    %895 = arith.mulf %891, %894 : vector<8x1xf32>
    %896 = arith.mulf %893, %893 : vector<8x1xf32>
    %897 = arith.subf %895, %896 : vector<8x1xf32>
    %cst_119 = arith.constant 9.99999974E-6 : f32
    %898 = vector.broadcast %cst_119 : f32 to vector<8x1xf32>
    %899 = arith.addf %897, %898 : vector<8x1xf32>
    %900 = math.rsqrt %899 : vector<8x1xf32>
    %c2_120 = arith.constant 2 : index
    %901 = memref.load %arg7[%c2_120] : memref<4xf32, #tpu.memory_space<smem>>
    %902 = vector.broadcast %901 : f32 to vector<8x1xf32>
    %903 = arith.mulf %900, %902 : vector<8x1xf32>
    %c2_121 = arith.constant 2 : index
    %904 = memref.load %arg8[%c2_121] : memref<4xf32, #tpu.memory_space<smem>>
    %905 = arith.mulf %893, %903 : vector<8x1xf32>
    %906 = vector.broadcast %904 : f32 to vector<8x1xf32>
    %907 = arith.subf %906, %905 : vector<8x1xf32>
    %908 = vector.broadcast %903 : vector<8x1xf32> to vector<8x256xf32>
    %909 = arith.mulf %828, %908 : vector<8x256xf32>
    %910 = vector.broadcast %907 : vector<8x1xf32> to vector<8x256xf32>
    %911 = arith.addf %909, %910 : vector<8x256xf32>
    %cst_122 = arith.constant 0.000000e+00 : f32
    %912 = vector.broadcast %cst_122 : f32 to vector<8x256xf32>
    %913 = arith.maximumf %911, %912 : vector<8x256xf32>
    %cst_123 = arith.constant dense<0.000000e+00> : vector<8xf32>
    %914 = vector.multi_reduction <add>, %832, %cst_123 [1] : vector<8x256xf32> to vector<8xf32>
    %915 = vector.shape_cast %914 : vector<8xf32> to vector<8x1xf32>
    %916 = arith.mulf %832, %832 : vector<8x256xf32>
    %cst_124 = arith.constant dense<0.000000e+00> : vector<8xf32>
    %917 = vector.multi_reduction <add>, %916, %cst_124 [1] : vector<8x256xf32> to vector<8xf32>
    %918 = vector.shape_cast %917 : vector<8xf32> to vector<8x1xf32>
    %cst_125 = arith.constant 3.906250e-03 : f32
    %919 = vector.broadcast %cst_125 : f32 to vector<8x1xf32>
    %920 = arith.mulf %915, %919 : vector<8x1xf32>
    %cst_126 = arith.constant 3.906250e-03 : f32
    %921 = vector.broadcast %cst_126 : f32 to vector<8x1xf32>
    %922 = arith.mulf %918, %921 : vector<8x1xf32>
    %923 = arith.mulf %920, %920 : vector<8x1xf32>
    %924 = arith.subf %922, %923 : vector<8x1xf32>
    %cst_127 = arith.constant 9.99999974E-6 : f32
    %925 = vector.broadcast %cst_127 : f32 to vector<8x1xf32>
    %926 = arith.addf %924, %925 : vector<8x1xf32>
    %927 = math.rsqrt %926 : vector<8x1xf32>
    %c3_128 = arith.constant 3 : index
    %928 = memref.load %arg7[%c3_128] : memref<4xf32, #tpu.memory_space<smem>>
    %929 = vector.broadcast %928 : f32 to vector<8x1xf32>
    %930 = arith.mulf %927, %929 : vector<8x1xf32>
    %c3_129 = arith.constant 3 : index
    %931 = memref.load %arg8[%c3_129] : memref<4xf32, #tpu.memory_space<smem>>
    %932 = arith.mulf %920, %930 : vector<8x1xf32>
    %933 = vector.broadcast %931 : f32 to vector<8x1xf32>
    %934 = arith.subf %933, %932 : vector<8x1xf32>
    %935 = vector.broadcast %930 : vector<8x1xf32> to vector<8x256xf32>
    %936 = arith.mulf %832, %935 : vector<8x256xf32>
    %937 = vector.broadcast %934 : vector<8x1xf32> to vector<8x256xf32>
    %938 = arith.addf %936, %937 : vector<8x256xf32>
    %cst_130 = arith.constant 0.000000e+00 : f32
    %939 = vector.broadcast %cst_130 : f32 to vector<8x256xf32>
    %940 = arith.maximumf %938, %939 : vector<8x256xf32>
    %c0_131 = arith.constant 0 : index
    %c0_132 = arith.constant 0 : index
    %941 = vector.load %arg3[%c0_131, %c0_132] : memref<4x256xf32, #tpu.memory_space<vmem>>, vector<1x256xf32>
    %c1_133 = arith.constant 1 : index
    %c0_134 = arith.constant 0 : index
    %942 = vector.load %arg3[%c1_133, %c0_134] : memref<4x256xf32, #tpu.memory_space<vmem>>, vector<1x256xf32>
    %c2_135 = arith.constant 2 : index
    %c0_136 = arith.constant 0 : index
    %943 = vector.load %arg3[%c2_135, %c0_136] : memref<4x256xf32, #tpu.memory_space<vmem>>, vector<1x256xf32>
    %c3_137 = arith.constant 3 : index
    %c0_138 = arith.constant 0 : index
    %944 = vector.load %arg3[%c3_137, %c0_138] : memref<4x256xf32, #tpu.memory_space<vmem>>, vector<1x256xf32>
    %c16_i32_139 = arith.constant 16 : i32
    %945 = tpu.dynamic_rotate %859 by %c16_i32_139 dim 1 : vector<8x256xf32>, i32 -> vector<8x256xf32>
    %946 = vector.broadcast %36 : vector<1x256xf32> to vector<8x256xf32>
    %947 = arith.mulf %945, %946 : vector<8x256xf32>
    %c240_i32_140 = arith.constant 240 : i32
    %948 = tpu.dynamic_rotate %859 by %c240_i32_140 dim 1 : vector<8x256xf32>, i32 -> vector<8x256xf32>
    %949 = vector.broadcast %31 : vector<1x256xf32> to vector<8x256xf32>
    %950 = arith.mulf %948, %949 : vector<8x256xf32>
    %c1_i32_141 = arith.constant 1 : i32
    %951 = tpu.dynamic_rotate %947 by %c1_i32_141 dim 1 : vector<8x256xf32>, i32 -> vector<8x256xf32>
    %952 = vector.broadcast %26 : vector<1x256xf32> to vector<8x256xf32>
    %953 = arith.mulf %951, %952 : vector<8x256xf32>
    %c255_i32_142 = arith.constant 255 : i32
    %954 = tpu.dynamic_rotate %947 by %c255_i32_142 dim 1 : vector<8x256xf32>, i32 -> vector<8x256xf32>
    %955 = vector.broadcast %21 : vector<1x256xf32> to vector<8x256xf32>
    %956 = arith.mulf %954, %955 : vector<8x256xf32>
    %c0_143 = arith.constant 0 : index
    %957 = memref.load %arg9[%c0_143] : memref<144xf32, #tpu.memory_space<smem>>
    %958 = vector.broadcast %957 : f32 to vector<8x256xf32>
    %959 = arith.mulf %958, %953 : vector<8x256xf32>
    %960 = vector.broadcast %941 : vector<1x256xf32> to vector<8x256xf32>
    %961 = arith.addf %960, %959 : vector<8x256xf32>
    %c36_144 = arith.constant 36 : index
    %962 = memref.load %arg9[%c36_144] : memref<144xf32, #tpu.memory_space<smem>>
    %963 = vector.broadcast %962 : f32 to vector<8x256xf32>
    %964 = arith.mulf %963, %953 : vector<8x256xf32>
    %965 = vector.broadcast %942 : vector<1x256xf32> to vector<8x256xf32>
    %966 = arith.addf %965, %964 : vector<8x256xf32>
    %c72_145 = arith.constant 72 : index
    %967 = memref.load %arg9[%c72_145] : memref<144xf32, #tpu.memory_space<smem>>
    %968 = vector.broadcast %967 : f32 to vector<8x256xf32>
    %969 = arith.mulf %968, %953 : vector<8x256xf32>
    %970 = vector.broadcast %943 : vector<1x256xf32> to vector<8x256xf32>
    %971 = arith.addf %970, %969 : vector<8x256xf32>
    %c108_146 = arith.constant 108 : index
    %972 = memref.load %arg9[%c108_146] : memref<144xf32, #tpu.memory_space<smem>>
    %973 = vector.broadcast %972 : f32 to vector<8x256xf32>
    %974 = arith.mulf %973, %953 : vector<8x256xf32>
    %975 = vector.broadcast %944 : vector<1x256xf32> to vector<8x256xf32>
    %976 = arith.addf %975, %974 : vector<8x256xf32>
    %c1_147 = arith.constant 1 : index
    %977 = memref.load %arg9[%c1_147] : memref<144xf32, #tpu.memory_space<smem>>
    %978 = vector.broadcast %977 : f32 to vector<8x256xf32>
    %979 = arith.mulf %978, %947 : vector<8x256xf32>
    %980 = arith.addf %961, %979 : vector<8x256xf32>
    %c37_148 = arith.constant 37 : index
    %981 = memref.load %arg9[%c37_148] : memref<144xf32, #tpu.memory_space<smem>>
    %982 = vector.broadcast %981 : f32 to vector<8x256xf32>
    %983 = arith.mulf %982, %947 : vector<8x256xf32>
    %984 = arith.addf %966, %983 : vector<8x256xf32>
    %c73_149 = arith.constant 73 : index
    %985 = memref.load %arg9[%c73_149] : memref<144xf32, #tpu.memory_space<smem>>
    %986 = vector.broadcast %985 : f32 to vector<8x256xf32>
    %987 = arith.mulf %986, %947 : vector<8x256xf32>
    %988 = arith.addf %971, %987 : vector<8x256xf32>
    %c109_150 = arith.constant 109 : index
    %989 = memref.load %arg9[%c109_150] : memref<144xf32, #tpu.memory_space<smem>>
    %990 = vector.broadcast %989 : f32 to vector<8x256xf32>
    %991 = arith.mulf %990, %947 : vector<8x256xf32>
    %992 = arith.addf %976, %991 : vector<8x256xf32>
    %c2_151 = arith.constant 2 : index
    %993 = memref.load %arg9[%c2_151] : memref<144xf32, #tpu.memory_space<smem>>
    %994 = vector.broadcast %993 : f32 to vector<8x256xf32>
    %995 = arith.mulf %994, %956 : vector<8x256xf32>
    %996 = arith.addf %980, %995 : vector<8x256xf32>
    %c38_152 = arith.constant 38 : index
    %997 = memref.load %arg9[%c38_152] : memref<144xf32, #tpu.memory_space<smem>>
    %998 = vector.broadcast %997 : f32 to vector<8x256xf32>
    %999 = arith.mulf %998, %956 : vector<8x256xf32>
    %1000 = arith.addf %984, %999 : vector<8x256xf32>
    %c74_153 = arith.constant 74 : index
    %1001 = memref.load %arg9[%c74_153] : memref<144xf32, #tpu.memory_space<smem>>
    %1002 = vector.broadcast %1001 : f32 to vector<8x256xf32>
    %1003 = arith.mulf %1002, %956 : vector<8x256xf32>
    %1004 = arith.addf %988, %1003 : vector<8x256xf32>
    %c110_154 = arith.constant 110 : index
    %1005 = memref.load %arg9[%c110_154] : memref<144xf32, #tpu.memory_space<smem>>
    %1006 = vector.broadcast %1005 : f32 to vector<8x256xf32>
    %1007 = arith.mulf %1006, %956 : vector<8x256xf32>
    %1008 = arith.addf %992, %1007 : vector<8x256xf32>
    %c1_i32_155 = arith.constant 1 : i32
    %1009 = tpu.dynamic_rotate %859 by %c1_i32_155 dim 1 : vector<8x256xf32>, i32 -> vector<8x256xf32>
    %1010 = vector.broadcast %26 : vector<1x256xf32> to vector<8x256xf32>
    %1011 = arith.mulf %1009, %1010 : vector<8x256xf32>
    %c255_i32_156 = arith.constant 255 : i32
    %1012 = tpu.dynamic_rotate %859 by %c255_i32_156 dim 1 : vector<8x256xf32>, i32 -> vector<8x256xf32>
    %1013 = vector.broadcast %21 : vector<1x256xf32> to vector<8x256xf32>
    %1014 = arith.mulf %1012, %1013 : vector<8x256xf32>
    %c3_157 = arith.constant 3 : index
    %1015 = memref.load %arg9[%c3_157] : memref<144xf32, #tpu.memory_space<smem>>
    %1016 = vector.broadcast %1015 : f32 to vector<8x256xf32>
    %1017 = arith.mulf %1016, %1011 : vector<8x256xf32>
    %1018 = arith.addf %996, %1017 : vector<8x256xf32>
    %c39_158 = arith.constant 39 : index
    %1019 = memref.load %arg9[%c39_158] : memref<144xf32, #tpu.memory_space<smem>>
    %1020 = vector.broadcast %1019 : f32 to vector<8x256xf32>
    %1021 = arith.mulf %1020, %1011 : vector<8x256xf32>
    %1022 = arith.addf %1000, %1021 : vector<8x256xf32>
    %c75_159 = arith.constant 75 : index
    %1023 = memref.load %arg9[%c75_159] : memref<144xf32, #tpu.memory_space<smem>>
    %1024 = vector.broadcast %1023 : f32 to vector<8x256xf32>
    %1025 = arith.mulf %1024, %1011 : vector<8x256xf32>
    %1026 = arith.addf %1004, %1025 : vector<8x256xf32>
    %c111_160 = arith.constant 111 : index
    %1027 = memref.load %arg9[%c111_160] : memref<144xf32, #tpu.memory_space<smem>>
    %1028 = vector.broadcast %1027 : f32 to vector<8x256xf32>
    %1029 = arith.mulf %1028, %1011 : vector<8x256xf32>
    %1030 = arith.addf %1008, %1029 : vector<8x256xf32>
    %c4_161 = arith.constant 4 : index
    %1031 = memref.load %arg9[%c4_161] : memref<144xf32, #tpu.memory_space<smem>>
    %1032 = vector.broadcast %1031 : f32 to vector<8x256xf32>
    %1033 = arith.mulf %1032, %859 : vector<8x256xf32>
    %1034 = arith.addf %1018, %1033 : vector<8x256xf32>
    %c40_162 = arith.constant 40 : index
    %1035 = memref.load %arg9[%c40_162] : memref<144xf32, #tpu.memory_space<smem>>
    %1036 = vector.broadcast %1035 : f32 to vector<8x256xf32>
    %1037 = arith.mulf %1036, %859 : vector<8x256xf32>
    %1038 = arith.addf %1022, %1037 : vector<8x256xf32>
    %c76_163 = arith.constant 76 : index
    %1039 = memref.load %arg9[%c76_163] : memref<144xf32, #tpu.memory_space<smem>>
    %1040 = vector.broadcast %1039 : f32 to vector<8x256xf32>
    %1041 = arith.mulf %1040, %859 : vector<8x256xf32>
    %1042 = arith.addf %1026, %1041 : vector<8x256xf32>
    %c112_164 = arith.constant 112 : index
    %1043 = memref.load %arg9[%c112_164] : memref<144xf32, #tpu.memory_space<smem>>
    %1044 = vector.broadcast %1043 : f32 to vector<8x256xf32>
    %1045 = arith.mulf %1044, %859 : vector<8x256xf32>
    %1046 = arith.addf %1030, %1045 : vector<8x256xf32>
    %c5_165 = arith.constant 5 : index
    %1047 = memref.load %arg9[%c5_165] : memref<144xf32, #tpu.memory_space<smem>>
    %1048 = vector.broadcast %1047 : f32 to vector<8x256xf32>
    %1049 = arith.mulf %1048, %1014 : vector<8x256xf32>
    %1050 = arith.addf %1034, %1049 : vector<8x256xf32>
    %c41_166 = arith.constant 41 : index
    %1051 = memref.load %arg9[%c41_166] : memref<144xf32, #tpu.memory_space<smem>>
    %1052 = vector.broadcast %1051 : f32 to vector<8x256xf32>
    %1053 = arith.mulf %1052, %1014 : vector<8x256xf32>
    %1054 = arith.addf %1038, %1053 : vector<8x256xf32>
    %c77_167 = arith.constant 77 : index
    %1055 = memref.load %arg9[%c77_167] : memref<144xf32, #tpu.memory_space<smem>>
    %1056 = vector.broadcast %1055 : f32 to vector<8x256xf32>
    %1057 = arith.mulf %1056, %1014 : vector<8x256xf32>
    %1058 = arith.addf %1042, %1057 : vector<8x256xf32>
    %c113_168 = arith.constant 113 : index
    %1059 = memref.load %arg9[%c113_168] : memref<144xf32, #tpu.memory_space<smem>>
    %1060 = vector.broadcast %1059 : f32 to vector<8x256xf32>
    %1061 = arith.mulf %1060, %1014 : vector<8x256xf32>
    %1062 = arith.addf %1046, %1061 : vector<8x256xf32>
    %c1_i32_169 = arith.constant 1 : i32
    %1063 = tpu.dynamic_rotate %950 by %c1_i32_169 dim 1 : vector<8x256xf32>, i32 -> vector<8x256xf32>
    %1064 = vector.broadcast %26 : vector<1x256xf32> to vector<8x256xf32>
    %1065 = arith.mulf %1063, %1064 : vector<8x256xf32>
    %c255_i32_170 = arith.constant 255 : i32
    %1066 = tpu.dynamic_rotate %950 by %c255_i32_170 dim 1 : vector<8x256xf32>, i32 -> vector<8x256xf32>
    %1067 = vector.broadcast %21 : vector<1x256xf32> to vector<8x256xf32>
    %1068 = arith.mulf %1066, %1067 : vector<8x256xf32>
    %c6_171 = arith.constant 6 : index
    %1069 = memref.load %arg9[%c6_171] : memref<144xf32, #tpu.memory_space<smem>>
    %1070 = vector.broadcast %1069 : f32 to vector<8x256xf32>
    %1071 = arith.mulf %1070, %1065 : vector<8x256xf32>
    %1072 = arith.addf %1050, %1071 : vector<8x256xf32>
    %c42_172 = arith.constant 42 : index
    %1073 = memref.load %arg9[%c42_172] : memref<144xf32, #tpu.memory_space<smem>>
    %1074 = vector.broadcast %1073 : f32 to vector<8x256xf32>
    %1075 = arith.mulf %1074, %1065 : vector<8x256xf32>
    %1076 = arith.addf %1054, %1075 : vector<8x256xf32>
    %c78_173 = arith.constant 78 : index
    %1077 = memref.load %arg9[%c78_173] : memref<144xf32, #tpu.memory_space<smem>>
    %1078 = vector.broadcast %1077 : f32 to vector<8x256xf32>
    %1079 = arith.mulf %1078, %1065 : vector<8x256xf32>
    %1080 = arith.addf %1058, %1079 : vector<8x256xf32>
    %c114_174 = arith.constant 114 : index
    %1081 = memref.load %arg9[%c114_174] : memref<144xf32, #tpu.memory_space<smem>>
    %1082 = vector.broadcast %1081 : f32 to vector<8x256xf32>
    %1083 = arith.mulf %1082, %1065 : vector<8x256xf32>
    %1084 = arith.addf %1062, %1083 : vector<8x256xf32>
    %c7_175 = arith.constant 7 : index
    %1085 = memref.load %arg9[%c7_175] : memref<144xf32, #tpu.memory_space<smem>>
    %1086 = vector.broadcast %1085 : f32 to vector<8x256xf32>
    %1087 = arith.mulf %1086, %950 : vector<8x256xf32>
    %1088 = arith.addf %1072, %1087 : vector<8x256xf32>
    %c43_176 = arith.constant 43 : index
    %1089 = memref.load %arg9[%c43_176] : memref<144xf32, #tpu.memory_space<smem>>
    %1090 = vector.broadcast %1089 : f32 to vector<8x256xf32>
    %1091 = arith.mulf %1090, %950 : vector<8x256xf32>
    %1092 = arith.addf %1076, %1091 : vector<8x256xf32>
    %c79_177 = arith.constant 79 : index
    %1093 = memref.load %arg9[%c79_177] : memref<144xf32, #tpu.memory_space<smem>>
    %1094 = vector.broadcast %1093 : f32 to vector<8x256xf32>
    %1095 = arith.mulf %1094, %950 : vector<8x256xf32>
    %1096 = arith.addf %1080, %1095 : vector<8x256xf32>
    %c115_178 = arith.constant 115 : index
    %1097 = memref.load %arg9[%c115_178] : memref<144xf32, #tpu.memory_space<smem>>
    %1098 = vector.broadcast %1097 : f32 to vector<8x256xf32>
    %1099 = arith.mulf %1098, %950 : vector<8x256xf32>
    %1100 = arith.addf %1084, %1099 : vector<8x256xf32>
    %c8_179 = arith.constant 8 : index
    %1101 = memref.load %arg9[%c8_179] : memref<144xf32, #tpu.memory_space<smem>>
    %1102 = vector.broadcast %1101 : f32 to vector<8x256xf32>
    %1103 = arith.mulf %1102, %1068 : vector<8x256xf32>
    %1104 = arith.addf %1088, %1103 : vector<8x256xf32>
    %c44_180 = arith.constant 44 : index
    %1105 = memref.load %arg9[%c44_180] : memref<144xf32, #tpu.memory_space<smem>>
    %1106 = vector.broadcast %1105 : f32 to vector<8x256xf32>
    %1107 = arith.mulf %1106, %1068 : vector<8x256xf32>
    %1108 = arith.addf %1092, %1107 : vector<8x256xf32>
    %c80_181 = arith.constant 80 : index
    %1109 = memref.load %arg9[%c80_181] : memref<144xf32, #tpu.memory_space<smem>>
    %1110 = vector.broadcast %1109 : f32 to vector<8x256xf32>
    %1111 = arith.mulf %1110, %1068 : vector<8x256xf32>
    %1112 = arith.addf %1096, %1111 : vector<8x256xf32>
    %c116_182 = arith.constant 116 : index
    %1113 = memref.load %arg9[%c116_182] : memref<144xf32, #tpu.memory_space<smem>>
    %1114 = vector.broadcast %1113 : f32 to vector<8x256xf32>
    %1115 = arith.mulf %1114, %1068 : vector<8x256xf32>
    %1116 = arith.addf %1100, %1115 : vector<8x256xf32>
    %c16_i32_183 = arith.constant 16 : i32
    %1117 = tpu.dynamic_rotate %886 by %c16_i32_183 dim 1 : vector<8x256xf32>, i32 -> vector<8x256xf32>
    %1118 = vector.broadcast %36 : vector<1x256xf32> to vector<8x256xf32>
    %1119 = arith.mulf %1117, %1118 : vector<8x256xf32>
    %c240_i32_184 = arith.constant 240 : i32
    %1120 = tpu.dynamic_rotate %886 by %c240_i32_184 dim 1 : vector<8x256xf32>, i32 -> vector<8x256xf32>
    %1121 = vector.broadcast %31 : vector<1x256xf32> to vector<8x256xf32>
    %1122 = arith.mulf %1120, %1121 : vector<8x256xf32>
    %c1_i32_185 = arith.constant 1 : i32
    %1123 = tpu.dynamic_rotate %1119 by %c1_i32_185 dim 1 : vector<8x256xf32>, i32 -> vector<8x256xf32>
    %1124 = vector.broadcast %26 : vector<1x256xf32> to vector<8x256xf32>
    %1125 = arith.mulf %1123, %1124 : vector<8x256xf32>
    %c255_i32_186 = arith.constant 255 : i32
    %1126 = tpu.dynamic_rotate %1119 by %c255_i32_186 dim 1 : vector<8x256xf32>, i32 -> vector<8x256xf32>
    %1127 = vector.broadcast %21 : vector<1x256xf32> to vector<8x256xf32>
    %1128 = arith.mulf %1126, %1127 : vector<8x256xf32>
    %c9_187 = arith.constant 9 : index
    %1129 = memref.load %arg9[%c9_187] : memref<144xf32, #tpu.memory_space<smem>>
    %1130 = vector.broadcast %1129 : f32 to vector<8x256xf32>
    %1131 = arith.mulf %1130, %1125 : vector<8x256xf32>
    %1132 = arith.addf %1104, %1131 : vector<8x256xf32>
    %c45_188 = arith.constant 45 : index
    %1133 = memref.load %arg9[%c45_188] : memref<144xf32, #tpu.memory_space<smem>>
    %1134 = vector.broadcast %1133 : f32 to vector<8x256xf32>
    %1135 = arith.mulf %1134, %1125 : vector<8x256xf32>
    %1136 = arith.addf %1108, %1135 : vector<8x256xf32>
    %c81_189 = arith.constant 81 : index
    %1137 = memref.load %arg9[%c81_189] : memref<144xf32, #tpu.memory_space<smem>>
    %1138 = vector.broadcast %1137 : f32 to vector<8x256xf32>
    %1139 = arith.mulf %1138, %1125 : vector<8x256xf32>
    %1140 = arith.addf %1112, %1139 : vector<8x256xf32>
    %c117_190 = arith.constant 117 : index
    %1141 = memref.load %arg9[%c117_190] : memref<144xf32, #tpu.memory_space<smem>>
    %1142 = vector.broadcast %1141 : f32 to vector<8x256xf32>
    %1143 = arith.mulf %1142, %1125 : vector<8x256xf32>
    %1144 = arith.addf %1116, %1143 : vector<8x256xf32>
    %c10_191 = arith.constant 10 : index
    %1145 = memref.load %arg9[%c10_191] : memref<144xf32, #tpu.memory_space<smem>>
    %1146 = vector.broadcast %1145 : f32 to vector<8x256xf32>
    %1147 = arith.mulf %1146, %1119 : vector<8x256xf32>
    %1148 = arith.addf %1132, %1147 : vector<8x256xf32>
    %c46_192 = arith.constant 46 : index
    %1149 = memref.load %arg9[%c46_192] : memref<144xf32, #tpu.memory_space<smem>>
    %1150 = vector.broadcast %1149 : f32 to vector<8x256xf32>
    %1151 = arith.mulf %1150, %1119 : vector<8x256xf32>
    %1152 = arith.addf %1136, %1151 : vector<8x256xf32>
    %c82_193 = arith.constant 82 : index
    %1153 = memref.load %arg9[%c82_193] : memref<144xf32, #tpu.memory_space<smem>>
    %1154 = vector.broadcast %1153 : f32 to vector<8x256xf32>
    %1155 = arith.mulf %1154, %1119 : vector<8x256xf32>
    %1156 = arith.addf %1140, %1155 : vector<8x256xf32>
    %c118_194 = arith.constant 118 : index
    %1157 = memref.load %arg9[%c118_194] : memref<144xf32, #tpu.memory_space<smem>>
    %1158 = vector.broadcast %1157 : f32 to vector<8x256xf32>
    %1159 = arith.mulf %1158, %1119 : vector<8x256xf32>
    %1160 = arith.addf %1144, %1159 : vector<8x256xf32>
    %c11_195 = arith.constant 11 : index
    %1161 = memref.load %arg9[%c11_195] : memref<144xf32, #tpu.memory_space<smem>>
    %1162 = vector.broadcast %1161 : f32 to vector<8x256xf32>
    %1163 = arith.mulf %1162, %1128 : vector<8x256xf32>
    %1164 = arith.addf %1148, %1163 : vector<8x256xf32>
    %c47_196 = arith.constant 47 : index
    %1165 = memref.load %arg9[%c47_196] : memref<144xf32, #tpu.memory_space<smem>>
    %1166 = vector.broadcast %1165 : f32 to vector<8x256xf32>
    %1167 = arith.mulf %1166, %1128 : vector<8x256xf32>
    %1168 = arith.addf %1152, %1167 : vector<8x256xf32>
    %c83_197 = arith.constant 83 : index
    %1169 = memref.load %arg9[%c83_197] : memref<144xf32, #tpu.memory_space<smem>>
    %1170 = vector.broadcast %1169 : f32 to vector<8x256xf32>
    %1171 = arith.mulf %1170, %1128 : vector<8x256xf32>
    %1172 = arith.addf %1156, %1171 : vector<8x256xf32>
    %c119_198 = arith.constant 119 : index
    %1173 = memref.load %arg9[%c119_198] : memref<144xf32, #tpu.memory_space<smem>>
    %1174 = vector.broadcast %1173 : f32 to vector<8x256xf32>
    %1175 = arith.mulf %1174, %1128 : vector<8x256xf32>
    %1176 = arith.addf %1160, %1175 : vector<8x256xf32>
    %c1_i32_199 = arith.constant 1 : i32
    %1177 = tpu.dynamic_rotate %886 by %c1_i32_199 dim 1 : vector<8x256xf32>, i32 -> vector<8x256xf32>
    %1178 = vector.broadcast %26 : vector<1x256xf32> to vector<8x256xf32>
    %1179 = arith.mulf %1177, %1178 : vector<8x256xf32>
    %c255_i32_200 = arith.constant 255 : i32
    %1180 = tpu.dynamic_rotate %886 by %c255_i32_200 dim 1 : vector<8x256xf32>, i32 -> vector<8x256xf32>
    %1181 = vector.broadcast %21 : vector<1x256xf32> to vector<8x256xf32>
    %1182 = arith.mulf %1180, %1181 : vector<8x256xf32>
    %c12_201 = arith.constant 12 : index
    %1183 = memref.load %arg9[%c12_201] : memref<144xf32, #tpu.memory_space<smem>>
    %1184 = vector.broadcast %1183 : f32 to vector<8x256xf32>
    %1185 = arith.mulf %1184, %1179 : vector<8x256xf32>
    %1186 = arith.addf %1164, %1185 : vector<8x256xf32>
    %c48_202 = arith.constant 48 : index
    %1187 = memref.load %arg9[%c48_202] : memref<144xf32, #tpu.memory_space<smem>>
    %1188 = vector.broadcast %1187 : f32 to vector<8x256xf32>
    %1189 = arith.mulf %1188, %1179 : vector<8x256xf32>
    %1190 = arith.addf %1168, %1189 : vector<8x256xf32>
    %c84_203 = arith.constant 84 : index
    %1191 = memref.load %arg9[%c84_203] : memref<144xf32, #tpu.memory_space<smem>>
    %1192 = vector.broadcast %1191 : f32 to vector<8x256xf32>
    %1193 = arith.mulf %1192, %1179 : vector<8x256xf32>
    %1194 = arith.addf %1172, %1193 : vector<8x256xf32>
    %c120_204 = arith.constant 120 : index
    %1195 = memref.load %arg9[%c120_204] : memref<144xf32, #tpu.memory_space<smem>>
    %1196 = vector.broadcast %1195 : f32 to vector<8x256xf32>
    %1197 = arith.mulf %1196, %1179 : vector<8x256xf32>
    %1198 = arith.addf %1176, %1197 : vector<8x256xf32>
    %c13_205 = arith.constant 13 : index
    %1199 = memref.load %arg9[%c13_205] : memref<144xf32, #tpu.memory_space<smem>>
    %1200 = vector.broadcast %1199 : f32 to vector<8x256xf32>
    %1201 = arith.mulf %1200, %886 : vector<8x256xf32>
    %1202 = arith.addf %1186, %1201 : vector<8x256xf32>
    %c49_206 = arith.constant 49 : index
    %1203 = memref.load %arg9[%c49_206] : memref<144xf32, #tpu.memory_space<smem>>
    %1204 = vector.broadcast %1203 : f32 to vector<8x256xf32>
    %1205 = arith.mulf %1204, %886 : vector<8x256xf32>
    %1206 = arith.addf %1190, %1205 : vector<8x256xf32>
    %c85_207 = arith.constant 85 : index
    %1207 = memref.load %arg9[%c85_207] : memref<144xf32, #tpu.memory_space<smem>>
    %1208 = vector.broadcast %1207 : f32 to vector<8x256xf32>
    %1209 = arith.mulf %1208, %886 : vector<8x256xf32>
    %1210 = arith.addf %1194, %1209 : vector<8x256xf32>
    %c121_208 = arith.constant 121 : index
    %1211 = memref.load %arg9[%c121_208] : memref<144xf32, #tpu.memory_space<smem>>
    %1212 = vector.broadcast %1211 : f32 to vector<8x256xf32>
    %1213 = arith.mulf %1212, %886 : vector<8x256xf32>
    %1214 = arith.addf %1198, %1213 : vector<8x256xf32>
    %c14_209 = arith.constant 14 : index
    %1215 = memref.load %arg9[%c14_209] : memref<144xf32, #tpu.memory_space<smem>>
    %1216 = vector.broadcast %1215 : f32 to vector<8x256xf32>
    %1217 = arith.mulf %1216, %1182 : vector<8x256xf32>
    %1218 = arith.addf %1202, %1217 : vector<8x256xf32>
    %c50_210 = arith.constant 50 : index
    %1219 = memref.load %arg9[%c50_210] : memref<144xf32, #tpu.memory_space<smem>>
    %1220 = vector.broadcast %1219 : f32 to vector<8x256xf32>
    %1221 = arith.mulf %1220, %1182 : vector<8x256xf32>
    %1222 = arith.addf %1206, %1221 : vector<8x256xf32>
    %c86_211 = arith.constant 86 : index
    %1223 = memref.load %arg9[%c86_211] : memref<144xf32, #tpu.memory_space<smem>>
    %1224 = vector.broadcast %1223 : f32 to vector<8x256xf32>
    %1225 = arith.mulf %1224, %1182 : vector<8x256xf32>
    %1226 = arith.addf %1210, %1225 : vector<8x256xf32>
    %c122_212 = arith.constant 122 : index
    %1227 = memref.load %arg9[%c122_212] : memref<144xf32, #tpu.memory_space<smem>>
    %1228 = vector.broadcast %1227 : f32 to vector<8x256xf32>
    %1229 = arith.mulf %1228, %1182 : vector<8x256xf32>
    %1230 = arith.addf %1214, %1229 : vector<8x256xf32>
    %c1_i32_213 = arith.constant 1 : i32
    %1231 = tpu.dynamic_rotate %1122 by %c1_i32_213 dim 1 : vector<8x256xf32>, i32 -> vector<8x256xf32>
    %1232 = vector.broadcast %26 : vector<1x256xf32> to vector<8x256xf32>
    %1233 = arith.mulf %1231, %1232 : vector<8x256xf32>
    %c255_i32_214 = arith.constant 255 : i32
    %1234 = tpu.dynamic_rotate %1122 by %c255_i32_214 dim 1 : vector<8x256xf32>, i32 -> vector<8x256xf32>
    %1235 = vector.broadcast %21 : vector<1x256xf32> to vector<8x256xf32>
    %1236 = arith.mulf %1234, %1235 : vector<8x256xf32>
    %c15_215 = arith.constant 15 : index
    %1237 = memref.load %arg9[%c15_215] : memref<144xf32, #tpu.memory_space<smem>>
    %1238 = vector.broadcast %1237 : f32 to vector<8x256xf32>
    %1239 = arith.mulf %1238, %1233 : vector<8x256xf32>
    %1240 = arith.addf %1218, %1239 : vector<8x256xf32>
    %c51_216 = arith.constant 51 : index
    %1241 = memref.load %arg9[%c51_216] : memref<144xf32, #tpu.memory_space<smem>>
    %1242 = vector.broadcast %1241 : f32 to vector<8x256xf32>
    %1243 = arith.mulf %1242, %1233 : vector<8x256xf32>
    %1244 = arith.addf %1222, %1243 : vector<8x256xf32>
    %c87_217 = arith.constant 87 : index
    %1245 = memref.load %arg9[%c87_217] : memref<144xf32, #tpu.memory_space<smem>>
    %1246 = vector.broadcast %1245 : f32 to vector<8x256xf32>
    %1247 = arith.mulf %1246, %1233 : vector<8x256xf32>
    %1248 = arith.addf %1226, %1247 : vector<8x256xf32>
    %c123_218 = arith.constant 123 : index
    %1249 = memref.load %arg9[%c123_218] : memref<144xf32, #tpu.memory_space<smem>>
    %1250 = vector.broadcast %1249 : f32 to vector<8x256xf32>
    %1251 = arith.mulf %1250, %1233 : vector<8x256xf32>
    %1252 = arith.addf %1230, %1251 : vector<8x256xf32>
    %c16_219 = arith.constant 16 : index
    %1253 = memref.load %arg9[%c16_219] : memref<144xf32, #tpu.memory_space<smem>>
    %1254 = vector.broadcast %1253 : f32 to vector<8x256xf32>
    %1255 = arith.mulf %1254, %1122 : vector<8x256xf32>
    %1256 = arith.addf %1240, %1255 : vector<8x256xf32>
    %c52_220 = arith.constant 52 : index
    %1257 = memref.load %arg9[%c52_220] : memref<144xf32, #tpu.memory_space<smem>>
    %1258 = vector.broadcast %1257 : f32 to vector<8x256xf32>
    %1259 = arith.mulf %1258, %1122 : vector<8x256xf32>
    %1260 = arith.addf %1244, %1259 : vector<8x256xf32>
    %c88_221 = arith.constant 88 : index
    %1261 = memref.load %arg9[%c88_221] : memref<144xf32, #tpu.memory_space<smem>>
    %1262 = vector.broadcast %1261 : f32 to vector<8x256xf32>
    %1263 = arith.mulf %1262, %1122 : vector<8x256xf32>
    %1264 = arith.addf %1248, %1263 : vector<8x256xf32>
    %c124_222 = arith.constant 124 : index
    %1265 = memref.load %arg9[%c124_222] : memref<144xf32, #tpu.memory_space<smem>>
    %1266 = vector.broadcast %1265 : f32 to vector<8x256xf32>
    %1267 = arith.mulf %1266, %1122 : vector<8x256xf32>
    %1268 = arith.addf %1252, %1267 : vector<8x256xf32>
    %c17_223 = arith.constant 17 : index
    %1269 = memref.load %arg9[%c17_223] : memref<144xf32, #tpu.memory_space<smem>>
    %1270 = vector.broadcast %1269 : f32 to vector<8x256xf32>
    %1271 = arith.mulf %1270, %1236 : vector<8x256xf32>
    %1272 = arith.addf %1256, %1271 : vector<8x256xf32>
    %c53_224 = arith.constant 53 : index
    %1273 = memref.load %arg9[%c53_224] : memref<144xf32, #tpu.memory_space<smem>>
    %1274 = vector.broadcast %1273 : f32 to vector<8x256xf32>
    %1275 = arith.mulf %1274, %1236 : vector<8x256xf32>
    %1276 = arith.addf %1260, %1275 : vector<8x256xf32>
    %c89_225 = arith.constant 89 : index
    %1277 = memref.load %arg9[%c89_225] : memref<144xf32, #tpu.memory_space<smem>>
    %1278 = vector.broadcast %1277 : f32 to vector<8x256xf32>
    %1279 = arith.mulf %1278, %1236 : vector<8x256xf32>
    %1280 = arith.addf %1264, %1279 : vector<8x256xf32>
    %c125_226 = arith.constant 125 : index
    %1281 = memref.load %arg9[%c125_226] : memref<144xf32, #tpu.memory_space<smem>>
    %1282 = vector.broadcast %1281 : f32 to vector<8x256xf32>
    %1283 = arith.mulf %1282, %1236 : vector<8x256xf32>
    %1284 = arith.addf %1268, %1283 : vector<8x256xf32>
    %c16_i32_227 = arith.constant 16 : i32
    %1285 = tpu.dynamic_rotate %913 by %c16_i32_227 dim 1 : vector<8x256xf32>, i32 -> vector<8x256xf32>
    %1286 = vector.broadcast %36 : vector<1x256xf32> to vector<8x256xf32>
    %1287 = arith.mulf %1285, %1286 : vector<8x256xf32>
    %c240_i32_228 = arith.constant 240 : i32
    %1288 = tpu.dynamic_rotate %913 by %c240_i32_228 dim 1 : vector<8x256xf32>, i32 -> vector<8x256xf32>
    %1289 = vector.broadcast %31 : vector<1x256xf32> to vector<8x256xf32>
    %1290 = arith.mulf %1288, %1289 : vector<8x256xf32>
    %c1_i32_229 = arith.constant 1 : i32
    %1291 = tpu.dynamic_rotate %1287 by %c1_i32_229 dim 1 : vector<8x256xf32>, i32 -> vector<8x256xf32>
    %1292 = vector.broadcast %26 : vector<1x256xf32> to vector<8x256xf32>
    %1293 = arith.mulf %1291, %1292 : vector<8x256xf32>
    %c255_i32_230 = arith.constant 255 : i32
    %1294 = tpu.dynamic_rotate %1287 by %c255_i32_230 dim 1 : vector<8x256xf32>, i32 -> vector<8x256xf32>
    %1295 = vector.broadcast %21 : vector<1x256xf32> to vector<8x256xf32>
    %1296 = arith.mulf %1294, %1295 : vector<8x256xf32>
    %c18_231 = arith.constant 18 : index
    %1297 = memref.load %arg9[%c18_231] : memref<144xf32, #tpu.memory_space<smem>>
    %1298 = vector.broadcast %1297 : f32 to vector<8x256xf32>
    %1299 = arith.mulf %1298, %1293 : vector<8x256xf32>
    %1300 = arith.addf %1272, %1299 : vector<8x256xf32>
    %c54_232 = arith.constant 54 : index
    %1301 = memref.load %arg9[%c54_232] : memref<144xf32, #tpu.memory_space<smem>>
    %1302 = vector.broadcast %1301 : f32 to vector<8x256xf32>
    %1303 = arith.mulf %1302, %1293 : vector<8x256xf32>
    %1304 = arith.addf %1276, %1303 : vector<8x256xf32>
    %c90_233 = arith.constant 90 : index
    %1305 = memref.load %arg9[%c90_233] : memref<144xf32, #tpu.memory_space<smem>>
    %1306 = vector.broadcast %1305 : f32 to vector<8x256xf32>
    %1307 = arith.mulf %1306, %1293 : vector<8x256xf32>
    %1308 = arith.addf %1280, %1307 : vector<8x256xf32>
    %c126_234 = arith.constant 126 : index
    %1309 = memref.load %arg9[%c126_234] : memref<144xf32, #tpu.memory_space<smem>>
    %1310 = vector.broadcast %1309 : f32 to vector<8x256xf32>
    %1311 = arith.mulf %1310, %1293 : vector<8x256xf32>
    %1312 = arith.addf %1284, %1311 : vector<8x256xf32>
    %c19_235 = arith.constant 19 : index
    %1313 = memref.load %arg9[%c19_235] : memref<144xf32, #tpu.memory_space<smem>>
    %1314 = vector.broadcast %1313 : f32 to vector<8x256xf32>
    %1315 = arith.mulf %1314, %1287 : vector<8x256xf32>
    %1316 = arith.addf %1300, %1315 : vector<8x256xf32>
    %c55_236 = arith.constant 55 : index
    %1317 = memref.load %arg9[%c55_236] : memref<144xf32, #tpu.memory_space<smem>>
    %1318 = vector.broadcast %1317 : f32 to vector<8x256xf32>
    %1319 = arith.mulf %1318, %1287 : vector<8x256xf32>
    %1320 = arith.addf %1304, %1319 : vector<8x256xf32>
    %c91_237 = arith.constant 91 : index
    %1321 = memref.load %arg9[%c91_237] : memref<144xf32, #tpu.memory_space<smem>>
    %1322 = vector.broadcast %1321 : f32 to vector<8x256xf32>
    %1323 = arith.mulf %1322, %1287 : vector<8x256xf32>
    %1324 = arith.addf %1308, %1323 : vector<8x256xf32>
    %c127_238 = arith.constant 127 : index
    %1325 = memref.load %arg9[%c127_238] : memref<144xf32, #tpu.memory_space<smem>>
    %1326 = vector.broadcast %1325 : f32 to vector<8x256xf32>
    %1327 = arith.mulf %1326, %1287 : vector<8x256xf32>
    %1328 = arith.addf %1312, %1327 : vector<8x256xf32>
    %c20_239 = arith.constant 20 : index
    %1329 = memref.load %arg9[%c20_239] : memref<144xf32, #tpu.memory_space<smem>>
    %1330 = vector.broadcast %1329 : f32 to vector<8x256xf32>
    %1331 = arith.mulf %1330, %1296 : vector<8x256xf32>
    %1332 = arith.addf %1316, %1331 : vector<8x256xf32>
    %c56_240 = arith.constant 56 : index
    %1333 = memref.load %arg9[%c56_240] : memref<144xf32, #tpu.memory_space<smem>>
    %1334 = vector.broadcast %1333 : f32 to vector<8x256xf32>
    %1335 = arith.mulf %1334, %1296 : vector<8x256xf32>
    %1336 = arith.addf %1320, %1335 : vector<8x256xf32>
    %c92_241 = arith.constant 92 : index
    %1337 = memref.load %arg9[%c92_241] : memref<144xf32, #tpu.memory_space<smem>>
    %1338 = vector.broadcast %1337 : f32 to vector<8x256xf32>
    %1339 = arith.mulf %1338, %1296 : vector<8x256xf32>
    %1340 = arith.addf %1324, %1339 : vector<8x256xf32>
    %c128_242 = arith.constant 128 : index
    %1341 = memref.load %arg9[%c128_242] : memref<144xf32, #tpu.memory_space<smem>>
    %1342 = vector.broadcast %1341 : f32 to vector<8x256xf32>
    %1343 = arith.mulf %1342, %1296 : vector<8x256xf32>
    %1344 = arith.addf %1328, %1343 : vector<8x256xf32>
    %c1_i32_243 = arith.constant 1 : i32
    %1345 = tpu.dynamic_rotate %913 by %c1_i32_243 dim 1 : vector<8x256xf32>, i32 -> vector<8x256xf32>
    %1346 = vector.broadcast %26 : vector<1x256xf32> to vector<8x256xf32>
    %1347 = arith.mulf %1345, %1346 : vector<8x256xf32>
    %c255_i32_244 = arith.constant 255 : i32
    %1348 = tpu.dynamic_rotate %913 by %c255_i32_244 dim 1 : vector<8x256xf32>, i32 -> vector<8x256xf32>
    %1349 = vector.broadcast %21 : vector<1x256xf32> to vector<8x256xf32>
    %1350 = arith.mulf %1348, %1349 : vector<8x256xf32>
    %c21_245 = arith.constant 21 : index
    %1351 = memref.load %arg9[%c21_245] : memref<144xf32, #tpu.memory_space<smem>>
    %1352 = vector.broadcast %1351 : f32 to vector<8x256xf32>
    %1353 = arith.mulf %1352, %1347 : vector<8x256xf32>
    %1354 = arith.addf %1332, %1353 : vector<8x256xf32>
    %c57_246 = arith.constant 57 : index
    %1355 = memref.load %arg9[%c57_246] : memref<144xf32, #tpu.memory_space<smem>>
    %1356 = vector.broadcast %1355 : f32 to vector<8x256xf32>
    %1357 = arith.mulf %1356, %1347 : vector<8x256xf32>
    %1358 = arith.addf %1336, %1357 : vector<8x256xf32>
    %c93_247 = arith.constant 93 : index
    %1359 = memref.load %arg9[%c93_247] : memref<144xf32, #tpu.memory_space<smem>>
    %1360 = vector.broadcast %1359 : f32 to vector<8x256xf32>
    %1361 = arith.mulf %1360, %1347 : vector<8x256xf32>
    %1362 = arith.addf %1340, %1361 : vector<8x256xf32>
    %c129_248 = arith.constant 129 : index
    %1363 = memref.load %arg9[%c129_248] : memref<144xf32, #tpu.memory_space<smem>>
    %1364 = vector.broadcast %1363 : f32 to vector<8x256xf32>
    %1365 = arith.mulf %1364, %1347 : vector<8x256xf32>
    %1366 = arith.addf %1344, %1365 : vector<8x256xf32>
    %c22_249 = arith.constant 22 : index
    %1367 = memref.load %arg9[%c22_249] : memref<144xf32, #tpu.memory_space<smem>>
    %1368 = vector.broadcast %1367 : f32 to vector<8x256xf32>
    %1369 = arith.mulf %1368, %913 : vector<8x256xf32>
    %1370 = arith.addf %1354, %1369 : vector<8x256xf32>
    %c58_250 = arith.constant 58 : index
    %1371 = memref.load %arg9[%c58_250] : memref<144xf32, #tpu.memory_space<smem>>
    %1372 = vector.broadcast %1371 : f32 to vector<8x256xf32>
    %1373 = arith.mulf %1372, %913 : vector<8x256xf32>
    %1374 = arith.addf %1358, %1373 : vector<8x256xf32>
    %c94_251 = arith.constant 94 : index
    %1375 = memref.load %arg9[%c94_251] : memref<144xf32, #tpu.memory_space<smem>>
    %1376 = vector.broadcast %1375 : f32 to vector<8x256xf32>
    %1377 = arith.mulf %1376, %913 : vector<8x256xf32>
    %1378 = arith.addf %1362, %1377 : vector<8x256xf32>
    %c130_252 = arith.constant 130 : index
    %1379 = memref.load %arg9[%c130_252] : memref<144xf32, #tpu.memory_space<smem>>
    %1380 = vector.broadcast %1379 : f32 to vector<8x256xf32>
    %1381 = arith.mulf %1380, %913 : vector<8x256xf32>
    %1382 = arith.addf %1366, %1381 : vector<8x256xf32>
    %c23_253 = arith.constant 23 : index
    %1383 = memref.load %arg9[%c23_253] : memref<144xf32, #tpu.memory_space<smem>>
    %1384 = vector.broadcast %1383 : f32 to vector<8x256xf32>
    %1385 = arith.mulf %1384, %1350 : vector<8x256xf32>
    %1386 = arith.addf %1370, %1385 : vector<8x256xf32>
    %c59_254 = arith.constant 59 : index
    %1387 = memref.load %arg9[%c59_254] : memref<144xf32, #tpu.memory_space<smem>>
    %1388 = vector.broadcast %1387 : f32 to vector<8x256xf32>
    %1389 = arith.mulf %1388, %1350 : vector<8x256xf32>
    %1390 = arith.addf %1374, %1389 : vector<8x256xf32>
    %c95_255 = arith.constant 95 : index
    %1391 = memref.load %arg9[%c95_255] : memref<144xf32, #tpu.memory_space<smem>>
    %1392 = vector.broadcast %1391 : f32 to vector<8x256xf32>
    %1393 = arith.mulf %1392, %1350 : vector<8x256xf32>
    %1394 = arith.addf %1378, %1393 : vector<8x256xf32>
    %c131_256 = arith.constant 131 : index
    %1395 = memref.load %arg9[%c131_256] : memref<144xf32, #tpu.memory_space<smem>>
    %1396 = vector.broadcast %1395 : f32 to vector<8x256xf32>
    %1397 = arith.mulf %1396, %1350 : vector<8x256xf32>
    %1398 = arith.addf %1382, %1397 : vector<8x256xf32>
    %c1_i32_257 = arith.constant 1 : i32
    %1399 = tpu.dynamic_rotate %1290 by %c1_i32_257 dim 1 : vector<8x256xf32>, i32 -> vector<8x256xf32>
    %1400 = vector.broadcast %26 : vector<1x256xf32> to vector<8x256xf32>
    %1401 = arith.mulf %1399, %1400 : vector<8x256xf32>
    %c255_i32_258 = arith.constant 255 : i32
    %1402 = tpu.dynamic_rotate %1290 by %c255_i32_258 dim 1 : vector<8x256xf32>, i32 -> vector<8x256xf32>
    %1403 = vector.broadcast %21 : vector<1x256xf32> to vector<8x256xf32>
    %1404 = arith.mulf %1402, %1403 : vector<8x256xf32>
    %c24_259 = arith.constant 24 : index
    %1405 = memref.load %arg9[%c24_259] : memref<144xf32, #tpu.memory_space<smem>>
    %1406 = vector.broadcast %1405 : f32 to vector<8x256xf32>
    %1407 = arith.mulf %1406, %1401 : vector<8x256xf32>
    %1408 = arith.addf %1386, %1407 : vector<8x256xf32>
    %c60_260 = arith.constant 60 : index
    %1409 = memref.load %arg9[%c60_260] : memref<144xf32, #tpu.memory_space<smem>>
    %1410 = vector.broadcast %1409 : f32 to vector<8x256xf32>
    %1411 = arith.mulf %1410, %1401 : vector<8x256xf32>
    %1412 = arith.addf %1390, %1411 : vector<8x256xf32>
    %c96_261 = arith.constant 96 : index
    %1413 = memref.load %arg9[%c96_261] : memref<144xf32, #tpu.memory_space<smem>>
    %1414 = vector.broadcast %1413 : f32 to vector<8x256xf32>
    %1415 = arith.mulf %1414, %1401 : vector<8x256xf32>
    %1416 = arith.addf %1394, %1415 : vector<8x256xf32>
    %c132_262 = arith.constant 132 : index
    %1417 = memref.load %arg9[%c132_262] : memref<144xf32, #tpu.memory_space<smem>>
    %1418 = vector.broadcast %1417 : f32 to vector<8x256xf32>
    %1419 = arith.mulf %1418, %1401 : vector<8x256xf32>
    %1420 = arith.addf %1398, %1419 : vector<8x256xf32>
    %c25_263 = arith.constant 25 : index
    %1421 = memref.load %arg9[%c25_263] : memref<144xf32, #tpu.memory_space<smem>>
    %1422 = vector.broadcast %1421 : f32 to vector<8x256xf32>
    %1423 = arith.mulf %1422, %1290 : vector<8x256xf32>
    %1424 = arith.addf %1408, %1423 : vector<8x256xf32>
    %c61_264 = arith.constant 61 : index
    %1425 = memref.load %arg9[%c61_264] : memref<144xf32, #tpu.memory_space<smem>>
    %1426 = vector.broadcast %1425 : f32 to vector<8x256xf32>
    %1427 = arith.mulf %1426, %1290 : vector<8x256xf32>
    %1428 = arith.addf %1412, %1427 : vector<8x256xf32>
    %c97_265 = arith.constant 97 : index
    %1429 = memref.load %arg9[%c97_265] : memref<144xf32, #tpu.memory_space<smem>>
    %1430 = vector.broadcast %1429 : f32 to vector<8x256xf32>
    %1431 = arith.mulf %1430, %1290 : vector<8x256xf32>
    %1432 = arith.addf %1416, %1431 : vector<8x256xf32>
    %c133_266 = arith.constant 133 : index
    %1433 = memref.load %arg9[%c133_266] : memref<144xf32, #tpu.memory_space<smem>>
    %1434 = vector.broadcast %1433 : f32 to vector<8x256xf32>
    %1435 = arith.mulf %1434, %1290 : vector<8x256xf32>
    %1436 = arith.addf %1420, %1435 : vector<8x256xf32>
    %c26_267 = arith.constant 26 : index
    %1437 = memref.load %arg9[%c26_267] : memref<144xf32, #tpu.memory_space<smem>>
    %1438 = vector.broadcast %1437 : f32 to vector<8x256xf32>
    %1439 = arith.mulf %1438, %1404 : vector<8x256xf32>
    %1440 = arith.addf %1424, %1439 : vector<8x256xf32>
    %c62_268 = arith.constant 62 : index
    %1441 = memref.load %arg9[%c62_268] : memref<144xf32, #tpu.memory_space<smem>>
    %1442 = vector.broadcast %1441 : f32 to vector<8x256xf32>
    %1443 = arith.mulf %1442, %1404 : vector<8x256xf32>
    %1444 = arith.addf %1428, %1443 : vector<8x256xf32>
    %c98_269 = arith.constant 98 : index
    %1445 = memref.load %arg9[%c98_269] : memref<144xf32, #tpu.memory_space<smem>>
    %1446 = vector.broadcast %1445 : f32 to vector<8x256xf32>
    %1447 = arith.mulf %1446, %1404 : vector<8x256xf32>
    %1448 = arith.addf %1432, %1447 : vector<8x256xf32>
    %c134_270 = arith.constant 134 : index
    %1449 = memref.load %arg9[%c134_270] : memref<144xf32, #tpu.memory_space<smem>>
    %1450 = vector.broadcast %1449 : f32 to vector<8x256xf32>
    %1451 = arith.mulf %1450, %1404 : vector<8x256xf32>
    %1452 = arith.addf %1436, %1451 : vector<8x256xf32>
    %c16_i32_271 = arith.constant 16 : i32
    %1453 = tpu.dynamic_rotate %940 by %c16_i32_271 dim 1 : vector<8x256xf32>, i32 -> vector<8x256xf32>
    %1454 = vector.broadcast %36 : vector<1x256xf32> to vector<8x256xf32>
    %1455 = arith.mulf %1453, %1454 : vector<8x256xf32>
    %c240_i32_272 = arith.constant 240 : i32
    %1456 = tpu.dynamic_rotate %940 by %c240_i32_272 dim 1 : vector<8x256xf32>, i32 -> vector<8x256xf32>
    %1457 = vector.broadcast %31 : vector<1x256xf32> to vector<8x256xf32>
    %1458 = arith.mulf %1456, %1457 : vector<8x256xf32>
    %c1_i32_273 = arith.constant 1 : i32
    %1459 = tpu.dynamic_rotate %1455 by %c1_i32_273 dim 1 : vector<8x256xf32>, i32 -> vector<8x256xf32>
    %1460 = vector.broadcast %26 : vector<1x256xf32> to vector<8x256xf32>
    %1461 = arith.mulf %1459, %1460 : vector<8x256xf32>
    %c255_i32_274 = arith.constant 255 : i32
    %1462 = tpu.dynamic_rotate %1455 by %c255_i32_274 dim 1 : vector<8x256xf32>, i32 -> vector<8x256xf32>
    %1463 = vector.broadcast %21 : vector<1x256xf32> to vector<8x256xf32>
    %1464 = arith.mulf %1462, %1463 : vector<8x256xf32>
    %c27_275 = arith.constant 27 : index
    %1465 = memref.load %arg9[%c27_275] : memref<144xf32, #tpu.memory_space<smem>>
    %1466 = vector.broadcast %1465 : f32 to vector<8x256xf32>
    %1467 = arith.mulf %1466, %1461 : vector<8x256xf32>
    %1468 = arith.addf %1440, %1467 : vector<8x256xf32>
    %c63_276 = arith.constant 63 : index
    %1469 = memref.load %arg9[%c63_276] : memref<144xf32, #tpu.memory_space<smem>>
    %1470 = vector.broadcast %1469 : f32 to vector<8x256xf32>
    %1471 = arith.mulf %1470, %1461 : vector<8x256xf32>
    %1472 = arith.addf %1444, %1471 : vector<8x256xf32>
    %c99_277 = arith.constant 99 : index
    %1473 = memref.load %arg9[%c99_277] : memref<144xf32, #tpu.memory_space<smem>>
    %1474 = vector.broadcast %1473 : f32 to vector<8x256xf32>
    %1475 = arith.mulf %1474, %1461 : vector<8x256xf32>
    %1476 = arith.addf %1448, %1475 : vector<8x256xf32>
    %c135_278 = arith.constant 135 : index
    %1477 = memref.load %arg9[%c135_278] : memref<144xf32, #tpu.memory_space<smem>>
    %1478 = vector.broadcast %1477 : f32 to vector<8x256xf32>
    %1479 = arith.mulf %1478, %1461 : vector<8x256xf32>
    %1480 = arith.addf %1452, %1479 : vector<8x256xf32>
    %c28_279 = arith.constant 28 : index
    %1481 = memref.load %arg9[%c28_279] : memref<144xf32, #tpu.memory_space<smem>>
    %1482 = vector.broadcast %1481 : f32 to vector<8x256xf32>
    %1483 = arith.mulf %1482, %1455 : vector<8x256xf32>
    %1484 = arith.addf %1468, %1483 : vector<8x256xf32>
    %c64_280 = arith.constant 64 : index
    %1485 = memref.load %arg9[%c64_280] : memref<144xf32, #tpu.memory_space<smem>>
    %1486 = vector.broadcast %1485 : f32 to vector<8x256xf32>
    %1487 = arith.mulf %1486, %1455 : vector<8x256xf32>
    %1488 = arith.addf %1472, %1487 : vector<8x256xf32>
    %c100_281 = arith.constant 100 : index
    %1489 = memref.load %arg9[%c100_281] : memref<144xf32, #tpu.memory_space<smem>>
    %1490 = vector.broadcast %1489 : f32 to vector<8x256xf32>
    %1491 = arith.mulf %1490, %1455 : vector<8x256xf32>
    %1492 = arith.addf %1476, %1491 : vector<8x256xf32>
    %c136_282 = arith.constant 136 : index
    %1493 = memref.load %arg9[%c136_282] : memref<144xf32, #tpu.memory_space<smem>>
    %1494 = vector.broadcast %1493 : f32 to vector<8x256xf32>
    %1495 = arith.mulf %1494, %1455 : vector<8x256xf32>
    %1496 = arith.addf %1480, %1495 : vector<8x256xf32>
    %c29_283 = arith.constant 29 : index
    %1497 = memref.load %arg9[%c29_283] : memref<144xf32, #tpu.memory_space<smem>>
    %1498 = vector.broadcast %1497 : f32 to vector<8x256xf32>
    %1499 = arith.mulf %1498, %1464 : vector<8x256xf32>
    %1500 = arith.addf %1484, %1499 : vector<8x256xf32>
    %c65_284 = arith.constant 65 : index
    %1501 = memref.load %arg9[%c65_284] : memref<144xf32, #tpu.memory_space<smem>>
    %1502 = vector.broadcast %1501 : f32 to vector<8x256xf32>
    %1503 = arith.mulf %1502, %1464 : vector<8x256xf32>
    %1504 = arith.addf %1488, %1503 : vector<8x256xf32>
    %c101_285 = arith.constant 101 : index
    %1505 = memref.load %arg9[%c101_285] : memref<144xf32, #tpu.memory_space<smem>>
    %1506 = vector.broadcast %1505 : f32 to vector<8x256xf32>
    %1507 = arith.mulf %1506, %1464 : vector<8x256xf32>
    %1508 = arith.addf %1492, %1507 : vector<8x256xf32>
    %c137_286 = arith.constant 137 : index
    %1509 = memref.load %arg9[%c137_286] : memref<144xf32, #tpu.memory_space<smem>>
    %1510 = vector.broadcast %1509 : f32 to vector<8x256xf32>
    %1511 = arith.mulf %1510, %1464 : vector<8x256xf32>
    %1512 = arith.addf %1496, %1511 : vector<8x256xf32>
    %c1_i32_287 = arith.constant 1 : i32
    %1513 = tpu.dynamic_rotate %940 by %c1_i32_287 dim 1 : vector<8x256xf32>, i32 -> vector<8x256xf32>
    %1514 = vector.broadcast %26 : vector<1x256xf32> to vector<8x256xf32>
    %1515 = arith.mulf %1513, %1514 : vector<8x256xf32>
    %c255_i32_288 = arith.constant 255 : i32
    %1516 = tpu.dynamic_rotate %940 by %c255_i32_288 dim 1 : vector<8x256xf32>, i32 -> vector<8x256xf32>
    %1517 = vector.broadcast %21 : vector<1x256xf32> to vector<8x256xf32>
    %1518 = arith.mulf %1516, %1517 : vector<8x256xf32>
    %c30_289 = arith.constant 30 : index
    %1519 = memref.load %arg9[%c30_289] : memref<144xf32, #tpu.memory_space<smem>>
    %1520 = vector.broadcast %1519 : f32 to vector<8x256xf32>
    %1521 = arith.mulf %1520, %1515 : vector<8x256xf32>
    %1522 = arith.addf %1500, %1521 : vector<8x256xf32>
    %c66_290 = arith.constant 66 : index
    %1523 = memref.load %arg9[%c66_290] : memref<144xf32, #tpu.memory_space<smem>>
    %1524 = vector.broadcast %1523 : f32 to vector<8x256xf32>
    %1525 = arith.mulf %1524, %1515 : vector<8x256xf32>
    %1526 = arith.addf %1504, %1525 : vector<8x256xf32>
    %c102_291 = arith.constant 102 : index
    %1527 = memref.load %arg9[%c102_291] : memref<144xf32, #tpu.memory_space<smem>>
    %1528 = vector.broadcast %1527 : f32 to vector<8x256xf32>
    %1529 = arith.mulf %1528, %1515 : vector<8x256xf32>
    %1530 = arith.addf %1508, %1529 : vector<8x256xf32>
    %c138_292 = arith.constant 138 : index
    %1531 = memref.load %arg9[%c138_292] : memref<144xf32, #tpu.memory_space<smem>>
    %1532 = vector.broadcast %1531 : f32 to vector<8x256xf32>
    %1533 = arith.mulf %1532, %1515 : vector<8x256xf32>
    %1534 = arith.addf %1512, %1533 : vector<8x256xf32>
    %c31_293 = arith.constant 31 : index
    %1535 = memref.load %arg9[%c31_293] : memref<144xf32, #tpu.memory_space<smem>>
    %1536 = vector.broadcast %1535 : f32 to vector<8x256xf32>
    %1537 = arith.mulf %1536, %940 : vector<8x256xf32>
    %1538 = arith.addf %1522, %1537 : vector<8x256xf32>
    %c67_294 = arith.constant 67 : index
    %1539 = memref.load %arg9[%c67_294] : memref<144xf32, #tpu.memory_space<smem>>
    %1540 = vector.broadcast %1539 : f32 to vector<8x256xf32>
    %1541 = arith.mulf %1540, %940 : vector<8x256xf32>
    %1542 = arith.addf %1526, %1541 : vector<8x256xf32>
    %c103_295 = arith.constant 103 : index
    %1543 = memref.load %arg9[%c103_295] : memref<144xf32, #tpu.memory_space<smem>>
    %1544 = vector.broadcast %1543 : f32 to vector<8x256xf32>
    %1545 = arith.mulf %1544, %940 : vector<8x256xf32>
    %1546 = arith.addf %1530, %1545 : vector<8x256xf32>
    %c139_296 = arith.constant 139 : index
    %1547 = memref.load %arg9[%c139_296] : memref<144xf32, #tpu.memory_space<smem>>
    %1548 = vector.broadcast %1547 : f32 to vector<8x256xf32>
    %1549 = arith.mulf %1548, %940 : vector<8x256xf32>
    %1550 = arith.addf %1534, %1549 : vector<8x256xf32>
    %c32_297 = arith.constant 32 : index
    %1551 = memref.load %arg9[%c32_297] : memref<144xf32, #tpu.memory_space<smem>>
    %1552 = vector.broadcast %1551 : f32 to vector<8x256xf32>
    %1553 = arith.mulf %1552, %1518 : vector<8x256xf32>
    %1554 = arith.addf %1538, %1553 : vector<8x256xf32>
    %c68_298 = arith.constant 68 : index
    %1555 = memref.load %arg9[%c68_298] : memref<144xf32, #tpu.memory_space<smem>>
    %1556 = vector.broadcast %1555 : f32 to vector<8x256xf32>
    %1557 = arith.mulf %1556, %1518 : vector<8x256xf32>
    %1558 = arith.addf %1542, %1557 : vector<8x256xf32>
    %c104_299 = arith.constant 104 : index
    %1559 = memref.load %arg9[%c104_299] : memref<144xf32, #tpu.memory_space<smem>>
    %1560 = vector.broadcast %1559 : f32 to vector<8x256xf32>
    %1561 = arith.mulf %1560, %1518 : vector<8x256xf32>
    %1562 = arith.addf %1546, %1561 : vector<8x256xf32>
    %c140_300 = arith.constant 140 : index
    %1563 = memref.load %arg9[%c140_300] : memref<144xf32, #tpu.memory_space<smem>>
    %1564 = vector.broadcast %1563 : f32 to vector<8x256xf32>
    %1565 = arith.mulf %1564, %1518 : vector<8x256xf32>
    %1566 = arith.addf %1550, %1565 : vector<8x256xf32>
    %c1_i32_301 = arith.constant 1 : i32
    %1567 = tpu.dynamic_rotate %1458 by %c1_i32_301 dim 1 : vector<8x256xf32>, i32 -> vector<8x256xf32>
    %1568 = vector.broadcast %26 : vector<1x256xf32> to vector<8x256xf32>
    %1569 = arith.mulf %1567, %1568 : vector<8x256xf32>
    %c255_i32_302 = arith.constant 255 : i32
    %1570 = tpu.dynamic_rotate %1458 by %c255_i32_302 dim 1 : vector<8x256xf32>, i32 -> vector<8x256xf32>
    %1571 = vector.broadcast %21 : vector<1x256xf32> to vector<8x256xf32>
    %1572 = arith.mulf %1570, %1571 : vector<8x256xf32>
    %c33_303 = arith.constant 33 : index
    %1573 = memref.load %arg9[%c33_303] : memref<144xf32, #tpu.memory_space<smem>>
    %1574 = vector.broadcast %1573 : f32 to vector<8x256xf32>
    %1575 = arith.mulf %1574, %1569 : vector<8x256xf32>
    %1576 = arith.addf %1554, %1575 : vector<8x256xf32>
    %c69_304 = arith.constant 69 : index
    %1577 = memref.load %arg9[%c69_304] : memref<144xf32, #tpu.memory_space<smem>>
    %1578 = vector.broadcast %1577 : f32 to vector<8x256xf32>
    %1579 = arith.mulf %1578, %1569 : vector<8x256xf32>
    %1580 = arith.addf %1558, %1579 : vector<8x256xf32>
    %c105_305 = arith.constant 105 : index
    %1581 = memref.load %arg9[%c105_305] : memref<144xf32, #tpu.memory_space<smem>>
    %1582 = vector.broadcast %1581 : f32 to vector<8x256xf32>
    %1583 = arith.mulf %1582, %1569 : vector<8x256xf32>
    %1584 = arith.addf %1562, %1583 : vector<8x256xf32>
    %c141_306 = arith.constant 141 : index
    %1585 = memref.load %arg9[%c141_306] : memref<144xf32, #tpu.memory_space<smem>>
    %1586 = vector.broadcast %1585 : f32 to vector<8x256xf32>
    %1587 = arith.mulf %1586, %1569 : vector<8x256xf32>
    %1588 = arith.addf %1566, %1587 : vector<8x256xf32>
    %c34_307 = arith.constant 34 : index
    %1589 = memref.load %arg9[%c34_307] : memref<144xf32, #tpu.memory_space<smem>>
    %1590 = vector.broadcast %1589 : f32 to vector<8x256xf32>
    %1591 = arith.mulf %1590, %1458 : vector<8x256xf32>
    %1592 = arith.addf %1576, %1591 : vector<8x256xf32>
    %c70_308 = arith.constant 70 : index
    %1593 = memref.load %arg9[%c70_308] : memref<144xf32, #tpu.memory_space<smem>>
    %1594 = vector.broadcast %1593 : f32 to vector<8x256xf32>
    %1595 = arith.mulf %1594, %1458 : vector<8x256xf32>
    %1596 = arith.addf %1580, %1595 : vector<8x256xf32>
    %c106_309 = arith.constant 106 : index
    %1597 = memref.load %arg9[%c106_309] : memref<144xf32, #tpu.memory_space<smem>>
    %1598 = vector.broadcast %1597 : f32 to vector<8x256xf32>
    %1599 = arith.mulf %1598, %1458 : vector<8x256xf32>
    %1600 = arith.addf %1584, %1599 : vector<8x256xf32>
    %c142_310 = arith.constant 142 : index
    %1601 = memref.load %arg9[%c142_310] : memref<144xf32, #tpu.memory_space<smem>>
    %1602 = vector.broadcast %1601 : f32 to vector<8x256xf32>
    %1603 = arith.mulf %1602, %1458 : vector<8x256xf32>
    %1604 = arith.addf %1588, %1603 : vector<8x256xf32>
    %c35_311 = arith.constant 35 : index
    %1605 = memref.load %arg9[%c35_311] : memref<144xf32, #tpu.memory_space<smem>>
    %1606 = vector.broadcast %1605 : f32 to vector<8x256xf32>
    %1607 = arith.mulf %1606, %1572 : vector<8x256xf32>
    %1608 = arith.addf %1592, %1607 : vector<8x256xf32>
    %c71_312 = arith.constant 71 : index
    %1609 = memref.load %arg9[%c71_312] : memref<144xf32, #tpu.memory_space<smem>>
    %1610 = vector.broadcast %1609 : f32 to vector<8x256xf32>
    %1611 = arith.mulf %1610, %1572 : vector<8x256xf32>
    %1612 = arith.addf %1596, %1611 : vector<8x256xf32>
    %c107_313 = arith.constant 107 : index
    %1613 = memref.load %arg9[%c107_313] : memref<144xf32, #tpu.memory_space<smem>>
    %1614 = vector.broadcast %1613 : f32 to vector<8x256xf32>
    %1615 = arith.mulf %1614, %1572 : vector<8x256xf32>
    %1616 = arith.addf %1600, %1615 : vector<8x256xf32>
    %c143_314 = arith.constant 143 : index
    %1617 = memref.load %arg9[%c143_314] : memref<144xf32, #tpu.memory_space<smem>>
    %1618 = vector.broadcast %1617 : f32 to vector<8x256xf32>
    %1619 = arith.mulf %1618, %1572 : vector<8x256xf32>
    %1620 = arith.addf %1604, %1619 : vector<8x256xf32>
    %cst_315 = arith.constant dense<0.000000e+00> : vector<8xf32>
    %1621 = vector.multi_reduction <add>, %1608, %cst_315 [1] : vector<8x256xf32> to vector<8xf32>
    %1622 = vector.shape_cast %1621 : vector<8xf32> to vector<8x1xf32>
    %1623 = arith.mulf %1608, %1608 : vector<8x256xf32>
    %cst_316 = arith.constant dense<0.000000e+00> : vector<8xf32>
    %1624 = vector.multi_reduction <add>, %1623, %cst_316 [1] : vector<8x256xf32> to vector<8xf32>
    %1625 = vector.shape_cast %1624 : vector<8xf32> to vector<8x1xf32>
    %cst_317 = arith.constant 3.906250e-03 : f32
    %1626 = vector.broadcast %cst_317 : f32 to vector<8x1xf32>
    %1627 = arith.mulf %1622, %1626 : vector<8x1xf32>
    %cst_318 = arith.constant 3.906250e-03 : f32
    %1628 = vector.broadcast %cst_318 : f32 to vector<8x1xf32>
    %1629 = arith.mulf %1625, %1628 : vector<8x1xf32>
    %1630 = arith.mulf %1627, %1627 : vector<8x1xf32>
    %1631 = arith.subf %1629, %1630 : vector<8x1xf32>
    %cst_319 = arith.constant 9.99999974E-6 : f32
    %1632 = vector.broadcast %cst_319 : f32 to vector<8x1xf32>
    %1633 = arith.addf %1631, %1632 : vector<8x1xf32>
    %1634 = math.rsqrt %1633 : vector<8x1xf32>
    %c0_320 = arith.constant 0 : index
    %1635 = memref.load %arg10[%c0_320] : memref<4xf32, #tpu.memory_space<smem>>
    %1636 = vector.broadcast %1635 : f32 to vector<8x1xf32>
    %1637 = arith.mulf %1634, %1636 : vector<8x1xf32>
    %c0_321 = arith.constant 0 : index
    %1638 = memref.load %arg11[%c0_321] : memref<4xf32, #tpu.memory_space<smem>>
    %1639 = arith.mulf %1627, %1637 : vector<8x1xf32>
    %1640 = vector.broadcast %1638 : f32 to vector<8x1xf32>
    %1641 = arith.subf %1640, %1639 : vector<8x1xf32>
    %1642 = vector.broadcast %1637 : vector<8x1xf32> to vector<8x256xf32>
    %1643 = arith.mulf %1608, %1642 : vector<8x256xf32>
    %1644 = vector.broadcast %1641 : vector<8x1xf32> to vector<8x256xf32>
    %1645 = arith.addf %1643, %1644 : vector<8x256xf32>
    %cst_322 = arith.constant dense<0.000000e+00> : vector<8xf32>
    %1646 = vector.multi_reduction <add>, %1612, %cst_322 [1] : vector<8x256xf32> to vector<8xf32>
    %1647 = vector.shape_cast %1646 : vector<8xf32> to vector<8x1xf32>
    %1648 = arith.mulf %1612, %1612 : vector<8x256xf32>
    %cst_323 = arith.constant dense<0.000000e+00> : vector<8xf32>
    %1649 = vector.multi_reduction <add>, %1648, %cst_323 [1] : vector<8x256xf32> to vector<8xf32>
    %1650 = vector.shape_cast %1649 : vector<8xf32> to vector<8x1xf32>
    %cst_324 = arith.constant 3.906250e-03 : f32
    %1651 = vector.broadcast %cst_324 : f32 to vector<8x1xf32>
    %1652 = arith.mulf %1647, %1651 : vector<8x1xf32>
    %cst_325 = arith.constant 3.906250e-03 : f32
    %1653 = vector.broadcast %cst_325 : f32 to vector<8x1xf32>
    %1654 = arith.mulf %1650, %1653 : vector<8x1xf32>
    %1655 = arith.mulf %1652, %1652 : vector<8x1xf32>
    %1656 = arith.subf %1654, %1655 : vector<8x1xf32>
    %cst_326 = arith.constant 9.99999974E-6 : f32
    %1657 = vector.broadcast %cst_326 : f32 to vector<8x1xf32>
    %1658 = arith.addf %1656, %1657 : vector<8x1xf32>
    %1659 = math.rsqrt %1658 : vector<8x1xf32>
    %c1_327 = arith.constant 1 : index
    %1660 = memref.load %arg10[%c1_327] : memref<4xf32, #tpu.memory_space<smem>>
    %1661 = vector.broadcast %1660 : f32 to vector<8x1xf32>
    %1662 = arith.mulf %1659, %1661 : vector<8x1xf32>
    %c1_328 = arith.constant 1 : index
    %1663 = memref.load %arg11[%c1_328] : memref<4xf32, #tpu.memory_space<smem>>
    %1664 = arith.mulf %1652, %1662 : vector<8x1xf32>
    %1665 = vector.broadcast %1663 : f32 to vector<8x1xf32>
    %1666 = arith.subf %1665, %1664 : vector<8x1xf32>
    %1667 = vector.broadcast %1662 : vector<8x1xf32> to vector<8x256xf32>
    %1668 = arith.mulf %1612, %1667 : vector<8x256xf32>
    %1669 = vector.broadcast %1666 : vector<8x1xf32> to vector<8x256xf32>
    %1670 = arith.addf %1668, %1669 : vector<8x256xf32>
    %cst_329 = arith.constant dense<0.000000e+00> : vector<8xf32>
    %1671 = vector.multi_reduction <add>, %1616, %cst_329 [1] : vector<8x256xf32> to vector<8xf32>
    %1672 = vector.shape_cast %1671 : vector<8xf32> to vector<8x1xf32>
    %1673 = arith.mulf %1616, %1616 : vector<8x256xf32>
    %cst_330 = arith.constant dense<0.000000e+00> : vector<8xf32>
    %1674 = vector.multi_reduction <add>, %1673, %cst_330 [1] : vector<8x256xf32> to vector<8xf32>
    %1675 = vector.shape_cast %1674 : vector<8xf32> to vector<8x1xf32>
    %cst_331 = arith.constant 3.906250e-03 : f32
    %1676 = vector.broadcast %cst_331 : f32 to vector<8x1xf32>
    %1677 = arith.mulf %1672, %1676 : vector<8x1xf32>
    %cst_332 = arith.constant 3.906250e-03 : f32
    %1678 = vector.broadcast %cst_332 : f32 to vector<8x1xf32>
    %1679 = arith.mulf %1675, %1678 : vector<8x1xf32>
    %1680 = arith.mulf %1677, %1677 : vector<8x1xf32>
    %1681 = arith.subf %1679, %1680 : vector<8x1xf32>
    %cst_333 = arith.constant 9.99999974E-6 : f32
    %1682 = vector.broadcast %cst_333 : f32 to vector<8x1xf32>
    %1683 = arith.addf %1681, %1682 : vector<8x1xf32>
    %1684 = math.rsqrt %1683 : vector<8x1xf32>
    %c2_334 = arith.constant 2 : index
    %1685 = memref.load %arg10[%c2_334] : memref<4xf32, #tpu.memory_space<smem>>
    %1686 = vector.broadcast %1685 : f32 to vector<8x1xf32>
    %1687 = arith.mulf %1684, %1686 : vector<8x1xf32>
    %c2_335 = arith.constant 2 : index
    %1688 = memref.load %arg11[%c2_335] : memref<4xf32, #tpu.memory_space<smem>>
    %1689 = arith.mulf %1677, %1687 : vector<8x1xf32>
    %1690 = vector.broadcast %1688 : f32 to vector<8x1xf32>
    %1691 = arith.subf %1690, %1689 : vector<8x1xf32>
    %1692 = vector.broadcast %1687 : vector<8x1xf32> to vector<8x256xf32>
    %1693 = arith.mulf %1616, %1692 : vector<8x256xf32>
    %1694 = vector.broadcast %1691 : vector<8x1xf32> to vector<8x256xf32>
    %1695 = arith.addf %1693, %1694 : vector<8x256xf32>
    %cst_336 = arith.constant dense<0.000000e+00> : vector<8xf32>
    %1696 = vector.multi_reduction <add>, %1620, %cst_336 [1] : vector<8x256xf32> to vector<8xf32>
    %1697 = vector.shape_cast %1696 : vector<8xf32> to vector<8x1xf32>
    %1698 = arith.mulf %1620, %1620 : vector<8x256xf32>
    %cst_337 = arith.constant dense<0.000000e+00> : vector<8xf32>
    %1699 = vector.multi_reduction <add>, %1698, %cst_337 [1] : vector<8x256xf32> to vector<8xf32>
    %1700 = vector.shape_cast %1699 : vector<8xf32> to vector<8x1xf32>
    %cst_338 = arith.constant 3.906250e-03 : f32
    %1701 = vector.broadcast %cst_338 : f32 to vector<8x1xf32>
    %1702 = arith.mulf %1697, %1701 : vector<8x1xf32>
    %cst_339 = arith.constant 3.906250e-03 : f32
    %1703 = vector.broadcast %cst_339 : f32 to vector<8x1xf32>
    %1704 = arith.mulf %1700, %1703 : vector<8x1xf32>
    %1705 = arith.mulf %1702, %1702 : vector<8x1xf32>
    %1706 = arith.subf %1704, %1705 : vector<8x1xf32>
    %cst_340 = arith.constant 9.99999974E-6 : f32
    %1707 = vector.broadcast %cst_340 : f32 to vector<8x1xf32>
    %1708 = arith.addf %1706, %1707 : vector<8x1xf32>
    %1709 = math.rsqrt %1708 : vector<8x1xf32>
    %c3_341 = arith.constant 3 : index
    %1710 = memref.load %arg10[%c3_341] : memref<4xf32, #tpu.memory_space<smem>>
    %1711 = vector.broadcast %1710 : f32 to vector<8x1xf32>
    %1712 = arith.mulf %1709, %1711 : vector<8x1xf32>
    %c3_342 = arith.constant 3 : index
    %1713 = memref.load %arg11[%c3_342] : memref<4xf32, #tpu.memory_space<smem>>
    %1714 = arith.mulf %1702, %1712 : vector<8x1xf32>
    %1715 = vector.broadcast %1713 : f32 to vector<8x1xf32>
    %1716 = arith.subf %1715, %1714 : vector<8x1xf32>
    %1717 = vector.broadcast %1712 : vector<8x1xf32> to vector<8x256xf32>
    %1718 = arith.mulf %1620, %1717 : vector<8x256xf32>
    %1719 = vector.broadcast %1716 : vector<8x1xf32> to vector<8x256xf32>
    %1720 = arith.addf %1718, %1719 : vector<8x256xf32>
    %c0_343 = arith.constant 0 : index
    %c0_344 = arith.constant 0 : index
    %c0_345 = arith.constant 0 : index
    %c0_346 = arith.constant 0 : index
    %1721 = vector.load %arg12[%c0_343, %c0_344, %c0_345, %c0_346] : memref<1x4x8x256xf32, #tpu.memory_space<vmem>>, vector<1x1x8x256xf32>
    %1722 = vector.shape_cast %1721 : vector<1x1x8x256xf32> to vector<8x256xf32>
    %1723 = vector.shape_cast %1645 : vector<8x256xf32> to vector<1x1x8x256xf32>
    tpu.vector_store %arg12[%c0_343, %c0_344, %c0_345, %c0_346], %1723 {strides = array<i32>} : memref<1x4x8x256xf32, #tpu.memory_space<vmem>>, vector<1x1x8x256xf32>,
    %c0_347 = arith.constant 0 : index
    %c1_348 = arith.constant 1 : index
    %c0_349 = arith.constant 0 : index
    %c0_350 = arith.constant 0 : index
    %1724 = vector.load %arg12[%c0_347, %c1_348, %c0_349, %c0_350] : memref<1x4x8x256xf32, #tpu.memory_space<vmem>>, vector<1x1x8x256xf32>
    %1725 = vector.shape_cast %1724 : vector<1x1x8x256xf32> to vector<8x256xf32>
    %1726 = vector.shape_cast %1670 : vector<8x256xf32> to vector<1x1x8x256xf32>
    tpu.vector_store %arg12[%c0_347, %c1_348, %c0_349, %c0_350], %1726 {strides = array<i32>} : memref<1x4x8x256xf32, #tpu.memory_space<vmem>>, vector<1x1x8x256xf32>,
    %c0_351 = arith.constant 0 : index
    %c2_352 = arith.constant 2 : index
    %c0_353 = arith.constant 0 : index
    %c0_354 = arith.constant 0 : index
    %1727 = vector.load %arg12[%c0_351, %c2_352, %c0_353, %c0_354] : memref<1x4x8x256xf32, #tpu.memory_space<vmem>>, vector<1x1x8x256xf32>
    %1728 = vector.shape_cast %1727 : vector<1x1x8x256xf32> to vector<8x256xf32>
    %1729 = vector.shape_cast %1695 : vector<8x256xf32> to vector<1x1x8x256xf32>
    tpu.vector_store %arg12[%c0_351, %c2_352, %c0_353, %c0_354], %1729 {strides = array<i32>} : memref<1x4x8x256xf32, #tpu.memory_space<vmem>>, vector<1x1x8x256xf32>,
    %c0_355 = arith.constant 0 : index
    %c3_356 = arith.constant 3 : index
    %c0_357 = arith.constant 0 : index
    %c0_358 = arith.constant 0 : index
    %1730 = vector.load %arg12[%c0_355, %c3_356, %c0_357, %c0_358] : memref<1x4x8x256xf32, #tpu.memory_space<vmem>>, vector<1x1x8x256xf32>
    %1731 = vector.shape_cast %1730 : vector<1x1x8x256xf32> to vector<8x256xf32>
    %1732 = vector.shape_cast %1720 : vector<8x256xf32> to vector<1x1x8x256xf32>
    tpu.vector_store %arg12[%c0_355, %c3_356, %c0_357, %c0_358], %1732 {strides = array<i32>} : memref<1x4x8x256xf32, #tpu.memory_space<vmem>>, vector<1x1x8x256xf32>,
    return
  }
  func.func @transform_0(%arg0: i32) -> (i32, i32, i32, i32) {
    %c0_i32 = arith.constant 0 : i32
    %c0_i32_0 = arith.constant 0 : i32
    %c0_i32_1 = arith.constant 0 : i32
    %c0_i32_2 = arith.constant 0 : i32
    return %arg0, %c0_i32, %c0_i32_0, %c0_i32_1 : i32, i32, i32, i32
  }
  func.func @transform_1(%arg0: i32) -> (i32, i32) {
    %c0_i32 = arith.constant 0 : i32
    %c0_i32_0 = arith.constant 0 : i32
    %c0_i32_1 = arith.constant 0 : i32
    return %c0_i32, %c0_i32_0 : i32, i32
  }
  func.func @transform_2(%arg0: i32) -> (i32, i32) {
    %c0_i32 = arith.constant 0 : i32
    %c0_i32_0 = arith.constant 0 : i32
    %c0_i32_1 = arith.constant 0 : i32
    return %c0_i32, %c0_i32_0 : i32, i32
  }
  func.func @transform_3(%arg0: i32) -> i32 {
    %c0_i32 = arith.constant 0 : i32
    %c0_i32_0 = arith.constant 0 : i32
    return %c0_i32 : i32
  }
  func.func @transform_4(%arg0: i32) -> i32 {
    %c0_i32 = arith.constant 0 : i32
    %c0_i32_0 = arith.constant 0 : i32
    return %c0_i32 : i32
  }
  func.func @transform_5(%arg0: i32) -> i32 {
    %c0_i32 = arith.constant 0 : i32
    %c0_i32_0 = arith.constant 0 : i32
    return %c0_i32 : i32
  }
  func.func @transform_6(%arg0: i32) -> i32 {
    %c0_i32 = arith.constant 0 : i32
    %c0_i32_0 = arith.constant 0 : i32
    return %c0_i32 : i32
  }
  func.func @transform_7(%arg0: i32) -> i32 {
    %c0_i32 = arith.constant 0 : i32
    %c0_i32_0 = arith.constant 0 : i32
    return %c0_i32 : i32
  }
  func.func @transform_8(%arg0: i32) -> i32 {
    %c0_i32 = arith.constant 0 : i32
    %c0_i32_0 = arith.constant 0 : i32
    return %c0_i32 : i32
  }
  func.func @transform_9(%arg0: i32) -> i32 {
    %c0_i32 = arith.constant 0 : i32
    %c0_i32_0 = arith.constant 0 : i32
    return %c0_i32 : i32
  }
  func.func @transform_10(%arg0: i32) -> i32 {
    %c0_i32 = arith.constant 0 : i32
    %c0_i32_0 = arith.constant 0 : i32
    return %c0_i32 : i32
  }
  func.func @transform_11(%arg0: i32) -> (i32, i32, i32, i32) {
    %c0_i32 = arith.constant 0 : i32
    %c0_i32_0 = arith.constant 0 : i32
    %c0_i32_1 = arith.constant 0 : i32
    %c0_i32_2 = arith.constant 0 : i32
    return %arg0, %c0_i32, %c0_i32_0, %c0_i32_1 : i32, i32, i32, i32
  }
}

</mosaic_0001>

<llo_original>
// kernel: odefunc_forward.1
$region0: #{odefunc_forward.1}
  #allocation0 [shape = 'u32[]', space=smem, size = 0x4, offset = 0x4, fixed_abs, tag = 'smem constant byte address 0x4 - core index']
  #allocation1 [shape = 'u32[144,128]{1,0:T(1,128)}', space=vmem, size = 0x12000, scoped, tag = 'internal scratch']
  %s0 = inlined_call_operand.vmem [shape: f32[2,4,8,256], index: 0, kind: input, shape index: {}]
  %s1 = inlined_call_operand.vmem [shape: f32[4,256], index: 1, kind: input, shape index: {}]
  %s2 = inlined_call_operand.vmem [shape: f32[4,256], index: 2, kind: input, shape index: {}]
  %s3 = inlined_call_operand.vmem [shape: f32[4], index: 3, kind: input, shape index: {}]
  %s4 = inlined_call_operand.vmem [shape: f32[4], index: 4, kind: input, shape index: {}]
  %s5 = inlined_call_operand.vmem [shape: f32[144], index: 5, kind: input, shape index: {}]
  %s6 = inlined_call_operand.vmem [shape: f32[4], index: 6, kind: input, shape index: {}]
  %s7 = inlined_call_operand.vmem [shape: f32[4], index: 7, kind: input, shape index: {}]
  %s8 = inlined_call_operand.vmem [shape: f32[144], index: 8, kind: input, shape index: {}]
  %s9 = inlined_call_operand.vmem [shape: f32[4], index: 9, kind: input, shape index: {}]
  %s10 = inlined_call_operand.vmem [shape: f32[4], index: 10, kind: input, shape index: {}]
  %s11 = inlined_call_operand.vmem [shape: f32[2,4,8,256], index: 11, kind: output, shape index: {}]
  %s12 = sld [smem:[#allocation0]]
  $region109: #{odefunc_forward.1} parent=0
    _
  %s14 = ssub.s32 1, %s12
  %s15 = scalar_select 0, %s14, %s12
  $region1: #{odefunc_forward.1} parent=0
    #allocation2 [shape = 'u8[512]{0}', space=smem, size = 0x200, scoped, tag = 'input window, operand 3, single buffered']
    #allocation3 [shape = 's32[2]{0}', space=sflag, size = 0x8, scoped, tag = 'scoped memory for odefunc_forward.1']
    #allocation4 [shape = 'u8[512]{0}', space=smem, size = 0x200, scoped, tag = 'input window, operand 4, single buffered']
    #allocation5 [shape = 's32[1]{0}', space=sflag, size = 0x4, scoped, tag = 'scoped memory for odefunc_forward.1']
    #allocation6 [shape = 'u8[1024]{0}', space=smem, size = 0x400, scoped, tag = 'input window, operand 5, single buffered']
    #allocation7 [shape = 'u8[512]{0}', space=smem, size = 0x200, scoped, tag = 'input window, operand 6, single buffered']
    #allocation8 [shape = 's32[1]{0}', space=sflag, size = 0x4, scoped, tag = 'scoped memory for odefunc_forward.1']
    #allocation9 [shape = 'u8[512]{0}', space=smem, size = 0x200, scoped, tag = 'input window, operand 7, single buffered']
    #allocation10 [shape = 'u8[1024]{0}', space=smem, size = 0x400, scoped, tag = 'input window, operand 8, single buffered']
    #allocation11 [shape = 's32[1]{0}', space=sflag, size = 0x4, scoped, tag = 'scoped memory for odefunc_forward.1']
    #allocation12 [shape = 'u8[512]{0}', space=smem, size = 0x200, scoped, tag = 'input window, operand 9, single buffered']
    #allocation13 [shape = 'u8[512]{0}', space=smem, size = 0x200, scoped, tag = 'input window, operand 10, single buffered']
    #allocation14 [shape = 's32[1]{0}', space=sflag, size = 0x4, scoped, tag = 'scoped memory for odefunc_forward.1']
    %16 = vsyncpa [#allocation3], 0
    %17 = vsyncpa [#allocation5], 0
    %18 = vsyncpa [#allocation8], 0
    %19 = vsyncpa [#allocation11], 0
    %20 = vsyncpa [#allocation14], 0
    loop: start=0, step=1, limit=4
    $region2: #{odefunc_forward.1} parent=1 // loop_pre_header
      _
    $region3: #{odefunc_forward.1} parent=1 // loop_header
      %s22 = sphi 0, %s26
      %p23 = scmp.ge.s32.totalorder %s22, 4
      %s32 = sphi 0, %s34
      %s35 = sphi 0, %s32
      %s36 = sphi 0, %s35
      %s52 = sphi 0, %s36
      %s56 = sphi 0, %s56
      %s58 = sphi 0, %s56
      %s59 = sphi 0, %s58
      %s73 = sphi 0, %s59
      %s77 = sphi 0, %s77
      %s79 = sphi 0, %s77
      %s80 = sphi 0, %s79
      %s94 = sphi 0, %s80
      %s98 = sphi 0, %s98
      %s100 = sphi 0, %s98
      %s101 = sphi 0, %s100
      %s115 = sphi 0, %s101
      %s119 = sphi 0, %s119
      %s121 = sphi 0, %s119
      %s122 = sphi 0, %s121
      %s136 = sphi 0, %s122
      %s140 = sphi 0, %s140
      %s142 = sphi 0, %s140
      %s143 = sphi 0, %s142
      %s157 = sphi 0, %s143
      %s161 = sphi 0, %s161
      %s163 = sphi 0, %s161
      %s164 = sphi 0, %s163
      %s178 = sphi 0, %s164
      %s182 = sphi 0, %s182
      %s184 = sphi 0, %s182
      %s185 = sphi 0, %s184
      %s199 = sphi 0, %s185
      %s203 = sphi 0, %s203
      %s205 = sphi 0, %s203
      %s206 = sphi 0, %s205
      %s220 = sphi 0, %s206
      %s224 = sphi 0, %s224
      %s226 = sphi 0, %s224
      %s227 = sphi 0, %s226
      %s241 = sphi 0, %s227
      %s245 = sphi 0, %s245
      %s247 = sphi 0, %s245
      %s248 = sphi 0, %s247
      %s262 = sphi 0, %s248
      %s268 = sphi 0, %s270
      %s271 = sphi 0, %s268
      %s272 = sphi 0, %s271
      %s288 = sphi 0, %s272
    $region4: #{odefunc_forward.1} parent=1 // loop_header_branch
      %25 = sbr.rel (%p23) target = $region8
    $region5: #{odefunc_forward.1} parent=1 // loop_body
      %s27 = ssub.s32 %s22, 1
      %s28 = ssub.s32 %s22, 2
      %s29 = sadd.s32 %s22, 1
      %s30 = ssub.s32 %s22, %s29
      %p31 = scmp.eq.s32.totalorder %s30, 0
      %s33 = sadd.s32 %s32, 1
      %s34 = scalar_select %p31, %s32, %s33
      %p37 = pneg %p31
      %p38 = scmp.eq.s32.totalorder %s22, 1
      %p39 = por %p37, %p38
      %p40 = scmp.ne.s32.totalorder %s32, %s35
      %p41 = scmp.eq.s32.totalorder %s22, 0
      %p42 = por %p40, %p41
      %p43 = scmp.ne.s32.totalorder %s32, %s35
      %p44 = scmp.eq.s32.totalorder %s27, 1
      %p45 = por %p43, %p44
      %p46 = scmp.ne.s32.totalorder %s35, %s36
      %p47 = scmp.eq.s32.totalorder %s27, 0
      %p48 = por %p46, %p47
      %p49 = scmp.ne.s32.totalorder %s35, %s36
      %p50 = scmp.eq.s32.totalorder %s28, 1
      %p51 = por %p49, %p50
      %p53 = scmp.ne.s32.totalorder %s36, %s52
      %p54 = scmp.eq.s32.totalorder %s28, 0
      %p55 = por %p53, %p54
      %s57 = sadd.s32 %s56, 1
      %p60 = scmp.eq.s32.totalorder %s22, 1
      %p61 = scmp.ne.s32.totalorder %s56, %s58
      %p62 = scmp.eq.s32.totalorder %s22, 0
      %p63 = por %p61, %p62
      %p64 = scmp.ne.s32.totalorder %s56, %s58
      %p65 = scmp.eq.s32.totalorder %s27, 1
      %p66 = por %p64, %p65
      %p67 = scmp.ne.s32.totalorder %s58, %s59
      %p68 = scmp.eq.s32.totalorder %s27, 0
      %p69 = por %p67, %p68
      %p70 = scmp.ne.s32.totalorder %s58, %s59
      %p71 = scmp.eq.s32.totalorder %s28, 1
      %p72 = por %p70, %p71
      %p74 = scmp.ne.s32.totalorder %s59, %s73
      %p75 = scmp.eq.s32.totalorder %s28, 0
      %p76 = por %p74, %p75
      %s78 = sadd.s32 %s77, 1
      %p81 = scmp.eq.s32.totalorder %s22, 1
      %p82 = scmp.ne.s32.totalorder %s77, %s79
      %p83 = scmp.eq.s32.totalorder %s22, 0
      %p84 = por %p82, %p83
      %p85 = scmp.ne.s32.totalorder %s77, %s79
      %p86 = scmp.eq.s32.totalorder %s27, 1
      %p87 = por %p85, %p86
      %p88 = scmp.ne.s32.totalorder %s79, %s80
      %p89 = scmp.eq.s32.totalorder %s27, 0
      %p90 = por %p88, %p89
      %p91 = scmp.ne.s32.totalorder %s79, %s80
      %p92 = scmp.eq.s32.totalorder %s28, 1
      %p93 = por %p91, %p92
      %p95 = scmp.ne.s32.totalorder %s80, %s94
      %p96 = scmp.eq.s32.totalorder %s28, 0
      %p97 = por %p95, %p96
      %s99 = sadd.s32 %s98, 1
      %p102 = scmp.eq.s32.totalorder %s22, 1
      %p103 = scmp.ne.s32.totalorder %s98, %s100
      %p104 = scmp.eq.s32.totalorder %s22, 0
      %p105 = por %p103, %p104
      %p106 = scmp.ne.s32.totalorder %s98, %s100
      %p107 = scmp.eq.s32.totalorder %s27, 1
      %p108 = por %p106, %p107
      %p109 = scmp.ne.s32.totalorder %s100, %s101
      %p110 = scmp.eq.s32.totalorder %s27, 0
      %p111 = por %p109, %p110
      %p112 = scmp.ne.s32.totalorder %s100, %s101
      %p113 = scmp.eq.s32.totalorder %s28, 1
      %p114 = por %p112, %p113
      %p116 = scmp.ne.s32.totalorder %s101, %s115
      %p117 = scmp.eq.s32.totalorder %s28, 0
      %p118 = por %p116, %p117
      %s120 = sadd.s32 %s119, 1
      %p123 = scmp.eq.s32.totalorder %s22, 1
      %p124 = scmp.ne.s32.totalorder %s119, %s121
      %p125 = scmp.eq.s32.totalorder %s22, 0
      %p126 = por %p124, %p125
      %p127 = scmp.ne.s32.totalorder %s119, %s121
      %p128 = scmp.eq.s32.totalorder %s27, 1
      %p129 = por %p127, %p128
      %p130 = scmp.ne.s32.totalorder %s121, %s122
      %p131 = scmp.eq.s32.totalorder %s27, 0
      %p132 = por %p130, %p131
      %p133 = scmp.ne.s32.totalorder %s121, %s122
      %p134 = scmp.eq.s32.totalorder %s28, 1
      %p135 = por %p133, %p134
      %p137 = scmp.ne.s32.totalorder %s122, %s136
      %p138 = scmp.eq.s32.totalorder %s28, 0
      %p139 = por %p137, %p138
      %s141 = sadd.s32 %s140, 1
      %p144 = scmp.eq.s32.totalorder %s22, 1
      %p145 = scmp.ne.s32.totalorder %s140, %s142
      %p146 = scmp.eq.s32.totalorder %s22, 0
      %p147 = por %p145, %p146
      %p148 = scmp.ne.s32.totalorder %s140, %s142
      %p149 = scmp.eq.s32.totalorder %s27, 1
      %p150 = por %p148, %p149
      %p151 = scmp.ne.s32.totalorder %s142, %s143
      %p152 = scmp.eq.s32.totalorder %s27, 0
      %p153 = por %p151, %p152
      %p154 = scmp.ne.s32.totalorder %s142, %s143
      %p155 = scmp.eq.s32.totalorder %s28, 1
      %p156 = por %p154, %p155
      %p158 = scmp.ne.s32.totalorder %s143, %s157
      %p159 = scmp.eq.s32.totalorder %s28, 0
      %p160 = por %p158, %p159
      %s162 = sadd.s32 %s161, 1
      %p165 = scmp.eq.s32.totalorder %s22, 1
      %p166 = scmp.ne.s32.totalorder %s161, %s163
      %p167 = scmp.eq.s32.totalorder %s22, 0
      %p168 = por %p166, %p167
      %p169 = scmp.ne.s32.totalorder %s161, %s163
      %p170 = scmp.eq.s32.totalorder %s27, 1
      %p171 = por %p169, %p170
      %p172 = scmp.ne.s32.totalorder %s163, %s164
      %p173 = scmp.eq.s32.totalorder %s27, 0
      %p174 = por %p172, %p173
      %p175 = scmp.ne.s32.totalorder %s163, %s164
      %p176 = scmp.eq.s32.totalorder %s28, 1
      %p177 = por %p175, %p176
      %p179 = scmp.ne.s32.totalorder %s164, %s178
      %p180 = scmp.eq.s32.totalorder %s28, 0
      %p181 = por %p179, %p180
      %s183 = sadd.s32 %s182, 1
      %p186 = scmp.eq.s32.totalorder %s22, 1
      %p187 = scmp.ne.s32.totalorder %s182, %s184
      %p188 = scmp.eq.s32.totalorder %s22, 0
      %p189 = por %p187, %p188
      %p190 = scmp.ne.s32.totalorder %s182, %s184
      %p191 = scmp.eq.s32.totalorder %s27, 1
      %p192 = por %p190, %p191
      %p193 = scmp.ne.s32.totalorder %s184, %s185
      %p194 = scmp.eq.s32.totalorder %s27, 0
      %p195 = por %p193, %p194
      %p196 = scmp.ne.s32.totalorder %s184, %s185
      %p197 = scmp.eq.s32.totalorder %s28, 1
      %p198 = por %p196, %p197
      %p200 = scmp.ne.s32.totalorder %s185, %s199
      %p201 = scmp.eq.s32.totalorder %s28, 0
      %p202 = por %p200, %p201
      %s204 = sadd.s32 %s203, 1
      %p207 = scmp.eq.s32.totalorder %s22, 1
      %p208 = scmp.ne.s32.totalorder %s203, %s205
      %p209 = scmp.eq.s32.totalorder %s22, 0
      %p210 = por %p208, %p209
      %p211 = scmp.ne.s32.totalorder %s203, %s205
      %p212 = scmp.eq.s32.totalorder %s27, 1
      %p213 = por %p211, %p212
      %p214 = scmp.ne.s32.totalorder %s205, %s206
      %p215 = scmp.eq.s32.totalorder %s27, 0
      %p216 = por %p214, %p215
      %p217 = scmp.ne.s32.totalorder %s205, %s206
      %p218 = scmp.eq.s32.totalorder %s28, 1
      %p219 = por %p217, %p218
      %p221 = scmp.ne.s32.totalorder %s206, %s220
      %p222 = scmp.eq.s32.totalorder %s28, 0
      %p223 = por %p221, %p222
      %s225 = sadd.s32 %s224, 1
      %p228 = scmp.eq.s32.totalorder %s22, 1
      %p229 = scmp.ne.s32.totalorder %s224, %s226
      %p230 = scmp.eq.s32.totalorder %s22, 0
      %p231 = por %p229, %p230
      %p232 = scmp.ne.s32.totalorder %s224, %s226
      %p233 = scmp.eq.s32.totalorder %s27, 1
      %p234 = por %p232, %p233
      %p235 = scmp.ne.s32.totalorder %s226, %s227
      %p236 = scmp.eq.s32.totalorder %s27, 0
      %p237 = por %p235, %p236
      %p238 = scmp.ne.s32.totalorder %s226, %s227
      %p239 = scmp.eq.s32.totalorder %s28, 1
      %p240 = por %p238, %p239
      %p242 = scmp.ne.s32.totalorder %s227, %s241
      %p243 = scmp.eq.s32.totalorder %s28, 0
      %p244 = por %p242, %p243
      %s246 = sadd.s32 %s245, 1
      %p249 = scmp.eq.s32.totalorder %s22, 1
      %p250 = scmp.ne.s32.totalorder %s245, %s247
      %p251 = scmp.eq.s32.totalorder %s22, 0
      %p252 = por %p250, %p251
      %p253 = scmp.ne.s32.totalorder %s245, %s247
      %p254 = scmp.eq.s32.totalorder %s27, 1
      %p255 = por %p253, %p254
      %p256 = scmp.ne.s32.totalorder %s247, %s248
      %p257 = scmp.eq.s32.totalorder %s27, 0
      %p258 = por %p256, %p257
      %p259 = scmp.ne.s32.totalorder %s247, %s248
      %p260 = scmp.eq.s32.totalorder %s28, 1
      %p261 = por %p259, %p260
      %p263 = scmp.ne.s32.totalorder %s248, %s262
      %p264 = scmp.eq.s32.totalorder %s28, 0
      %p265 = por %p263, %p264
      %s266 = ssub.s32 %s22, %s29
      %p267 = scmp.eq.s32.totalorder %s266, 0
      %s269 = sadd.s32 %s268, 1
      %s270 = scalar_select %p267, %s268, %s269
      %p273 = pneg %p267
      %p274 = scmp.eq.s32.totalorder %s22, 1
      %p275 = por %p273, %p274
      %p276 = scmp.ne.s32.totalorder %s268, %s271
      %p277 = scmp.eq.s32.totalorder %s22, 0
      %p278 = por %p276, %p277
      %p279 = scmp.ne.s32.totalorder %s268, %s271
      %p280 = scmp.eq.s32.totalorder %s27, 1
      %p281 = por %p279, %p280
      %p282 = scmp.ne.s32.totalorder %s271, %s272
      %p283 = scmp.eq.s32.totalorder %s27, 0
      %p284 = por %p282, %p283
      %p285 = scmp.ne.s32.totalorder %s271, %s272
      %p286 = scmp.eq.s32.totalorder %s28, 1
      %p287 = por %p285, %p286
      %p289 = scmp.ne.s32.totalorder %s272, %s288
      %p290 = scmp.eq.s32.totalorder %s28, 0
      %p291 = por %p289, %p290
      %p292 = scmp.le.s32.totalorder 1, %s22
      %p293 = scmp.lt.s32.totalorder %s22, 3
      %p294 = pnand %p292, %p293
      %p295 = pneg %p294
      // Predicated region
      $region9: #{odefunc_forward.1} parent=5 // pred_check
        _
      $region10: #{odefunc_forward.1} parent=5 // pred_check_branch
        %297 = sbr.rel (%p294) target = $region12
      $region11: #{odefunc_forward.1} parent=5 // pred_region
        %s298 = ssub.s32 %s22, 1
        // Predicated region
        $region13: #{odefunc_forward.1} parent=11 // pred_check
          %p299 = pneg %p69
        $region14: #{odefunc_forward.1} parent=11 // pred_check_branch
          %301 = sbr.rel (%p299) target = $region16
        $region15: #{odefunc_forward.1} parent=11 // pred_region
          _
        $region16: #{odefunc_forward.1} parent=11 // pred_fallthru
          _
        // Predicated region
        $region17: #{odefunc_forward.1} parent=11 // pred_check
          %p302 = pneg %p90
        $region18: #{odefunc_forward.1} parent=11 // pred_check_branch
          %304 = sbr.rel (%p302) target = $region20
        $region19: #{odefunc_forward.1} parent=11 // pred_region
          _
        $region20: #{odefunc_forward.1} parent=11 // pred_fallthru
          _
        // Predicated region
        $region21: #{odefunc_forward.1} parent=11 // pred_check
          %p305 = pneg %p111
        $region22: #{odefunc_forward.1} parent=11 // pred_check_branch
          %307 = sbr.rel (%p305) target = $region24
        $region23: #{odefunc_forward.1} parent=11 // pred_region
          %s309 = ssub.s32 16, 16
          %310 = vsyncadd [#allocation3], %s309
          %s312 = sshll.u32 %s3, 4
          %s313 = int_to_ptr.vmem [resolvable:$true] %s312
          %315 = dma.vmem_to_smem %s313, 16, [#allocation2], [#allocation3]
        $region24: #{odefunc_forward.1} parent=11 // pred_fallthru
          _
        // Predicated region
        $region25: #{odefunc_forward.1} parent=11 // pred_check
          %p316 = pneg %p132
        $region26: #{odefunc_forward.1} parent=11 // pred_check_branch
          %318 = sbr.rel (%p316) target = $region28
        $region27: #{odefunc_forward.1} parent=11 // pred_region
          %s320 = ssub.s32 16, 16
          %321 = vsyncadd [#allocation5], %s320
          %s323 = sshll.u32 %s4, 4
          %s324 = int_to_ptr.vmem [resolvable:$true] %s323
          %326 = dma.vmem_to_smem %s324, 16, [#allocation4], [#allocation5]
        $region28: #{odefunc_forward.1} parent=11 // pred_fallthru
          _
        // Predicated region
        $region29: #{odefunc_forward.1} parent=11 // pred_check
          %p327 = pneg %p153
        $region30: #{odefunc_forward.1} parent=11 // pred_check_branch
          %329 = sbr.rel (%p327) target = $region32
        $region31: #{odefunc_forward.1} parent=11 // pred_region
          %s331 = ssub.s32 32, 32
          %332 = vsyncadd [#allocation5], %s331
          %s334 = sshll.u32 %s5, 4
          %s335 = int_to_ptr.vmem [resolvable:$true] %s334
          %337 = dma.vmem_to_smem %s335, 32, [#allocation6], [#allocation5]
        $region32: #{odefunc_forward.1} parent=11 // pred_fallthru
          _
        // Predicated region
        $region33: #{odefunc_forward.1} parent=11 // pred_check
          %p338 = pneg %p174
        $region34: #{odefunc_forward.1} parent=11 // pred_check_branch
          %340 = sbr.rel (%p338) target = $region36
        $region35: #{odefunc_forward.1} parent=11 // pred_region
          %s342 = ssub.s32 16, 16
          %343 = vsyncadd [#allocation8], %s342
          %s345 = sshll.u32 %s6, 4
          %s346 = int_to_ptr.vmem [resolvable:$true] %s345
          %348 = dma.vmem_to_smem %s346, 16, [#allocation7], [#allocation8]
        $region36: #{odefunc_forward.1} parent=11 // pred_fallthru
          _
        // Predicated region
        $region37: #{odefunc_forward.1} parent=11 // pred_check
          %p349 = pneg %p195
        $region38: #{odefunc_forward.1} parent=11 // pred_check_branch
          %351 = sbr.rel (%p349) target = $region40
        $region39: #{odefunc_forward.1} parent=11 // pred_region
          %s353 = ssub.s32 16, 16
          %354 = vsyncadd [#allocation8], %s353
          %s356 = sshll.u32 %s7, 4
          %s357 = int_to_ptr.vmem [resolvable:$true] %s356
          %359 = dma.vmem_to_smem %s357, 16, [#allocation9], [#allocation8]
        $region40: #{odefunc_forward.1} parent=11 // pred_fallthru
          _
        // Predicated region
        $region41: #{odefunc_forward.1} parent=11 // pred_check
          %p360 = pneg %p216
        $region42: #{odefunc_forward.1} parent=11 // pred_check_branch
          %362 = sbr.rel (%p360) target = $region44
        $region43: #{odefunc_forward.1} parent=11 // pred_region
          %s364 = ssub.s32 32, 32
          %365 = vsyncadd [#allocation11], %s364
          %s367 = sshll.u32 %s8, 4
          %s368 = int_to_ptr.vmem [resolvable:$true] %s367
          %370 = dma.vmem_to_smem %s368, 32, [#allocation10], [#allocation11]
        $region44: #{odefunc_forward.1} parent=11 // pred_fallthru
          _
        // Predicated region
        $region45: #{odefunc_forward.1} parent=11 // pred_check
          %p371 = pneg %p237
        $region46: #{odefunc_forward.1} parent=11 // pred_check_branch
          %373 = sbr.rel (%p371) target = $region48
        $region47: #{odefunc_forward.1} parent=11 // pred_region
          %s375 = ssub.s32 16, 16
          %376 = vsyncadd [#allocation11], %s375
          %s378 = sshll.u32 %s9, 4
          %s379 = int_to_ptr.vmem [resolvable:$true] %s378
          %381 = dma.vmem_to_smem %s379, 16, [#allocation12], [#allocation11]
        $region48: #{odefunc_forward.1} parent=11 // pred_fallthru
          _
        // Predicated region
        $region49: #{odefunc_forward.1} parent=11 // pred_check
          %p382 = pneg %p258
        $region50: #{odefunc_forward.1} parent=11 // pred_check_branch
          %384 = sbr.rel (%p382) target = $region52
        $region51: #{odefunc_forward.1} parent=11 // pred_region
          %s386 = ssub.s32 16, 16
          %387 = vsyncadd [#allocation14], %s386
          %s389 = sshll.u32 %s10, 4
          %s390 = int_to_ptr.vmem [resolvable:$true] %s389
          %392 = dma.vmem_to_smem %s390, 16, [#allocation13], [#allocation14]
        $region52: #{odefunc_forward.1} parent=11 // pred_fallthru
          _
      $region12: #{odefunc_forward.1} parent=5 // pred_fallthru
        _
      %p393 = scmp.lt.s32.totalorder %s22, 2
      // Predicated region
      $region53: #{odefunc_forward.1} parent=5 // pred_check
        %p394 = pneg %p393
      $region54: #{odefunc_forward.1} parent=5 // pred_check_branch
        %396 = sbr.rel (%p394) target = $region56
      $region55: #{odefunc_forward.1} parent=5 // pred_region
        // Predicated region
        $region57: #{odefunc_forward.1} parent=55 // pred_check
          %p397 = pneg %p42
        $region58: #{odefunc_forward.1} parent=55 // pred_check_branch
          %399 = sbr.rel (%p397) target = $region60
        $region59: #{odefunc_forward.1} parent=55 // pred_region
          %p400 = scmp.lt.s32.totalorder %s22, 1
          %s401 = scalar_select %p400, %s22, 1
          %s402 = smul.addr %s401, 8
          %s403 = smul.addr %s402, 8
          %s404 = scalar_lea.vmem %s0, %s403
        $region60: #{odefunc_forward.1} parent=55 // pred_fallthru
          _
      $region56: #{odefunc_forward.1} parent=5 // pred_fallthru
        _
      %p405 = scmp.le.s32.totalorder 1, %s22
      %p406 = scmp.lt.s32.totalorder %s22, 3
      %p407 = pnand %p405, %p406
      %p408 = pneg %p407
      // Predicated region
      $region61: #{odefunc_forward.1} parent=5 // pred_check
        _
      $region62: #{odefunc_forward.1} parent=5 // pred_check_branch
        %410 = sbr.rel (%p407) target = $region64
      $region63: #{odefunc_forward.1} parent=5 // pred_region
        %s411 = ssub.s32 %s22, 1
        // Predicated region
        $region65: #{odefunc_forward.1} parent=63 // pred_check
          %p412 = pneg %p111
        $region66: #{odefunc_forward.1} parent=63 // pred_check_branch
          %414 = sbr.rel (%p412) target = $region68
        $region67: #{odefunc_forward.1} parent=63 // pred_region
          %415 = dma.done [#allocation3], 16
        $region68: #{odefunc_forward.1} parent=63 // pred_fallthru
          _
        // Predicated region
        $region69: #{odefunc_forward.1} parent=63 // pred_check
          %p416 = pneg %p132
        $region70: #{odefunc_forward.1} parent=63 // pred_check_branch
          %418 = sbr.rel (%p416) target = $region72
        $region71: #{odefunc_forward.1} parent=63 // pred_region
          %419 = dma.done [#allocation5], 16
        $region72: #{odefunc_forward.1} parent=63 // pred_fallthru
          _
        // Predicated region
        $region73: #{odefunc_forward.1} parent=63 // pred_check
          %p420 = pneg %p153
        $region74: #{odefunc_forward.1} parent=63 // pred_check_branch
          %422 = sbr.rel (%p420) target = $region76
        $region75: #{odefunc_forward.1} parent=63 // pred_region
          %423 = dma.done [#allocation5], 32
        $region76: #{odefunc_forward.1} parent=63 // pred_fallthru
          _
        // Predicated region
        $region77: #{odefunc_forward.1} parent=63 // pred_check
          %p424 = pneg %p174
        $region78: #{odefunc_forward.1} parent=63 // pred_check_branch
          %426 = sbr.rel (%p424) target = $region80
        $region79: #{odefunc_forward.1} parent=63 // pred_region
          %427 = dma.done [#allocation8], 16
        $region80: #{odefunc_forward.1} parent=63 // pred_fallthru
          _
        // Predicated region
        $region81: #{odefunc_forward.1} parent=63 // pred_check
          %p428 = pneg %p195
        $region82: #{odefunc_forward.1} parent=63 // pred_check_branch
          %430 = sbr.rel (%p428) target = $region84
        $region83: #{odefunc_forward.1} parent=63 // pred_region
          %431 = dma.done [#allocation8], 16
        $region84: #{odefunc_forward.1} parent=63 // pred_fallthru
          _
        // Predicated region
        $region85: #{odefunc_forward.1} parent=63 // pred_check
          %p432 = pneg %p216
        $region86: #{odefunc_forward.1} parent=63 // pred_check_branch
          %434 = sbr.rel (%p432) target = $region88
        $region87: #{odefunc_forward.1} parent=63 // pred_region
          %435 = dma.done [#allocation11], 32
        $region88: #{odefunc_forward.1} parent=63 // pred_fallthru
          _
        // Predicated region
        $region89: #{odefunc_forward.1} parent=63 // pred_check
          %p436 = pneg %p237
        $region90: #{odefunc_forward.1} parent=63 // pred_check_branch
          %438 = sbr.rel (%p436) target = $region92
        $region91: #{odefunc_forward.1} parent=63 // pred_region
          %439 = dma.done [#allocation11], 16
        $region92: #{odefunc_forward.1} parent=63 // pred_fallthru
          _
        // Predicated region
        $region93: #{odefunc_forward.1} parent=63 // pred_check
          %p440 = pneg %p258
        $region94: #{odefunc_forward.1} parent=63 // pred_check_branch
          %442 = sbr.rel (%p440) target = $region96
        $region95: #{odefunc_forward.1} parent=63 // pred_region
          %443 = dma.done [#allocation14], 16
        $region96: #{odefunc_forward.1} parent=63 // pred_fallthru
          _
        %444 = sfence
        %p445 = scmp.lt.s32.totalorder %s27, 1
        %s446 = scalar_select %p445, %s27, 1
        %s447 = smul.addr %s446, 8
        %s448 = smul.addr %s447, 8
        %s449 = scalar_lea.vmem %s0, %s448
        %p450 = pneg %p48
        %p451 = pneg %p45
        %p452 = pneg %p69
        %p453 = pneg %p66
        %p454 = pneg %p90
        %p455 = pneg %p87
        %p456 = pneg %p111
        %p457 = pneg %p108
        %p458 = pneg %p132
        %p459 = pneg %p129
        %p460 = pneg %p153
        %p461 = pneg %p150
        %p462 = pneg %p174
        %p463 = pneg %p171
        %p464 = pneg %p195
        %p465 = pneg %p192
        %p466 = pneg %p216
        %p467 = pneg %p213
        %p468 = pneg %p237
        %p469 = pneg %p234
        %p470 = pneg %p258
        %p471 = pneg %p255
        %p472 = pneg %p284
        %p473 = pneg %p281
        %p474 = scmp.lt.s32.totalorder %s27, 1
        %s475 = scalar_select %p474, %s27, 1
        %s476 = smul.addr %s475, 8
        %s477 = smul.addr %s476, 8
        %s478 = scalar_lea.vmem %s11, %s477
        %p479 = scmp.lt.s32.totalorder %s27, 1
        %s480 = scalar_select %p479, %s27, 1
        %s481 = smul.addr %s480, 8
        %s482 = smul.addr %s481, 8
        %s483 = scalar_lea.vmem %s0, %s482
        %p484 = scmp.lt.s32.totalorder %s27, 1
        %s485 = scalar_select %p484, %s27, 1
        %s486 = smul.addr %s485, 8
        %s487 = smul.addr %s486, 8
        %s488 = scalar_lea.vmem %s11, %s487
        %v489 = vlaneseq
        %v490 = vand.u32 %v489, 127
        %v491 = vadd.s32 %v490, 128
        %vm492 = vcmp.lt.s32.totalorder %v490, 0
        %v493 = vsub.s32 0, %v490
        %v494 = vsel %vm492, %v493, %v490
        %v495 = vshrl.u32 %v494, 4
        %v496 = vand.u32 %v494, 15
        %v497 = vsub.s32 0, %v496
        %v498 = vsel %vm492, %v497, %v496
        %vm499 = vcmp.lt.s32.totalorder %v491, 0
        %v500 = vsub.s32 0, %v491
        %v501 = vsel %vm499, %v500, %v491
        %v502 = vshrl.u32 %v501, 4
        %v503 = vand.u32 %v501, 15
        %v504 = vsub.s32 0, %v503
        %v505 = vsel %vm499, %v504, %v503
        %vm506 = vcmp.ne.s32.totalorder %v498, 0
        %vm507 = vcmp.ne.s32.totalorder %v505, 0
        %vm508 = vcmp.lt.s32.totalorder %v498, 0
        %vm509 = vcmp.lt.s32.totalorder %v505, 0
        %vm510 = vmand %vm508, %vm506
        %vm511 = vmand %vm509, %vm507
        %v512 = vadd.s32 %v498, 16
        %v513 = vadd.s32 %v505, 16
        %v514 = vsel %vm510, %v512, %v498
        %v515 = vsel %vm511, %v513, %v505
        %vm516 = vcmp.lt.s32.totalorder %v514, 15
        %vm517 = vcmp.lt.s32.totalorder %v515, 15
        %v518 = vsel %vm516, 1.0, 0.0
        %v519 = vsel %vm517, 1.0, 0.0
        %vm520 = vcmp.gt.s32.totalorder %v514, 0
        %vm521 = vcmp.gt.s32.totalorder %v515, 0
        %v522 = vsel %vm520, 1.0, 0.0
        %v523 = vsel %vm521, 1.0, 0.0
        %vm524 = vcmp.lt.s32.totalorder %v490, 240
        %vm525 = vcmp.lt.s32.totalorder %v491, 240
        %v526 = vsel %vm524, 1.0, 0.0
        %v527 = vsel %vm525, 1.0, 0.0
        %vm528 = vcmp.ge.s32.totalorder %v490, 16
        %vm529 = vcmp.ge.s32.totalorder %v491, 16
        %v530 = vsel %vm528, 1.0, 0.0
        %v531 = vsel %vm529, 1.0, 0.0
        %v532 = vld [vmem:[%s483] sm:$0xff]
        %v533 = vld [vmem:[%s483 + $0x8] sm:$0xff]
        %s534 = scalar_lea.vmem %s483, 16
        %v535 = vld [vmem:[%s534] sm:$0xff]
        %v536 = vld [vmem:[%s534 + $0x8] sm:$0xff]
        %s537 = scalar_lea.vmem %s483, 32
        %v538 = vld [vmem:[%s537] sm:$0xff]
        %v539 = vld [vmem:[%s537 + $0x8] sm:$0xff]
        %s540 = scalar_lea.vmem %s483, 48
        %v541 = vld [vmem:[%s540] sm:$0xff]
        %v542 = vld [vmem:[%s540 + $0x8] sm:$0xff]
        %v543 = vadd.f32 %v532, %v533
        %544 = vadd.xlane.f32.xlu0 %v543
        %v545 = vpop.xlane.xlu0 %544
        %v546 = vmul.f32 %v532, %v532
        %v547 = vmul.f32 %v533, %v533
        %v548 = vadd.f32 %v546, %v547
        %549 = vadd.xlane.f32.xlu0 %v548
        %v550 = vpop.xlane.xlu0 %549
        %v551 = vmul.f32 %v545, 0.00390625
        %v552 = vmul.f32 %v550, 0.00390625
        %v553 = vmul.f32 %v551, %v551
        %v554 = vsub.f32 %v552, %v553
        %v555 = vadd.f32 %v554, 1e-05
        %v556 = vrsqrt.pop %v555
        %s557 = sld [smem:[#allocation2]]
        %v558 = vstv %s557
        %v559 = vmul.f32 %v556, %v558
        %s560 = sld [smem:[#allocation4]]
        %v561 = vmul.f32 %v551, %v559
        %v562 = vstv %s560
        %v563 = vsub.f32 %v562, %v561
        %v564 = vmul.f32 %v532, %v559
        %v565 = vmul.f32 %v533, %v559
        %v566 = vadd.f32 %v564, %v563
        %v567 = vadd.f32 %v565, %v563
        %v568 = vmax.f32 %v566, 0.0
        %v569 = vmax.f32 %v567, 0.0
        %v570 = vadd.f32 %v535, %v536
        %571 = vadd.xlane.f32.xlu0 %v570
        %v572 = vpop.xlane.xlu0 %571
        %v573 = vmul.f32 %v535, %v535
        %v574 = vmul.f32 %v536, %v536
        %v575 = vadd.f32 %v573, %v574
        %576 = vadd.xlane.f32.xlu0 %v575
        %v577 = vpop.xlane.xlu0 %576
        %v578 = vmul.f32 %v572, 0.00390625
        %v579 = vmul.f32 %v577, 0.00390625
        %v580 = vmul.f32 %v578, %v578
        %v581 = vsub.f32 %v579, %v580
        %v582 = vadd.f32 %v581, 1e-05
        %v583 = vrsqrt.pop %v582
        %s584 = sld [smem:[#allocation2 + $0x1]]
        %v585 = vstv %s584
        %v586 = vmul.f32 %v583, %v585
        %s587 = sld [smem:[#allocation4 + $0x1]]
        %v588 = vmul.f32 %v578, %v586
        %v589 = vstv %s587
        %v590 = vsub.f32 %v589, %v588
        %v591 = vmul.f32 %v535, %v586
        %v592 = vmul.f32 %v536, %v586
        %v593 = vadd.f32 %v591, %v590
        %v594 = vadd.f32 %v592, %v590
        %v595 = vmax.f32 %v593, 0.0
        %v596 = vmax.f32 %v594, 0.0
        %v597 = vadd.f32 %v538, %v539
        %598 = vadd.xlane.f32.xlu0 %v597
        %v599 = vpop.xlane.xlu0 %598
        %v600 = vmul.f32 %v538, %v538
        %v601 = vmul.f32 %v539, %v539
        %v602 = vadd.f32 %v600, %v601
        %603 = vadd.xlane.f32.xlu0 %v602
        %v604 = vpop.xlane.xlu0 %603
        %v605 = vmul.f32 %v599, 0.00390625
        %v606 = vmul.f32 %v604, 0.00390625
        %v607 = vmul.f32 %v605, %v605
        %v608 = vsub.f32 %v606, %v607
        %v609 = vadd.f32 %v608, 1e-05
        %v610 = vrsqrt.pop %v609
        %s611 = sld [smem:[#allocation2 + $0x2]]
        %v612 = vstv %s611
        %v613 = vmul.f32 %v610, %v612
        %s614 = sld [smem:[#allocation4 + $0x2]]
        %v615 = vmul.f32 %v605, %v613
        %v616 = vstv %s614
        %v617 = vsub.f32 %v616, %v615
        %v618 = vmul.f32 %v538, %v613
        %v619 = vmul.f32 %v539, %v613
        %v620 = vadd.f32 %v618, %v617
        %v621 = vadd.f32 %v619, %v617
        %v622 = vmax.f32 %v620, 0.0
        %v623 = vmax.f32 %v621, 0.0
        %v624 = vadd.f32 %v541, %v542
        %625 = vadd.xlane.f32.xlu0 %v624
        %v626 = vpop.xlane.xlu0 %625
        %v627 = vmul.f32 %v541, %v541
        %v628 = vmul.f32 %v542, %v542
        %v629 = vadd.f32 %v627, %v628
        %630 = vadd.xlane.f32.xlu0 %v629
        %v631 = vpop.xlane.xlu0 %630
        %v632 = vmul.f32 %v626, 0.00390625
        %v633 = vmul.f32 %v631, 0.00390625
        %v634 = vmul.f32 %v632, %v632
        %v635 = vsub.f32 %v633, %v634
        %v636 = vadd.f32 %v635, 1e-05
        %v637 = vrsqrt.pop %v636
        %s638 = sld [smem:[#allocation2 + $0x3]]
        %v639 = vstv %s638
        %v640 = vmul.f32 %v637, %v639
        %s641 = sld [smem:[#allocation4 + $0x3]]
        %v642 = vmul.f32 %v632, %v640
        %v643 = vstv %s641
        %v644 = vsub.f32 %v643, %v642
        %v645 = vmul.f32 %v541, %v640
        %v646 = vmul.f32 %v542, %v640
        %v647 = vadd.f32 %v645, %v644
        %v648 = vadd.f32 %v646, %v644
        %v649 = vmax.f32 %v647, 0.0
        %v650 = vmax.f32 %v648, 0.0
        %v651 = vld [vmem:[%s1] ss:$4 sm:$0x3]
        %s652 = scalar_lea.vmem %s1, 1
        %v653 = vld [vmem:[%s652] ss:$4 sm:$0x3]
        %s654 = scalar_lea.vmem %s1, 2
        %v655 = vld [vmem:[%s654] ss:$4 sm:$0x3]
        %s656 = scalar_lea.vmem %s1, 3
        %v657 = vld [vmem:[%s656] ss:$4 sm:$0x3]
        %658 = vrot.lane.b32.xlu0 %v568, 16
        %v659 = vpop.permute.xlu0 %658
        %660 = vrot.lane.b32.xlu0 %v569, 16
        %v661 = vpop.permute.xlu0 %660
        %vm662 = vcmp.lt.s32.totalorder %v490, 16
        %v663 = vsel %vm662, %v659, %v661
        %v664 = vsel %vm662, %v661, %v659
        %v665 = vmul.f32 %v664, %v530
        %v666 = vmul.f32 %v663, %v531
        %667 = vrot.lane.b32.xlu0 %v568, 112
        %v668 = vpop.permute.xlu0 %667
        %669 = vrot.lane.b32.xlu0 %v569, 112
        %v670 = vpop.permute.xlu0 %669
        %vm671 = vcmp.lt.s32.totalorder %v490, 112
        %v672 = vsel %vm671, %v668, %v670
        %v673 = vsel %vm671, %v670, %v668
        %v674 = vmul.f32 %v672, %v526
        %v675 = vmul.f32 %v673, %v527
        %676 = vrot.lane.b32.xlu0 %v665, 1
        %v677 = vpop.permute.xlu0 %676
        %678 = vrot.lane.b32.xlu0 %v666, 1
        %v679 = vpop.permute.xlu0 %678
        %vm680 = vcmp.lt.s32.totalorder %v490, 1
        %v681 = vsel %vm680, %v677, %v679
        %v682 = vsel %vm680, %v679, %v677
        %v683 = vmul.f32 %v682, %v522
        %v684 = vmul.f32 %v681, %v523
        %685 = vrot.lane.b32.xlu0 %v665, 127
        %v686 = vpop.permute.xlu0 %685
        %687 = vrot.lane.b32.xlu0 %v666, 127
        %v688 = vpop.permute.xlu0 %687
        %vm689 = vcmp.lt.s32.totalorder %v490, 127
        %v690 = vsel %vm689, %v686, %v688
        %v691 = vsel %vm689, %v688, %v686
        %v692 = vmul.f32 %v690, %v518
        %v693 = vmul.f32 %v691, %v519
        %s694 = sld [smem:[#allocation6]]
        %v695 = vstv %s694
        %v696 = vmul.f32 %v695, %v683
        %v697 = vmul.f32 %v695, %v684
        %v699 = vlaneseq
        %v700 = vshrl.u32 %v699, 7
        %v701 = vsub.s32 0, %v700
        %v702 = vrot.slane %v651, %v701
        %v703 = vlaneseq
        %v704 = vshrl.u32 %v703, 7
        %v705 = vsub.s32 1, %v704
        %v706 = vrot.slane %v651, %v705
        %v709 = vadd.f32 %v702, %v696
        %v710 = vadd.f32 %v706, %v697
        %s711 = sld [smem:[#allocation6 + $0x24]]
        %v712 = vstv %s711
        %v713 = vmul.f32 %v712, %v683
        %v714 = vmul.f32 %v712, %v684
        %v716 = vlaneseq
        %v717 = vshrl.u32 %v716, 7
        %v718 = vsub.s32 0, %v717
        %v719 = vrot.slane %v653, %v718
        %v720 = vlaneseq
        %v721 = vshrl.u32 %v720, 7
        %v722 = vsub.s32 1, %v721
        %v723 = vrot.slane %v653, %v722
        %v726 = vadd.f32 %v719, %v713
        %v727 = vadd.f32 %v723, %v714
        %s728 = sld [smem:[#allocation6 + $0x48]]
        %v729 = vstv %s728
        %v730 = vmul.f32 %v729, %v683
        %v731 = vmul.f32 %v729, %v684
        %v733 = vlaneseq
        %v734 = vshrl.u32 %v733, 7
        %v735 = vsub.s32 0, %v734
        %v736 = vrot.slane %v655, %v735
        %v737 = vlaneseq
        %v738 = vshrl.u32 %v737, 7
        %v739 = vsub.s32 1, %v738
        %v740 = vrot.slane %v655, %v739
        %v743 = vadd.f32 %v736, %v730
        %v744 = vadd.f32 %v740, %v731
        %s745 = sld [smem:[#allocation6 + $0x6c]]
        %v746 = vstv %s745
        %v747 = vmul.f32 %v746, %v683
        %v748 = vmul.f32 %v746, %v684
        %v750 = vlaneseq
        %v751 = vshrl.u32 %v750, 7
        %v752 = vsub.s32 0, %v751
        %v753 = vrot.slane %v657, %v752
        %v754 = vlaneseq
        %v755 = vshrl.u32 %v754, 7
        %v756 = vsub.s32 1, %v755
        %v757 = vrot.slane %v657, %v756
        %v760 = vadd.f32 %v753, %v747
        %v761 = vadd.f32 %v757, %v748
        %s762 = sld [smem:[#allocation6 + $0x1]]
        %v763 = vstv %s762
        %v764 = vmul.f32 %v763, %v665
        %v765 = vmul.f32 %v763, %v666
        %v766 = vadd.f32 %v709, %v764
        %v767 = vadd.f32 %v710, %v765
        %s768 = sld [smem:[#allocation6 + $0x25]]
        %v769 = vstv %s768
        %v770 = vmul.f32 %v769, %v665
        %v771 = vmul.f32 %v769, %v666
        %v772 = vadd.f32 %v726, %v770
        %v773 = vadd.f32 %v727, %v771
        %s774 = sld [smem:[#allocation6 + $0x49]]
        %v775 = vstv %s774
        %v776 = vmul.f32 %v775, %v665
        %v777 = vmul.f32 %v775, %v666
        %v778 = vadd.f32 %v743, %v776
        %v779 = vadd.f32 %v744, %v777
        %s780 = sld [smem:[#allocation6 + $0x6d]]
        %v781 = vstv %s780
        %v782 = vmul.f32 %v781, %v665
        %v783 = vmul.f32 %v781, %v666
        %v784 = vadd.f32 %v760, %v782
        %v785 = vadd.f32 %v761, %v783
        %s786 = sld [smem:[#allocation6 + $0x2]]
        %v787 = vstv %s786
        %v788 = vmul.f32 %v787, %v692
        %v789 = vmul.f32 %v787, %v693
        %v790 = vadd.f32 %v766, %v788
        %v791 = vadd.f32 %v767, %v789
        %s792 = sld [smem:[#allocation6 + $0x26]]
        %v793 = vstv %s792
        %v794 = vmul.f32 %v793, %v692
        %v795 = vmul.f32 %v793, %v693
        %v796 = vadd.f32 %v772, %v794
        %v797 = vadd.f32 %v773, %v795
        %s798 = sld [smem:[#allocation6 + $0x4a]]
        %v799 = vstv %s798
        %v800 = vmul.f32 %v799, %v692
        %v801 = vmul.f32 %v799, %v693
        %v802 = vadd.f32 %v778, %v800
        %v803 = vadd.f32 %v779, %v801
        %s804 = sld [smem:[#allocation6 + $0x6e]]
        %v805 = vstv %s804
        %v806 = vmul.f32 %v805, %v692
        %v807 = vmul.f32 %v805, %v693
        %v808 = vadd.f32 %v784, %v806
        %v809 = vadd.f32 %v785, %v807
        %810 = vrot.lane.b32.xlu0 %v568, 1
        %v811 = vpop.permute.xlu0 %810
        %812 = vrot.lane.b32.xlu0 %v569, 1
        %v813 = vpop.permute.xlu0 %812
        %v814 = vsel %vm680, %v811, %v813
        %v815 = vsel %vm680, %v813, %v811
        %v816 = vmul.f32 %v815, %v522
        %v817 = vmul.f32 %v814, %v523
        %818 = vrot.lane.b32.xlu0 %v568, 127
        %v819 = vpop.permute.xlu0 %818
        %820 = vrot.lane.b32.xlu0 %v569, 127
        %v821 = vpop.permute.xlu0 %820
        %v822 = vsel %vm689, %v819, %v821
        %v823 = vsel %vm689, %v821, %v819
        %v824 = vmul.f32 %v822, %v518
        %v825 = vmul.f32 %v823, %v519
        %s826 = sld [smem:[#allocation6 + $0x3]]
        %v827 = vstv %s826
        %v828 = vmul.f32 %v827, %v816
        %v829 = vmul.f32 %v827, %v817
        %v830 = vadd.f32 %v790, %v828
        %v831 = vadd.f32 %v791, %v829
        %s832 = sld [smem:[#allocation6 + $0x27]]
        %v833 = vstv %s832
        %v834 = vmul.f32 %v833, %v816
        %v835 = vmul.f32 %v833, %v817
        %v836 = vadd.f32 %v796, %v834
        %v837 = vadd.f32 %v797, %v835
        %s838 = sld [smem:[#allocation6 + $0x4b]]
        %v839 = vstv %s838
        %v840 = vmul.f32 %v839, %v816
        %v841 = vmul.f32 %v839, %v817
        %v842 = vadd.f32 %v802, %v840
        %v843 = vadd.f32 %v803, %v841
        %s844 = sld [smem:[#allocation6 + $0x6f]]
        %v845 = vstv %s844
        %v846 = vmul.f32 %v845, %v816
        %v847 = vmul.f32 %v845, %v817
        %v848 = vadd.f32 %v808, %v846
        %v849 = vadd.f32 %v809, %v847
        %s850 = sld [smem:[#allocation6 + $0x4]]
        %v851 = vstv %s850
        %v852 = vmul.f32 %v851, %v568
        %v853 = vmul.f32 %v851, %v569
        %v854 = vadd.f32 %v830, %v852
        %v855 = vadd.f32 %v831, %v853
        %s856 = sld [smem:[#allocation6 + $0x28]]
        %v857 = vstv %s856
        %v858 = vmul.f32 %v857, %v568
        %v859 = vmul.f32 %v857, %v569
        %v860 = vadd.f32 %v836, %v858
        %v861 = vadd.f32 %v837, %v859
        %s862 = sld [smem:[#allocation6 + $0x4c]]
        %v863 = vstv %s862
        %v864 = vmul.f32 %v863, %v568
        %v865 = vmul.f32 %v863, %v569
        %v866 = vadd.f32 %v842, %v864
        %v867 = vadd.f32 %v843, %v865
        %s868 = sld [smem:[#allocation6 + $0x70]]
        %v869 = vstv %s868
        %v870 = vmul.f32 %v869, %v568
        %v871 = vmul.f32 %v869, %v569
        %v872 = vadd.f32 %v848, %v870
        %v873 = vadd.f32 %v849, %v871
        %s874 = sld [smem:[#allocation6 + $0x5]]
        %v875 = vstv %s874
        %v876 = vmul.f32 %v875, %v824
        %v877 = vmul.f32 %v875, %v825
        %v878 = vadd.f32 %v854, %v876
        %v879 = vadd.f32 %v855, %v877
        %s880 = sld [smem:[#allocation6 + $0x29]]
        %v881 = vstv %s880
        %v882 = vmul.f32 %v881, %v824
        %v883 = vmul.f32 %v881, %v825
        %v884 = vadd.f32 %v860, %v882
        %v885 = vadd.f32 %v861, %v883
        %s886 = sld [smem:[#allocation6 + $0x4d]]
        %v887 = vstv %s886
        %v888 = vmul.f32 %v887, %v824
        %v889 = vmul.f32 %v887, %v825
        %v890 = vadd.f32 %v866, %v888
        %v891 = vadd.f32 %v867, %v889
        %s892 = sld [smem:[#allocation6 + $0x71]]
        %v893 = vstv %s892
        %v894 = vmul.f32 %v893, %v824
        %v895 = vmul.f32 %v893, %v825
        %v896 = vadd.f32 %v872, %v894
        %v897 = vadd.f32 %v873, %v895
        %898 = vrot.lane.b32.xlu0 %v674, 1
        %v899 = vpop.permute.xlu0 %898
        %900 = vrot.lane.b32.xlu0 %v675, 1
        %v901 = vpop.permute.xlu0 %900
        %v902 = vsel %vm680, %v899, %v901
        %v903 = vsel %vm680, %v901, %v899
        %v904 = vmul.f32 %v903, %v522
        %v905 = vmul.f32 %v902, %v523
        %906 = vrot.lane.b32.xlu0 %v674, 127
        %v907 = vpop.permute.xlu0 %906
        %908 = vrot.lane.b32.xlu0 %v675, 127
        %v909 = vpop.permute.xlu0 %908
        %v910 = vsel %vm689, %v907, %v909
        %v911 = vsel %vm689, %v909, %v907
        %v912 = vmul.f32 %v910, %v518
        %v913 = vmul.f32 %v911, %v519
        %s914 = sld [smem:[#allocation6 + $0x6]]
        %v915 = vstv %s914
        %v916 = vmul.f32 %v915, %v904
        %v917 = vmul.f32 %v915, %v905
        %v918 = vadd.f32 %v878, %v916
        %v919 = vadd.f32 %v879, %v917
        %s920 = sld [smem:[#allocation6 + $0x2a]]
        %v921 = vstv %s920
        %v922 = vmul.f32 %v921, %v904
        %v923 = vmul.f32 %v921, %v905
        %v924 = vadd.f32 %v884, %v922
        %v925 = vadd.f32 %v885, %v923
        %s926 = sld [smem:[#allocation6 + $0x4e]]
        %v927 = vstv %s926
        %v928 = vmul.f32 %v927, %v904
        %v929 = vmul.f32 %v927, %v905
        %v930 = vadd.f32 %v890, %v928
        %v931 = vadd.f32 %v891, %v929
        %s932 = sld [smem:[#allocation6 + $0x72]]
        %v933 = vstv %s932
        %v934 = vmul.f32 %v933, %v904
        %v935 = vmul.f32 %v933, %v905
        %v936 = vadd.f32 %v896, %v934
        %v937 = vadd.f32 %v897, %v935
        %s938 = sld [smem:[#allocation6 + $0x7]]
        %v939 = vstv %s938
        %v940 = vmul.f32 %v939, %v674
        %v941 = vmul.f32 %v939, %v675
        %v942 = vadd.f32 %v918, %v940
        %v943 = vadd.f32 %v919, %v941
        %s944 = sld [smem:[#allocation6 + $0x2b]]
        %v945 = vstv %s944
        %v946 = vmul.f32 %v945, %v674
        %v947 = vmul.f32 %v945, %v675
        %v948 = vadd.f32 %v924, %v946
        %v949 = vadd.f32 %v925, %v947
        %s950 = sld [smem:[#allocation6 + $0x4f]]
        %v951 = vstv %s950
        %v952 = vmul.f32 %v951, %v674
        %v953 = vmul.f32 %v951, %v675
        %v954 = vadd.f32 %v930, %v952
        %v955 = vadd.f32 %v931, %v953
        %s956 = sld [smem:[#allocation6 + $0x73]]
        %v957 = vstv %s956
        %v958 = vmul.f32 %v957, %v674
        %v959 = vmul.f32 %v957, %v675
        %v960 = vadd.f32 %v936, %v958
        %v961 = vadd.f32 %v937, %v959
        %s962 = sld [smem:[#allocation6 + $0x8]]
        %v963 = vstv %s962
        %v964 = vmul.f32 %v963, %v912
        %v965 = vmul.f32 %v963, %v913
        %v966 = vadd.f32 %v942, %v964
        %v967 = vadd.f32 %v943, %v965
        %s968 = sld [smem:[#allocation6 + $0x2c]]
        %v969 = vstv %s968
        %v970 = vmul.f32 %v969, %v912
        %v971 = vmul.f32 %v969, %v913
        %v972 = vadd.f32 %v948, %v970
        %v973 = vadd.f32 %v949, %v971
        %s974 = sld [smem:[#allocation6 + $0x50]]
        %v975 = vstv %s974
        %v976 = vmul.f32 %v975, %v912
        %v977 = vmul.f32 %v975, %v913
        %v978 = vadd.f32 %v954, %v976
        %v979 = vadd.f32 %v955, %v977
        %s980 = sld [smem:[#allocation6 + $0x74]]
        %v981 = vstv %s980
        %v982 = vmul.f32 %v981, %v912
        %v983 = vmul.f32 %v981, %v913
        %v984 = vadd.f32 %v960, %v982
        %v985 = vadd.f32 %v961, %v983
        %986 = vrot.lane.b32.xlu0 %v595, 16
        %v987 = vpop.permute.xlu0 %986
        %988 = vrot.lane.b32.xlu0 %v596, 16
        %v989 = vpop.permute.xlu0 %988
        %v990 = vsel %vm662, %v987, %v989
        %v991 = vsel %vm662, %v989, %v987
        %v992 = vmul.f32 %v991, %v530
        %v993 = vmul.f32 %v990, %v531
        %994 = vrot.lane.b32.xlu0 %v595, 112
        %v995 = vpop.permute.xlu0 %994
        %996 = vrot.lane.b32.xlu0 %v596, 112
        %v997 = vpop.permute.xlu0 %996
        %v998 = vsel %vm671, %v995, %v997
        %v999 = vsel %vm671, %v997, %v995
        %v1000 = vmul.f32 %v998, %v526
        %v1001 = vmul.f32 %v999, %v527
        %1002 = vrot.lane.b32.xlu0 %v992, 1
        %v1003 = vpop.permute.xlu0 %1002
        %1004 = vrot.lane.b32.xlu0 %v993, 1
        %v1005 = vpop.permute.xlu0 %1004
        %v1006 = vsel %vm680, %v1003, %v1005
        %v1007 = vsel %vm680, %v1005, %v1003
        %v1008 = vmul.f32 %v1007, %v522
        %v1009 = vmul.f32 %v1006, %v523
        %1010 = vrot.lane.b32.xlu0 %v992, 127
        %v1011 = vpop.permute.xlu0 %1010
        %1012 = vrot.lane.b32.xlu0 %v993, 127
        %v1013 = vpop.permute.xlu0 %1012
        %v1014 = vsel %vm689, %v1011, %v1013
        %v1015 = vsel %vm689, %v1013, %v1011
        %v1016 = vmul.f32 %v1014, %v518
        %v1017 = vmul.f32 %v1015, %v519
        %s1018 = sld [smem:[#allocation6 + $0x9]]
        %v1019 = vstv %s1018
        %v1020 = vmul.f32 %v1019, %v1008
        %v1021 = vmul.f32 %v1019, %v1009
        %v1022 = vadd.f32 %v966, %v1020
        %v1023 = vadd.f32 %v967, %v1021
        %s1024 = sld [smem:[#allocation6 + $0x2d]]
        %v1025 = vstv %s1024
        %v1026 = vmul.f32 %v1025, %v1008
        %v1027 = vmul.f32 %v1025, %v1009
        %v1028 = vadd.f32 %v972, %v1026
        %v1029 = vadd.f32 %v973, %v1027
        %s1030 = sld [smem:[#allocation6 + $0x51]]
        %v1031 = vstv %s1030
        %v1032 = vmul.f32 %v1031, %v1008
        %v1033 = vmul.f32 %v1031, %v1009
        %v1034 = vadd.f32 %v978, %v1032
        %v1035 = vadd.f32 %v979, %v1033
        %s1036 = sld [smem:[#allocation6 + $0x75]]
        %v1037 = vstv %s1036
        %v1038 = vmul.f32 %v1037, %v1008
        %v1039 = vmul.f32 %v1037, %v1009
        %v1040 = vadd.f32 %v984, %v1038
        %v1041 = vadd.f32 %v985, %v1039
        %s1042 = sld [smem:[#allocation6 + $0xa]]
        %v1043 = vstv %s1042
        %v1044 = vmul.f32 %v1043, %v992
        %v1045 = vmul.f32 %v1043, %v993
        %v1046 = vadd.f32 %v1022, %v1044
        %v1047 = vadd.f32 %v1023, %v1045
        %s1048 = sld [smem:[#allocation6 + $0x2e]]
        %v1049 = vstv %s1048
        %v1050 = vmul.f32 %v1049, %v992
        %v1051 = vmul.f32 %v1049, %v993
        %v1052 = vadd.f32 %v1028, %v1050
        %v1053 = vadd.f32 %v1029, %v1051
        %s1054 = sld [smem:[#allocation6 + $0x52]]
        %v1055 = vstv %s1054
        %v1056 = vmul.f32 %v1055, %v992
        %v1057 = vmul.f32 %v1055, %v993
        %v1058 = vadd.f32 %v1034, %v1056
        %v1059 = vadd.f32 %v1035, %v1057
        %s1060 = sld [smem:[#allocation6 + $0x76]]
        %v1061 = vstv %s1060
        %v1062 = vmul.f32 %v1061, %v992
        %v1063 = vmul.f32 %v1061, %v993
        %v1064 = vadd.f32 %v1040, %v1062
        %v1065 = vadd.f32 %v1041, %v1063
        %s1066 = sld [smem:[#allocation6 + $0xb]]
        %v1067 = vstv %s1066
        %v1068 = vmul.f32 %v1067, %v1016
        %v1069 = vmul.f32 %v1067, %v1017
        %v1070 = vadd.f32 %v1046, %v1068
        %v1071 = vadd.f32 %v1047, %v1069
        %s1072 = sld [smem:[#allocation6 + $0x2f]]
        %v1073 = vstv %s1072
        %v1074 = vmul.f32 %v1073, %v1016
        %v1075 = vmul.f32 %v1073, %v1017
        %v1076 = vadd.f32 %v1052, %v1074
        %v1077 = vadd.f32 %v1053, %v1075
        %s1078 = sld [smem:[#allocation6 + $0x53]]
        %v1079 = vstv %s1078
        %v1080 = vmul.f32 %v1079, %v1016
        %v1081 = vmul.f32 %v1079, %v1017
        %v1082 = vadd.f32 %v1058, %v1080
        %v1083 = vadd.f32 %v1059, %v1081
        %s1084 = sld [smem:[#allocation6 + $0x77]]
        %v1085 = vstv %s1084
        %v1086 = vmul.f32 %v1085, %v1016
        %v1087 = vmul.f32 %v1085, %v1017
        %v1088 = vadd.f32 %v1064, %v1086
        %v1089 = vadd.f32 %v1065, %v1087
        %1090 = vrot.lane.b32.xlu0 %v595, 1
        %v1091 = vpop.permute.xlu0 %1090
        %1092 = vrot.lane.b32.xlu0 %v596, 1
        %v1093 = vpop.permute.xlu0 %1092
        %v1094 = vsel %vm680, %v1091, %v1093
        %v1095 = vsel %vm680, %v1093, %v1091
        %v1096 = vmul.f32 %v1095, %v522
        %v1097 = vmul.f32 %v1094, %v523
        %1098 = vrot.lane.b32.xlu0 %v595, 127
        %v1099 = vpop.permute.xlu0 %1098
        %1100 = vrot.lane.b32.xlu0 %v596, 127
        %v1101 = vpop.permute.xlu0 %1100
        %v1102 = vsel %vm689, %v1099, %v1101
        %v1103 = vsel %vm689, %v1101, %v1099
        %v1104 = vmul.f32 %v1102, %v518
        %v1105 = vmul.f32 %v1103, %v519
        %s1106 = sld [smem:[#allocation6 + $0xc]]
        %v1107 = vstv %s1106
        %v1108 = vmul.f32 %v1107, %v1096
        %v1109 = vmul.f32 %v1107, %v1097
        %v1110 = vadd.f32 %v1070, %v1108
        %v1111 = vadd.f32 %v1071, %v1109
        %s1112 = sld [smem:[#allocation6 + $0x30]]
        %v1113 = vstv %s1112
        %v1114 = vmul.f32 %v1113, %v1096
        %v1115 = vmul.f32 %v1113, %v1097
        %v1116 = vadd.f32 %v1076, %v1114
        %v1117 = vadd.f32 %v1077, %v1115
        %s1118 = sld [smem:[#allocation6 + $0x54]]
        %v1119 = vstv %s1118
        %v1120 = vmul.f32 %v1119, %v1096
        %v1121 = vmul.f32 %v1119, %v1097
        %v1122 = vadd.f32 %v1082, %v1120
        %v1123 = vadd.f32 %v1083, %v1121
        %s1124 = sld [smem:[#allocation6 + $0x78]]
        %v1125 = vstv %s1124
        %v1126 = vmul.f32 %v1125, %v1096
        %v1127 = vmul.f32 %v1125, %v1097
        %v1128 = vadd.f32 %v1088, %v1126
        %v1129 = vadd.f32 %v1089, %v1127
        %s1130 = sld [smem:[#allocation6 + $0xd]]
        %v1131 = vstv %s1130
        %v1132 = vmul.f32 %v1131, %v595
        %v1133 = vmul.f32 %v1131, %v596
        %v1134 = vadd.f32 %v1110, %v1132
        %v1135 = vadd.f32 %v1111, %v1133
        %s1136 = sld [smem:[#allocation6 + $0x31]]
        %v1137 = vstv %s1136
        %v1138 = vmul.f32 %v1137, %v595
        %v1139 = vmul.f32 %v1137, %v596
        %v1140 = vadd.f32 %v1116, %v1138
        %v1141 = vadd.f32 %v1117, %v1139
        %s1142 = sld [smem:[#allocation6 + $0x55]]
        %v1143 = vstv %s1142
        %v1144 = vmul.f32 %v1143, %v595
        %v1145 = vmul.f32 %v1143, %v596
        %v1146 = vadd.f32 %v1122, %v1144
        %v1147 = vadd.f32 %v1123, %v1145
        %s1148 = sld [smem:[#allocation6 + $0x79]]
        %v1149 = vstv %s1148
        %v1150 = vmul.f32 %v1149, %v595
        %v1151 = vmul.f32 %v1149, %v596
        %v1152 = vadd.f32 %v1128, %v1150
        %v1153 = vadd.f32 %v1129, %v1151
        %s1154 = sld [smem:[#allocation6 + $0xe]]
        %v1155 = vstv %s1154
        %v1156 = vmul.f32 %v1155, %v1104
        %v1157 = vmul.f32 %v1155, %v1105
        %v1158 = vadd.f32 %v1134, %v1156
        %v1159 = vadd.f32 %v1135, %v1157
        %s1160 = sld [smem:[#allocation6 + $0x32]]
        %v1161 = vstv %s1160
        %v1162 = vmul.f32 %v1161, %v1104
        %v1163 = vmul.f32 %v1161, %v1105
        %v1164 = vadd.f32 %v1140, %v1162
        %v1165 = vadd.f32 %v1141, %v1163
        %s1166 = sld [smem:[#allocation6 + $0x56]]
        %v1167 = vstv %s1166
        %v1168 = vmul.f32 %v1167, %v1104
        %v1169 = vmul.f32 %v1167, %v1105
        %v1170 = vadd.f32 %v1146, %v1168
        %v1171 = vadd.f32 %v1147, %v1169
        %s1172 = sld [smem:[#allocation6 + $0x7a]]
        %v1173 = vstv %s1172
        %v1174 = vmul.f32 %v1173, %v1104
        %v1175 = vmul.f32 %v1173, %v1105
        %v1176 = vadd.f32 %v1152, %v1174
        %v1177 = vadd.f32 %v1153, %v1175
        %1178 = vrot.lane.b32.xlu0 %v1000, 1
        %v1179 = vpop.permute.xlu0 %1178
        %1180 = vrot.lane.b32.xlu0 %v1001, 1
        %v1181 = vpop.permute.xlu0 %1180
        %v1182 = vsel %vm680, %v1179, %v1181
        %v1183 = vsel %vm680, %v1181, %v1179
        %v1184 = vmul.f32 %v1183, %v522
        %v1185 = vmul.f32 %v1182, %v523
        %1186 = vrot.lane.b32.xlu0 %v1000, 127
        %v1187 = vpop.permute.xlu0 %1186
        %1188 = vrot.lane.b32.xlu0 %v1001, 127
        %v1189 = vpop.permute.xlu0 %1188
        %v1190 = vsel %vm689, %v1187, %v1189
        %v1191 = vsel %vm689, %v1189, %v1187
        %v1192 = vmul.f32 %v1190, %v518
        %v1193 = vmul.f32 %v1191, %v519
        %s1194 = sld [smem:[#allocation6 + $0xf]]
        %v1195 = vstv %s1194
        %v1196 = vmul.f32 %v1195, %v1184
        %v1197 = vmul.f32 %v1195, %v1185
        %v1198 = vadd.f32 %v1158, %v1196
        %v1199 = vadd.f32 %v1159, %v1197
        %s1200 = sld [smem:[#allocation6 + $0x33]]
        %v1201 = vstv %s1200
        %v1202 = vmul.f32 %v1201, %v1184
        %v1203 = vmul.f32 %v1201, %v1185
        %v1204 = vadd.f32 %v1164, %v1202
        %v1205 = vadd.f32 %v1165, %v1203
        %s1206 = sld [smem:[#allocation6 + $0x57]]
        %v1207 = vstv %s1206
        %v1208 = vmul.f32 %v1207, %v1184
        %v1209 = vmul.f32 %v1207, %v1185
        %v1210 = vadd.f32 %v1170, %v1208
        %v1211 = vadd.f32 %v1171, %v1209
        %s1212 = sld [smem:[#allocation6 + $0x7b]]
        %v1213 = vstv %s1212
        %v1214 = vmul.f32 %v1213, %v1184
        %v1215 = vmul.f32 %v1213, %v1185
        %v1216 = vadd.f32 %v1176, %v1214
        %v1217 = vadd.f32 %v1177, %v1215
        %s1218 = sld [smem:[#allocation6 + $0x10]]
        %v1219 = vstv %s1218
        %v1220 = vmul.f32 %v1219, %v1000
        %v1221 = vmul.f32 %v1219, %v1001
        %v1222 = vadd.f32 %v1198, %v1220
        %v1223 = vadd.f32 %v1199, %v1221
        %s1224 = sld [smem:[#allocation6 + $0x34]]
        %v1225 = vstv %s1224
        %v1226 = vmul.f32 %v1225, %v1000
        %v1227 = vmul.f32 %v1225, %v1001
        %v1228 = vadd.f32 %v1204, %v1226
        %v1229 = vadd.f32 %v1205, %v1227
        %s1230 = sld [smem:[#allocation6 + $0x58]]
        %v1231 = vstv %s1230
        %v1232 = vmul.f32 %v1231, %v1000
        %v1233 = vmul.f32 %v1231, %v1001
        %v1234 = vadd.f32 %v1210, %v1232
        %v1235 = vadd.f32 %v1211, %v1233
        %s1236 = sld [smem:[#allocation6 + $0x7c]]
        %v1237 = vstv %s1236
        %v1238 = vmul.f32 %v1237, %v1000
        %v1239 = vmul.f32 %v1237, %v1001
        %v1240 = vadd.f32 %v1216, %v1238
        %v1241 = vadd.f32 %v1217, %v1239
        %s1242 = sld [smem:[#allocation6 + $0x11]]
        %v1243 = vstv %s1242
        %v1244 = vmul.f32 %v1243, %v1192
        %v1245 = vmul.f32 %v1243, %v1193
        %v1246 = vadd.f32 %v1222, %v1244
        %v1247 = vadd.f32 %v1223, %v1245
        %s1248 = sld [smem:[#allocation6 + $0x35]]
        %v1249 = vstv %s1248
        %v1250 = vmul.f32 %v1249, %v1192
        %v1251 = vmul.f32 %v1249, %v1193
        %v1252 = vadd.f32 %v1228, %v1250
        %v1253 = vadd.f32 %v1229, %v1251
        %s1254 = sld [smem:[#allocation6 + $0x59]]
        %v1255 = vstv %s1254
        %v1256 = vmul.f32 %v1255, %v1192
        %v1257 = vmul.f32 %v1255, %v1193
        %v1258 = vadd.f32 %v1234, %v1256
        %v1259 = vadd.f32 %v1235, %v1257
        %s1260 = sld [smem:[#allocation6 + $0x7d]]
        %v1261 = vstv %s1260
        %v1262 = vmul.f32 %v1261, %v1192
        %v1263 = vmul.f32 %v1261, %v1193
        %v1264 = vadd.f32 %v1240, %v1262
        %v1265 = vadd.f32 %v1241, %v1263
        %1266 = vrot.lane.b32.xlu0 %v622, 16
        %v1267 = vpop.permute.xlu0 %1266
        %1268 = vrot.lane.b32.xlu0 %v623, 16
        %v1269 = vpop.permute.xlu0 %1268
        %v1270 = vsel %vm662, %v1267, %v1269
        %v1271 = vsel %vm662, %v1269, %v1267
        %v1272 = vmul.f32 %v1271, %v530
        %v1273 = vmul.f32 %v1270, %v531
        %1274 = vrot.lane.b32.xlu0 %v622, 112
        %v1275 = vpop.permute.xlu0 %1274
        %1276 = vrot.lane.b32.xlu0 %v623, 112
        %v1277 = vpop.permute.xlu0 %1276
        %v1278 = vsel %vm671, %v1275, %v1277
        %v1279 = vsel %vm671, %v1277, %v1275
        %v1280 = vmul.f32 %v1278, %v526
        %v1281 = vmul.f32 %v1279, %v527
        %1282 = vrot.lane.b32.xlu0 %v1272, 1
        %v1283 = vpop.permute.xlu0 %1282
        %1284 = vrot.lane.b32.xlu0 %v1273, 1
        %v1285 = vpop.permute.xlu0 %1284
        %v1286 = vsel %vm680, %v1283, %v1285
        %v1287 = vsel %vm680, %v1285, %v1283
        %v1288 = vmul.f32 %v1287, %v522
        %v1289 = vmul.f32 %v1286, %v523
        %1290 = vrot.lane.b32.xlu0 %v1272, 127
        %v1291 = vpop.permute.xlu0 %1290
        %1292 = vrot.lane.b32.xlu0 %v1273, 127
        %v1293 = vpop.permute.xlu0 %1292
        %v1294 = vsel %vm689, %v1291, %v1293
        %v1295 = vsel %vm689, %v1293, %v1291
        %v1296 = vmul.f32 %v1294, %v518
        %v1297 = vmul.f32 %v1295, %v519
        %s1298 = sld [smem:[#allocation6 + $0x12]]
        %v1299 = vstv %s1298
        %v1300 = vmul.f32 %v1299, %v1288
        %v1301 = vmul.f32 %v1299, %v1289
        %v1302 = vadd.f32 %v1246, %v1300
        %v1303 = vadd.f32 %v1247, %v1301
        %s1304 = sld [smem:[#allocation6 + $0x36]]
        %v1305 = vstv %s1304
        %v1306 = vmul.f32 %v1305, %v1288
        %v1307 = vmul.f32 %v1305, %v1289
        %v1308 = vadd.f32 %v1252, %v1306
        %v1309 = vadd.f32 %v1253, %v1307
        %s1310 = sld [smem:[#allocation6 + $0x5a]]
        %v1311 = vstv %s1310
        %v1312 = vmul.f32 %v1311, %v1288
        %v1313 = vmul.f32 %v1311, %v1289
        %v1314 = vadd.f32 %v1258, %v1312
        %v1315 = vadd.f32 %v1259, %v1313
        %s1316 = sld [smem:[#allocation6 + $0x7e]]
        %v1317 = vstv %s1316
        %v1318 = vmul.f32 %v1317, %v1288
        %v1319 = vmul.f32 %v1317, %v1289
        %v1320 = vadd.f32 %v1264, %v1318
        %v1321 = vadd.f32 %v1265, %v1319
        %s1322 = sld [smem:[#allocation6 + $0x13]]
        %v1323 = vstv %s1322
        %v1324 = vmul.f32 %v1323, %v1272
        %v1325 = vmul.f32 %v1323, %v1273
        %v1326 = vadd.f32 %v1302, %v1324
        %v1327 = vadd.f32 %v1303, %v1325
        %s1328 = sld [smem:[#allocation6 + $0x37]]
        %v1329 = vstv %s1328
        %v1330 = vmul.f32 %v1329, %v1272
        %v1331 = vmul.f32 %v1329, %v1273
        %v1332 = vadd.f32 %v1308, %v1330
        %v1333 = vadd.f32 %v1309, %v1331
        %s1334 = sld [smem:[#allocation6 + $0x5b]]
        %v1335 = vstv %s1334
        %v1336 = vmul.f32 %v1335, %v1272
        %v1337 = vmul.f32 %v1335, %v1273
        %v1338 = vadd.f32 %v1314, %v1336
        %v1339 = vadd.f32 %v1315, %v1337
        %s1340 = sld [smem:[#allocation6 + $0x7f]]
        %v1341 = vstv %s1340
        %v1342 = vmul.f32 %v1341, %v1272
        %v1343 = vmul.f32 %v1341, %v1273
        %v1344 = vadd.f32 %v1320, %v1342
        %v1345 = vadd.f32 %v1321, %v1343
        %s1346 = sld [smem:[#allocation6 + $0x14]]
        %v1347 = vstv %s1346
        %v1348 = vmul.f32 %v1347, %v1296
        %v1349 = vmul.f32 %v1347, %v1297
        %v1350 = vadd.f32 %v1326, %v1348
        %v1351 = vadd.f32 %v1327, %v1349
        %s1352 = sld [smem:[#allocation6 + $0x38]]
        %v1353 = vstv %s1352
        %v1354 = vmul.f32 %v1353, %v1296
        %v1355 = vmul.f32 %v1353, %v1297
        %v1356 = vadd.f32 %v1332, %v1354
        %v1357 = vadd.f32 %v1333, %v1355
        %s1358 = sld [smem:[#allocation6 + $0x5c]]
        %v1359 = vstv %s1358
        %v1360 = vmul.f32 %v1359, %v1296
        %v1361 = vmul.f32 %v1359, %v1297
        %v1362 = vadd.f32 %v1338, %v1360
        %v1363 = vadd.f32 %v1339, %v1361
        %s1364 = sld [smem:[#allocation6 + $0x80]]
        %v1365 = vstv %s1364
        %v1366 = vmul.f32 %v1365, %v1296
        %v1367 = vmul.f32 %v1365, %v1297
        %v1368 = vadd.f32 %v1344, %v1366
        %v1369 = vadd.f32 %v1345, %v1367
        %1370 = vrot.lane.b32.xlu0 %v622, 1
        %v1371 = vpop.permute.xlu0 %1370
        %1372 = vrot.lane.b32.xlu0 %v623, 1
        %v1373 = vpop.permute.xlu0 %1372
        %v1374 = vsel %vm680, %v1371, %v1373
        %v1375 = vsel %vm680, %v1373, %v1371
        %v1376 = vmul.f32 %v1375, %v522
        %v1377 = vmul.f32 %v1374, %v523
        %1378 = vrot.lane.b32.xlu0 %v622, 127
        %v1379 = vpop.permute.xlu0 %1378
        %1380 = vrot.lane.b32.xlu0 %v623, 127
        %v1381 = vpop.permute.xlu0 %1380
        %v1382 = vsel %vm689, %v1379, %v1381
        %v1383 = vsel %vm689, %v1381, %v1379
        %v1384 = vmul.f32 %v1382, %v518
        %v1385 = vmul.f32 %v1383, %v519
        %s1386 = sld [smem:[#allocation6 + $0x15]]
        %v1387 = vstv %s1386
        %v1388 = vmul.f32 %v1387, %v1376
        %v1389 = vmul.f32 %v1387, %v1377
        %v1390 = vadd.f32 %v1350, %v1388
        %v1391 = vadd.f32 %v1351, %v1389
        %s1392 = sld [smem:[#allocation6 + $0x39]]
        %v1393 = vstv %s1392
        %v1394 = vmul.f32 %v1393, %v1376
        %v1395 = vmul.f32 %v1393, %v1377
        %v1396 = vadd.f32 %v1356, %v1394
        %v1397 = vadd.f32 %v1357, %v1395
        %s1398 = sld [smem:[#allocation6 + $0x5d]]
        %v1399 = vstv %s1398
        %v1400 = vmul.f32 %v1399, %v1376
        %v1401 = vmul.f32 %v1399, %v1377
        %v1402 = vadd.f32 %v1362, %v1400
        %v1403 = vadd.f32 %v1363, %v1401
        %s1404 = sld [smem:[#allocation6 + $0x81]]
        %v1405 = vstv %s1404
        %v1406 = vmul.f32 %v1405, %v1376
        %v1407 = vmul.f32 %v1405, %v1377
        %v1408 = vadd.f32 %v1368, %v1406
        %v1409 = vadd.f32 %v1369, %v1407
        %s1410 = sld [smem:[#allocation6 + $0x16]]
        %v1411 = vstv %s1410
        %v1412 = vmul.f32 %v1411, %v622
        %v1413 = vmul.f32 %v1411, %v623
        %v1414 = vadd.f32 %v1390, %v1412
        %v1415 = vadd.f32 %v1391, %v1413
        %s1416 = sld [smem:[#allocation6 + $0x3a]]
        %v1417 = vstv %s1416
        %v1418 = vmul.f32 %v1417, %v622
        %v1419 = vmul.f32 %v1417, %v623
        %v1420 = vadd.f32 %v1396, %v1418
        %v1421 = vadd.f32 %v1397, %v1419
        %s1422 = sld [smem:[#allocation6 + $0x5e]]
        %v1423 = vstv %s1422
        %v1424 = vmul.f32 %v1423, %v622
        %v1425 = vmul.f32 %v1423, %v623
        %v1426 = vadd.f32 %v1402, %v1424
        %v1427 = vadd.f32 %v1403, %v1425
        %s1428 = sld [smem:[#allocation6 + $0x82]]
        %v1429 = vstv %s1428
        %v1430 = vmul.f32 %v1429, %v622
        %v1431 = vmul.f32 %v1429, %v623
        %v1432 = vadd.f32 %v1408, %v1430
        %v1433 = vadd.f32 %v1409, %v1431
        %s1434 = sld [smem:[#allocation6 + $0x17]]
        %v1435 = vstv %s1434
        %v1436 = vmul.f32 %v1435, %v1384
        %v1437 = vmul.f32 %v1435, %v1385
        %v1438 = vadd.f32 %v1414, %v1436
        %v1439 = vadd.f32 %v1415, %v1437
        %s1440 = sld [smem:[#allocation6 + $0x3b]]
        %v1441 = vstv %s1440
        %v1442 = vmul.f32 %v1441, %v1384
        %v1443 = vmul.f32 %v1441, %v1385
        %v1444 = vadd.f32 %v1420, %v1442
        %v1445 = vadd.f32 %v1421, %v1443
        %s1446 = sld [smem:[#allocation6 + $0x5f]]
        %v1447 = vstv %s1446
        %v1448 = vmul.f32 %v1447, %v1384
        %v1449 = vmul.f32 %v1447, %v1385
        %v1450 = vadd.f32 %v1426, %v1448
        %v1451 = vadd.f32 %v1427, %v1449
        %s1452 = sld [smem:[#allocation6 + $0x83]]
        %v1453 = vstv %s1452
        %v1454 = vmul.f32 %v1453, %v1384
        %v1455 = vmul.f32 %v1453, %v1385
        %v1456 = vadd.f32 %v1432, %v1454
        %v1457 = vadd.f32 %v1433, %v1455
        %1458 = vrot.lane.b32.xlu0 %v1280, 1
        %v1459 = vpop.permute.xlu0 %1458
        %1460 = vrot.lane.b32.xlu0 %v1281, 1
        %v1461 = vpop.permute.xlu0 %1460
        %v1462 = vsel %vm680, %v1459, %v1461
        %v1463 = vsel %vm680, %v1461, %v1459
        %v1464 = vmul.f32 %v1463, %v522
        %v1465 = vmul.f32 %v1462, %v523
        %1466 = vrot.lane.b32.xlu0 %v1280, 127
        %v1467 = vpop.permute.xlu0 %1466
        %1468 = vrot.lane.b32.xlu0 %v1281, 127
        %v1469 = vpop.permute.xlu0 %1468
        %v1470 = vsel %vm689, %v1467, %v1469
        %v1471 = vsel %vm689, %v1469, %v1467
        %v1472 = vmul.f32 %v1470, %v518
        %v1473 = vmul.f32 %v1471, %v519
        %s1474 = sld [smem:[#allocation6 + $0x18]]
        %v1475 = vstv %s1474
        %v1476 = vmul.f32 %v1475, %v1464
        %v1477 = vmul.f32 %v1475, %v1465
        %v1478 = vadd.f32 %v1438, %v1476
        %v1479 = vadd.f32 %v1439, %v1477
        %s1480 = sld [smem:[#allocation6 + $0x3c]]
        %v1481 = vstv %s1480
        %v1482 = vmul.f32 %v1481, %v1464
        %v1483 = vmul.f32 %v1481, %v1465
        %v1484 = vadd.f32 %v1444, %v1482
        %v1485 = vadd.f32 %v1445, %v1483
        %s1486 = sld [smem:[#allocation6 + $0x60]]
        %v1487 = vstv %s1486
        %v1488 = vmul.f32 %v1487, %v1464
        %v1489 = vmul.f32 %v1487, %v1465
        %v1490 = vadd.f32 %v1450, %v1488
        %v1491 = vadd.f32 %v1451, %v1489
        %s1492 = sld [smem:[#allocation6 + $0x84]]
        %v1493 = vstv %s1492
        %v1494 = vmul.f32 %v1493, %v1464
        %v1495 = vmul.f32 %v1493, %v1465
        %v1496 = vadd.f32 %v1456, %v1494
        %v1497 = vadd.f32 %v1457, %v1495
        %s1498 = sld [smem:[#allocation6 + $0x19]]
        %v1499 = vstv %s1498
        %v1500 = vmul.f32 %v1499, %v1280
        %v1501 = vmul.f32 %v1499, %v1281
        %v1502 = vadd.f32 %v1478, %v1500
        %v1503 = vadd.f32 %v1479, %v1501
        %s1504 = sld [smem:[#allocation6 + $0x3d]]
        %v1505 = vstv %s1504
        %v1506 = vmul.f32 %v1505, %v1280
        %v1507 = vmul.f32 %v1505, %v1281
        %v1508 = vadd.f32 %v1484, %v1506
        %v1509 = vadd.f32 %v1485, %v1507
        %s1510 = sld [smem:[#allocation6 + $0x61]]
        %v1511 = vstv %s1510
        %v1512 = vmul.f32 %v1511, %v1280
        %v1513 = vmul.f32 %v1511, %v1281
        %v1514 = vadd.f32 %v1490, %v1512
        %v1515 = vadd.f32 %v1491, %v1513
        %s1516 = sld [smem:[#allocation6 + $0x85]]
        %v1517 = vstv %s1516
        %v1518 = vmul.f32 %v1517, %v1280
        %v1519 = vmul.f32 %v1517, %v1281
        %v1520 = vadd.f32 %v1496, %v1518
        %v1521 = vadd.f32 %v1497, %v1519
        %s1522 = sld [smem:[#allocation6 + $0x1a]]
        %v1523 = vstv %s1522
        %v1524 = vmul.f32 %v1523, %v1472
        %v1525 = vmul.f32 %v1523, %v1473
        %v1526 = vadd.f32 %v1502, %v1524
        %v1527 = vadd.f32 %v1503, %v1525
        %s1528 = sld [smem:[#allocation6 + $0x3e]]
        %v1529 = vstv %s1528
        %v1530 = vmul.f32 %v1529, %v1472
        %v1531 = vmul.f32 %v1529, %v1473
        %v1532 = vadd.f32 %v1508, %v1530
        %v1533 = vadd.f32 %v1509, %v1531
        %s1534 = sld [smem:[#allocation6 + $0x62]]
        %v1535 = vstv %s1534
        %v1536 = vmul.f32 %v1535, %v1472
        %v1537 = vmul.f32 %v1535, %v1473
        %v1538 = vadd.f32 %v1514, %v1536
        %v1539 = vadd.f32 %v1515, %v1537
        %s1540 = sld [smem:[#allocation6 + $0x86]]
        %v1541 = vstv %s1540
        %v1542 = vmul.f32 %v1541, %v1472
        %v1543 = vmul.f32 %v1541, %v1473
        %v1544 = vadd.f32 %v1520, %v1542
        %v1545 = vadd.f32 %v1521, %v1543
        %1546 = vrot.lane.b32.xlu0 %v649, 16
        %v1547 = vpop.permute.xlu0 %1546
        %1548 = vrot.lane.b32.xlu0 %v650, 16
        %v1549 = vpop.permute.xlu0 %1548
        %v1550 = vsel %vm662, %v1547, %v1549
        %v1551 = vsel %vm662, %v1549, %v1547
        %v1552 = vmul.f32 %v1551, %v530
        %v1553 = vmul.f32 %v1550, %v531
        %1554 = vrot.lane.b32.xlu0 %v649, 112
        %v1555 = vpop.permute.xlu0 %1554
        %1556 = vrot.lane.b32.xlu0 %v650, 112
        %v1557 = vpop.permute.xlu0 %1556
        %v1558 = vsel %vm671, %v1555, %v1557
        %v1559 = vsel %vm671, %v1557, %v1555
        %v1560 = vmul.f32 %v1558, %v526
        %v1561 = vmul.f32 %v1559, %v527
        %1562 = vrot.lane.b32.xlu0 %v1552, 1
        %v1563 = vpop.permute.xlu0 %1562
        %1564 = vrot.lane.b32.xlu0 %v1553, 1
        %v1565 = vpop.permute.xlu0 %1564
        %v1566 = vsel %vm680, %v1563, %v1565
        %v1567 = vsel %vm680, %v1565, %v1563
        %v1568 = vmul.f32 %v1567, %v522
        %v1569 = vmul.f32 %v1566, %v523
        %1570 = vrot.lane.b32.xlu0 %v1552, 127
        %v1571 = vpop.permute.xlu0 %1570
        %1572 = vrot.lane.b32.xlu0 %v1553, 127
        %v1573 = vpop.permute.xlu0 %1572
        %v1574 = vsel %vm689, %v1571, %v1573
        %v1575 = vsel %vm689, %v1573, %v1571
        %v1576 = vmul.f32 %v1574, %v518
        %v1577 = vmul.f32 %v1575, %v519
        %s1578 = sld [smem:[#allocation6 + $0x1b]]
        %v1579 = vstv %s1578
        %v1580 = vmul.f32 %v1579, %v1568
        %v1581 = vmul.f32 %v1579, %v1569
        %v1582 = vadd.f32 %v1526, %v1580
        %v1583 = vadd.f32 %v1527, %v1581
        %s1584 = sld [smem:[#allocation6 + $0x3f]]
        %v1585 = vstv %s1584
        %v1586 = vmul.f32 %v1585, %v1568
        %v1587 = vmul.f32 %v1585, %v1569
        %v1588 = vadd.f32 %v1532, %v1586
        %v1589 = vadd.f32 %v1533, %v1587
        %s1590 = sld [smem:[#allocation6 + $0x63]]
        %v1591 = vstv %s1590
        %v1592 = vmul.f32 %v1591, %v1568
        %v1593 = vmul.f32 %v1591, %v1569
        %v1594 = vadd.f32 %v1538, %v1592
        %v1595 = vadd.f32 %v1539, %v1593
        %s1596 = sld [smem:[#allocation6 + $0x87]]
        %v1597 = vstv %s1596
        %v1598 = vmul.f32 %v1597, %v1568
        %v1599 = vmul.f32 %v1597, %v1569
        %v1600 = vadd.f32 %v1544, %v1598
        %v1601 = vadd.f32 %v1545, %v1599
        %s1602 = sld [smem:[#allocation6 + $0x1c]]
        %v1603 = vstv %s1602
        %v1604 = vmul.f32 %v1603, %v1552
        %v1605 = vmul.f32 %v1603, %v1553
        %v1606 = vadd.f32 %v1582, %v1604
        %v1607 = vadd.f32 %v1583, %v1605
        %s1608 = sld [smem:[#allocation6 + $0x40]]
        %v1609 = vstv %s1608
        %v1610 = vmul.f32 %v1609, %v1552
        %v1611 = vmul.f32 %v1609, %v1553
        %v1612 = vadd.f32 %v1588, %v1610
        %v1613 = vadd.f32 %v1589, %v1611
        %s1614 = sld [smem:[#allocation6 + $0x64]]
        %v1615 = vstv %s1614
        %v1616 = vmul.f32 %v1615, %v1552
        %v1617 = vmul.f32 %v1615, %v1553
        %v1618 = vadd.f32 %v1594, %v1616
        %v1619 = vadd.f32 %v1595, %v1617
        %s1620 = sld [smem:[#allocation6 + $0x88]]
        %v1621 = vstv %s1620
        %v1622 = vmul.f32 %v1621, %v1552
        %v1623 = vmul.f32 %v1621, %v1553
        %v1624 = vadd.f32 %v1600, %v1622
        %v1625 = vadd.f32 %v1601, %v1623
        %s1626 = sld [smem:[#allocation6 + $0x1d]]
        %v1627 = vstv %s1626
        %v1628 = vmul.f32 %v1627, %v1576
        %v1629 = vmul.f32 %v1627, %v1577
        %v1630 = vadd.f32 %v1606, %v1628
        %v1631 = vadd.f32 %v1607, %v1629
        %s1632 = sld [smem:[#allocation6 + $0x41]]
        %v1633 = vstv %s1632
        %v1634 = vmul.f32 %v1633, %v1576
        %v1635 = vmul.f32 %v1633, %v1577
        %v1636 = vadd.f32 %v1612, %v1634
        %v1637 = vadd.f32 %v1613, %v1635
        %s1638 = sld [smem:[#allocation6 + $0x65]]
        %v1639 = vstv %s1638
        %v1640 = vmul.f32 %v1639, %v1576
        %v1641 = vmul.f32 %v1639, %v1577
        %v1642 = vadd.f32 %v1618, %v1640
        %v1643 = vadd.f32 %v1619, %v1641
        %s1644 = sld [smem:[#allocation6 + $0x89]]
        %v1645 = vstv %s1644
        %v1646 = vmul.f32 %v1645, %v1576
        %v1647 = vmul.f32 %v1645, %v1577
        %v1648 = vadd.f32 %v1624, %v1646
        %v1649 = vadd.f32 %v1625, %v1647
        %1650 = vrot.lane.b32.xlu0 %v649, 1
        %v1651 = vpop.permute.xlu0 %1650
        %1652 = vrot.lane.b32.xlu0 %v650, 1
        %v1653 = vpop.permute.xlu0 %1652
        %v1654 = vsel %vm680, %v1651, %v1653
        %v1655 = vsel %vm680, %v1653, %v1651
        %v1656 = vmul.f32 %v1655, %v522
        %v1657 = vmul.f32 %v1654, %v523
        %1658 = vrot.lane.b32.xlu0 %v649, 127
        %v1659 = vpop.permute.xlu0 %1658
        %1660 = vrot.lane.b32.xlu0 %v650, 127
        %v1661 = vpop.permute.xlu0 %1660
        %v1662 = vsel %vm689, %v1659, %v1661
        %v1663 = vsel %vm689, %v1661, %v1659
        %v1664 = vmul.f32 %v1662, %v518
        %v1665 = vmul.f32 %v1663, %v519
        %s1666 = sld [smem:[#allocation6 + $0x1e]]
        %v1667 = vstv %s1666
        %v1668 = vmul.f32 %v1667, %v1656
        %v1669 = vmul.f32 %v1667, %v1657
        %v1670 = vadd.f32 %v1630, %v1668
        %v1671 = vadd.f32 %v1631, %v1669
        %s1672 = sld [smem:[#allocation6 + $0x42]]
        %v1673 = vstv %s1672
        %v1674 = vmul.f32 %v1673, %v1656
        %v1675 = vmul.f32 %v1673, %v1657
        %v1676 = vadd.f32 %v1636, %v1674
        %v1677 = vadd.f32 %v1637, %v1675
        %s1678 = sld [smem:[#allocation6 + $0x66]]
        %v1679 = vstv %s1678
        %v1680 = vmul.f32 %v1679, %v1656
        %v1681 = vmul.f32 %v1679, %v1657
        %v1682 = vadd.f32 %v1642, %v1680
        %v1683 = vadd.f32 %v1643, %v1681
        %s1684 = sld [smem:[#allocation6 + $0x8a]]
        %v1685 = vstv %s1684
        %v1686 = vmul.f32 %v1685, %v1656
        %v1687 = vmul.f32 %v1685, %v1657
        %v1688 = vadd.f32 %v1648, %v1686
        %v1689 = vadd.f32 %v1649, %v1687
        %s1690 = sld [smem:[#allocation6 + $0x1f]]
        %v1691 = vstv %s1690
        %v1692 = vmul.f32 %v1691, %v649
        %v1693 = vmul.f32 %v1691, %v650
        %v1694 = vadd.f32 %v1670, %v1692
        %v1695 = vadd.f32 %v1671, %v1693
        %s1696 = sld [smem:[#allocation6 + $0x43]]
        %v1697 = vstv %s1696
        %v1698 = vmul.f32 %v1697, %v649
        %v1699 = vmul.f32 %v1697, %v650
        %v1700 = vadd.f32 %v1676, %v1698
        %v1701 = vadd.f32 %v1677, %v1699
        %s1702 = sld [smem:[#allocation6 + $0x67]]
        %v1703 = vstv %s1702
        %v1704 = vmul.f32 %v1703, %v649
        %v1705 = vmul.f32 %v1703, %v650
        %v1706 = vadd.f32 %v1682, %v1704
        %v1707 = vadd.f32 %v1683, %v1705
        %s1708 = sld [smem:[#allocation6 + $0x8b]]
        %v1709 = vstv %s1708
        %v1710 = vmul.f32 %v1709, %v649
        %v1711 = vmul.f32 %v1709, %v650
        %v1712 = vadd.f32 %v1688, %v1710
        %v1713 = vadd.f32 %v1689, %v1711
        %s1714 = sld [smem:[#allocation6 + $0x20]]
        %v1715 = vstv %s1714
        %v1716 = vmul.f32 %v1715, %v1664
        %v1717 = vmul.f32 %v1715, %v1665
        %v1718 = vadd.f32 %v1694, %v1716
        %v1719 = vadd.f32 %v1695, %v1717
        %s1720 = sld [smem:[#allocation6 + $0x44]]
        %v1721 = vstv %s1720
        %v1722 = vmul.f32 %v1721, %v1664
        %v1723 = vmul.f32 %v1721, %v1665
        %v1724 = vadd.f32 %v1700, %v1722
        %v1725 = vadd.f32 %v1701, %v1723
        %s1726 = sld [smem:[#allocation6 + $0x68]]
        %v1727 = vstv %s1726
        %v1728 = vmul.f32 %v1727, %v1664
        %v1729 = vmul.f32 %v1727, %v1665
        %v1730 = vadd.f32 %v1706, %v1728
        %v1731 = vadd.f32 %v1707, %v1729
        %s1732 = sld [smem:[#allocation6 + $0x8c]]
        %v1733 = vstv %s1732
        %v1734 = vmul.f32 %v1733, %v1664
        %v1735 = vmul.f32 %v1733, %v1665
        %v1736 = vadd.f32 %v1712, %v1734
        %v1737 = vadd.f32 %v1713, %v1735
        %1738 = vrot.lane.b32.xlu0 %v1560, 1
        %v1739 = vpop.permute.xlu0 %1738
        %1740 = vrot.lane.b32.xlu0 %v1561, 1
        %v1741 = vpop.permute.xlu0 %1740
        %v1742 = vsel %vm680, %v1739, %v1741
        %v1743 = vsel %vm680, %v1741, %v1739
        %v1744 = vmul.f32 %v1743, %v522
        %v1745 = vmul.f32 %v1742, %v523
        %1746 = vrot.lane.b32.xlu0 %v1560, 127
        %v1747 = vpop.permute.xlu0 %1746
        %1748 = vrot.lane.b32.xlu0 %v1561, 127
        %v1749 = vpop.permute.xlu0 %1748
        %v1750 = vsel %vm689, %v1747, %v1749
        %v1751 = vsel %vm689, %v1749, %v1747
        %v1752 = vmul.f32 %v1750, %v518
        %v1753 = vmul.f32 %v1751, %v519
        %s1754 = sld [smem:[#allocation6 + $0x21]]
        %v1755 = vstv %s1754
        %v1756 = vmul.f32 %v1755, %v1744
        %v1757 = vmul.f32 %v1755, %v1745
        %v1758 = vadd.f32 %v1718, %v1756
        %v1759 = vadd.f32 %v1719, %v1757
        %s1760 = sld [smem:[#allocation6 + $0x45]]
        %v1761 = vstv %s1760
        %v1762 = vmul.f32 %v1761, %v1744
        %v1763 = vmul.f32 %v1761, %v1745
        %v1764 = vadd.f32 %v1724, %v1762
        %v1765 = vadd.f32 %v1725, %v1763
        %s1766 = sld [smem:[#allocation6 + $0x69]]
        %v1767 = vstv %s1766
        %v1768 = vmul.f32 %v1767, %v1744
        %v1769 = vmul.f32 %v1767, %v1745
        %v1770 = vadd.f32 %v1730, %v1768
        %v1771 = vadd.f32 %v1731, %v1769
        %s1772 = sld [smem:[#allocation6 + $0x8d]]
        %v1773 = vstv %s1772
        %v1774 = vmul.f32 %v1773, %v1744
        %v1775 = vmul.f32 %v1773, %v1745
        %v1776 = vadd.f32 %v1736, %v1774
        %v1777 = vadd.f32 %v1737, %v1775
        %s1778 = sld [smem:[#allocation6 + $0x22]]
        %v1779 = vstv %s1778
        %v1780 = vmul.f32 %v1779, %v1560
        %v1781 = vmul.f32 %v1779, %v1561
        %v1782 = vadd.f32 %v1758, %v1780
        %v1783 = vadd.f32 %v1759, %v1781
        %s1784 = sld [smem:[#allocation6 + $0x46]]
        %v1785 = vstv %s1784
        %v1786 = vmul.f32 %v1785, %v1560
        %v1787 = vmul.f32 %v1785, %v1561
        %v1788 = vadd.f32 %v1764, %v1786
        %v1789 = vadd.f32 %v1765, %v1787
        %s1790 = sld [smem:[#allocation6 + $0x6a]]
        %v1791 = vstv %s1790
        %v1792 = vmul.f32 %v1791, %v1560
        %v1793 = vmul.f32 %v1791, %v1561
        %v1794 = vadd.f32 %v1770, %v1792
        %v1795 = vadd.f32 %v1771, %v1793
        %s1796 = sld [smem:[#allocation6 + $0x8e]]
        %v1797 = vstv %s1796
        %v1798 = vmul.f32 %v1797, %v1560
        %v1799 = vmul.f32 %v1797, %v1561
        %v1800 = vadd.f32 %v1776, %v1798
        %v1801 = vadd.f32 %v1777, %v1799
        %s1802 = sld [smem:[#allocation6 + $0x23]]
        %v1803 = vstv %s1802
        %v1804 = vmul.f32 %v1803, %v1752
        %v1805 = vmul.f32 %v1803, %v1753
        %v1806 = vadd.f32 %v1782, %v1804
        %v1807 = vadd.f32 %v1783, %v1805
        %s1808 = sld [smem:[#allocation6 + $0x47]]
        %v1809 = vstv %s1808
        %v1810 = vmul.f32 %v1809, %v1752
        %v1811 = vmul.f32 %v1809, %v1753
        %v1812 = vadd.f32 %v1788, %v1810
        %v1813 = vadd.f32 %v1789, %v1811
        %s1814 = sld [smem:[#allocation6 + $0x6b]]
        %v1815 = vstv %s1814
        %v1816 = vmul.f32 %v1815, %v1752
        %v1817 = vmul.f32 %v1815, %v1753
        %v1818 = vadd.f32 %v1794, %v1816
        %v1819 = vadd.f32 %v1795, %v1817
        %s1820 = sld [smem:[#allocation6 + $0x8f]]
        %v1821 = vstv %s1820
        %v1822 = vmul.f32 %v1821, %v1752
        %v1823 = vmul.f32 %v1821, %v1753
        %v1824 = vadd.f32 %v1800, %v1822
        %v1825 = vadd.f32 %v1801, %v1823
        %v1826 = vadd.f32 %v1806, %v1807
        %1827 = vadd.xlane.f32.xlu0 %v1826
        %v1828 = vpop.xlane.xlu0 %1827
        %v1829 = vmul.f32 %v1806, %v1806
        %v1830 = vmul.f32 %v1807, %v1807
        %v1831 = vadd.f32 %v1829, %v1830
        %1832 = vadd.xlane.f32.xlu0 %v1831
        %v1833 = vpop.xlane.xlu0 %1832
        %v1834 = vmul.f32 %v1828, 0.00390625
        %v1835 = vmul.f32 %v1833, 0.00390625
        %v1836 = vmul.f32 %v1834, %v1834
        %v1837 = vsub.f32 %v1835, %v1836
        %v1838 = vadd.f32 %v1837, 1e-05
        %v1839 = vrsqrt.pop %v1838
        %s1840 = sld [smem:[#allocation7]]
        %v1841 = vstv %s1840
        %v1842 = vmul.f32 %v1839, %v1841
        %s1843 = sld [smem:[#allocation9]]
        %v1844 = vmul.f32 %v1834, %v1842
        %v1845 = vstv %s1843
        %v1846 = vsub.f32 %v1845, %v1844
        %v1847 = vmul.f32 %v1806, %v1842
        %v1848 = vmul.f32 %v1807, %v1842
        %v1849 = vadd.f32 %v1847, %v1846
        %v1850 = vadd.f32 %v1848, %v1846
        %v1851 = vmax.f32 %v1849, 0.0
        %v1852 = vmax.f32 %v1850, 0.0
        %v1853 = vadd.f32 %v1812, %v1813
        %1854 = vadd.xlane.f32.xlu0 %v1853
        %v1855 = vpop.xlane.xlu0 %1854
        %v1856 = vmul.f32 %v1812, %v1812
        %v1857 = vmul.f32 %v1813, %v1813
        %v1858 = vadd.f32 %v1856, %v1857
        %1859 = vadd.xlane.f32.xlu0 %v1858
        %v1860 = vpop.xlane.xlu0 %1859
        %v1861 = vmul.f32 %v1855, 0.00390625
        %v1862 = vmul.f32 %v1860, 0.00390625
        %v1863 = vmul.f32 %v1861, %v1861
        %v1864 = vsub.f32 %v1862, %v1863
        %v1865 = vadd.f32 %v1864, 1e-05
        %v1866 = vrsqrt.pop %v1865
        %s1867 = sld [smem:[#allocation7 + $0x1]]
        %v1868 = vstv %s1867
        %v1869 = vmul.f32 %v1866, %v1868
        %s1870 = sld [smem:[#allocation9 + $0x1]]
        %v1871 = vmul.f32 %v1861, %v1869
        %v1872 = vstv %s1870
        %v1873 = vsub.f32 %v1872, %v1871
        %v1874 = vmul.f32 %v1812, %v1869
        %v1875 = vmul.f32 %v1813, %v1869
        %v1876 = vadd.f32 %v1874, %v1873
        %v1877 = vadd.f32 %v1875, %v1873
        %v1878 = vmax.f32 %v1876, 0.0
        %v1879 = vmax.f32 %v1877, 0.0
        %v1880 = vadd.f32 %v1818, %v1819
        %1881 = vadd.xlane.f32.xlu0 %v1880
        %v1882 = vpop.xlane.xlu0 %1881
        %v1883 = vmul.f32 %v1818, %v1818
        %v1884 = vmul.f32 %v1819, %v1819
        %v1885 = vadd.f32 %v1883, %v1884
        %1886 = vadd.xlane.f32.xlu0 %v1885
        %v1887 = vpop.xlane.xlu0 %1886
        %v1888 = vmul.f32 %v1882, 0.00390625
        %v1889 = vmul.f32 %v1887, 0.00390625
        %v1890 = vmul.f32 %v1888, %v1888
        %v1891 = vsub.f32 %v1889, %v1890
        %v1892 = vadd.f32 %v1891, 1e-05
        %v1893 = vrsqrt.pop %v1892
        %s1894 = sld [smem:[#allocation7 + $0x2]]
        %v1895 = vstv %s1894
        %v1896 = vmul.f32 %v1893, %v1895
        %s1897 = sld [smem:[#allocation9 + $0x2]]
        %v1898 = vmul.f32 %v1888, %v1896
        %v1899 = vstv %s1897
        %v1900 = vsub.f32 %v1899, %v1898
        %v1901 = vmul.f32 %v1818, %v1896
        %v1902 = vmul.f32 %v1819, %v1896
        %v1903 = vadd.f32 %v1901, %v1900
        %v1904 = vadd.f32 %v1902, %v1900
        %v1905 = vmax.f32 %v1903, 0.0
        %v1906 = vmax.f32 %v1904, 0.0
        %v1907 = vadd.f32 %v1824, %v1825
        %1908 = vadd.xlane.f32.xlu0 %v1907
        %v1909 = vpop.xlane.xlu0 %1908
        %v1910 = vmul.f32 %v1824, %v1824
        %v1911 = vmul.f32 %v1825, %v1825
        %v1912 = vadd.f32 %v1910, %v1911
        %1913 = vadd.xlane.f32.xlu0 %v1912
        %v1914 = vpop.xlane.xlu0 %1913
        %v1915 = vmul.f32 %v1909, 0.00390625
        %v1916 = vmul.f32 %v1914, 0.00390625
        %v1917 = vmul.f32 %v1915, %v1915
        %v1918 = vsub.f32 %v1916, %v1917
        %v1919 = vadd.f32 %v1918, 1e-05
        %v1920 = vrsqrt.pop %v1919
        %s1921 = sld [smem:[#allocation7 + $0x3]]
        %v1922 = vstv %s1921
        %v1923 = vmul.f32 %v1920, %v1922
        %s1924 = sld [smem:[#allocation9 + $0x3]]
        %v1925 = vmul.f32 %v1915, %v1923
        %v1926 = vstv %s1924
        %v1927 = vsub.f32 %v1926, %v1925
        %v1928 = vmul.f32 %v1824, %v1923
        %v1929 = vmul.f32 %v1825, %v1923
        %v1930 = vadd.f32 %v1928, %v1927
        %v1931 = vadd.f32 %v1929, %v1927
        %v1932 = vmax.f32 %v1930, 0.0
        %v1933 = vmax.f32 %v1931, 0.0
        %v1934 = vld [vmem:[%s2] ss:$4 sm:$0x3]
        %s1935 = scalar_lea.vmem %s2, 1
        %v1936 = vld [vmem:[%s1935] ss:$4 sm:$0x3]
        %s1937 = scalar_lea.vmem %s2, 2
        %v1938 = vld [vmem:[%s1937] ss:$4 sm:$0x3]
        %s1939 = scalar_lea.vmem %s2, 3
        %v1940 = vld [vmem:[%s1939] ss:$4 sm:$0x3]
        %1941 = vrot.lane.b32.xlu0 %v1851, 16
        %v1942 = vpop.permute.xlu0 %1941
        %1943 = vrot.lane.b32.xlu0 %v1852, 16
        %v1944 = vpop.permute.xlu0 %1943
        %v1945 = vsel %vm662, %v1942, %v1944
        %v1946 = vsel %vm662, %v1944, %v1942
        %v1947 = vmul.f32 %v1946, %v530
        %v1948 = vmul.f32 %v1945, %v531
        %1949 = vrot.lane.b32.xlu0 %v1851, 112
        %v1950 = vpop.permute.xlu0 %1949
        %1951 = vrot.lane.b32.xlu0 %v1852, 112
        %v1952 = vpop.permute.xlu0 %1951
        %v1953 = vsel %vm671, %v1950, %v1952
        %v1954 = vsel %vm671, %v1952, %v1950
        %v1955 = vmul.f32 %v1953, %v526
        %v1956 = vmul.f32 %v1954, %v527
        %1957 = vrot.lane.b32.xlu0 %v1947, 1
        %v1958 = vpop.permute.xlu0 %1957
        %1959 = vrot.lane.b32.xlu0 %v1948, 1
        %v1960 = vpop.permute.xlu0 %1959
        %v1961 = vsel %vm680, %v1958, %v1960
        %v1962 = vsel %vm680, %v1960, %v1958
        %v1963 = vmul.f32 %v1962, %v522
        %v1964 = vmul.f32 %v1961, %v523
        %1965 = vrot.lane.b32.xlu0 %v1947, 127
        %v1966 = vpop.permute.xlu0 %1965
        %1967 = vrot.lane.b32.xlu0 %v1948, 127
        %v1968 = vpop.permute.xlu0 %1967
        %v1969 = vsel %vm689, %v1966, %v1968
        %v1970 = vsel %vm689, %v1968, %v1966
        %v1971 = vmul.f32 %v1969, %v518
        %v1972 = vmul.f32 %v1970, %v519
        %s1973 = sld [smem:[#allocation10]]
        %v1974 = vstv %s1973
        %v1975 = vmul.f32 %v1974, %v1963
        %v1976 = vmul.f32 %v1974, %v1964
        %v1978 = vlaneseq
        %v1979 = vshrl.u32 %v1978, 7
        %v1980 = vsub.s32 0, %v1979
        %v1981 = vrot.slane %v1934, %v1980
        %v1982 = vlaneseq
        %v1983 = vshrl.u32 %v1982, 7
        %v1984 = vsub.s32 1, %v1983
        %v1985 = vrot.slane %v1934, %v1984
        %v1988 = vadd.f32 %v1981, %v1975
        %v1989 = vadd.f32 %v1985, %v1976
        %s1990 = sld [smem:[#allocation10 + $0x24]]
        %v1991 = vstv %s1990
        %v1992 = vmul.f32 %v1991, %v1963
        %v1993 = vmul.f32 %v1991, %v1964
        %v1995 = vlaneseq
        %v1996 = vshrl.u32 %v1995, 7
        %v1997 = vsub.s32 0, %v1996
        %v1998 = vrot.slane %v1936, %v1997
        %v1999 = vlaneseq
        %v2000 = vshrl.u32 %v1999, 7
        %v2001 = vsub.s32 1, %v2000
        %v2002 = vrot.slane %v1936, %v2001
        %v2005 = vadd.f32 %v1998, %v1992
        %v2006 = vadd.f32 %v2002, %v1993
        %s2007 = sld [smem:[#allocation10 + $0x48]]
        %v2008 = vstv %s2007
        %v2009 = vmul.f32 %v2008, %v1963
        %v2010 = vmul.f32 %v2008, %v1964
        %v2012 = vlaneseq
        %v2013 = vshrl.u32 %v2012, 7
        %v2014 = vsub.s32 0, %v2013
        %v2015 = vrot.slane %v1938, %v2014
        %v2016 = vlaneseq
        %v2017 = vshrl.u32 %v2016, 7
        %v2018 = vsub.s32 1, %v2017
        %v2019 = vrot.slane %v1938, %v2018
        %v2022 = vadd.f32 %v2015, %v2009
        %v2023 = vadd.f32 %v2019, %v2010
        %s2024 = sld [smem:[#allocation10 + $0x6c]]
        %v2025 = vstv %s2024
        %v2026 = vmul.f32 %v2025, %v1963
        %v2027 = vmul.f32 %v2025, %v1964
        %v2029 = vlaneseq
        %v2030 = vshrl.u32 %v2029, 7
        %v2031 = vsub.s32 0, %v2030
        %v2032 = vrot.slane %v1940, %v2031
        %v2033 = vlaneseq
        %v2034 = vshrl.u32 %v2033, 7
        %v2035 = vsub.s32 1, %v2034
        %v2036 = vrot.slane %v1940, %v2035
        %v2039 = vadd.f32 %v2032, %v2026
        %v2040 = vadd.f32 %v2036, %v2027
        %s2041 = sld [smem:[#allocation10 + $0x1]]
        %v2042 = vstv %s2041
        %v2043 = vmul.f32 %v2042, %v1947
        %v2044 = vmul.f32 %v2042, %v1948
        %v2045 = vadd.f32 %v1988, %v2043
        %v2046 = vadd.f32 %v1989, %v2044
        %s2047 = sld [smem:[#allocation10 + $0x25]]
        %v2048 = vstv %s2047
        %v2049 = vmul.f32 %v2048, %v1947
        %v2050 = vmul.f32 %v2048, %v1948
        %v2051 = vadd.f32 %v2005, %v2049
        %v2052 = vadd.f32 %v2006, %v2050
        %s2053 = sld [smem:[#allocation10 + $0x49]]
        %v2054 = vstv %s2053
        %v2055 = vmul.f32 %v2054, %v1947
        %v2056 = vmul.f32 %v2054, %v1948
        %v2057 = vadd.f32 %v2022, %v2055
        %v2058 = vadd.f32 %v2023, %v2056
        %s2059 = sld [smem:[#allocation10 + $0x6d]]
        %v2060 = vstv %s2059
        %v2061 = vmul.f32 %v2060, %v1947
        %v2062 = vmul.f32 %v2060, %v1948
        %v2063 = vadd.f32 %v2039, %v2061
        %v2064 = vadd.f32 %v2040, %v2062
        %s2065 = sld [smem:[#allocation10 + $0x2]]
        %v2066 = vstv %s2065
        %v2067 = vmul.f32 %v2066, %v1971
        %v2068 = vmul.f32 %v2066, %v1972
        %v2069 = vadd.f32 %v2045, %v2067
        %v2070 = vadd.f32 %v2046, %v2068
        %s2071 = sld [smem:[#allocation10 + $0x26]]
        %v2072 = vstv %s2071
        %v2073 = vmul.f32 %v2072, %v1971
        %v2074 = vmul.f32 %v2072, %v1972
        %v2075 = vadd.f32 %v2051, %v2073
        %v2076 = vadd.f32 %v2052, %v2074
        %s2077 = sld [smem:[#allocation10 + $0x4a]]
        %v2078 = vstv %s2077
        %v2079 = vmul.f32 %v2078, %v1971
        %v2080 = vmul.f32 %v2078, %v1972
        %v2081 = vadd.f32 %v2057, %v2079
        %v2082 = vadd.f32 %v2058, %v2080
        %s2083 = sld [smem:[#allocation10 + $0x6e]]
        %v2084 = vstv %s2083
        %v2085 = vmul.f32 %v2084, %v1971
        %v2086 = vmul.f32 %v2084, %v1972
        %v2087 = vadd.f32 %v2063, %v2085
        %v2088 = vadd.f32 %v2064, %v2086
        %2089 = vrot.lane.b32.xlu0 %v1851, 1
        %v2090 = vpop.permute.xlu0 %2089
        %2091 = vrot.lane.b32.xlu0 %v1852, 1
        %v2092 = vpop.permute.xlu0 %2091
        %v2093 = vsel %vm680, %v2090, %v2092
        %v2094 = vsel %vm680, %v2092, %v2090
        %v2095 = vmul.f32 %v2094, %v522
        %v2096 = vmul.f32 %v2093, %v523
        %2097 = vrot.lane.b32.xlu0 %v1851, 127
        %v2098 = vpop.permute.xlu0 %2097
        %2099 = vrot.lane.b32.xlu0 %v1852, 127
        %v2100 = vpop.permute.xlu0 %2099
        %v2101 = vsel %vm689, %v2098, %v2100
        %v2102 = vsel %vm689, %v2100, %v2098
        %v2103 = vmul.f32 %v2101, %v518
        %v2104 = vmul.f32 %v2102, %v519
        %s2105 = sld [smem:[#allocation10 + $0x3]]
        %v2106 = vstv %s2105
        %v2107 = vmul.f32 %v2106, %v2095
        %v2108 = vmul.f32 %v2106, %v2096
        %v2109 = vadd.f32 %v2069, %v2107
        %v2110 = vadd.f32 %v2070, %v2108
        %s2111 = sld [smem:[#allocation10 + $0x27]]
        %v2112 = vstv %s2111
        %v2113 = vmul.f32 %v2112, %v2095
        %v2114 = vmul.f32 %v2112, %v2096
        %v2115 = vadd.f32 %v2075, %v2113
        %v2116 = vadd.f32 %v2076, %v2114
        %s2117 = sld [smem:[#allocation10 + $0x4b]]
        %v2118 = vstv %s2117
        %v2119 = vmul.f32 %v2118, %v2095
        %v2120 = vmul.f32 %v2118, %v2096
        %v2121 = vadd.f32 %v2081, %v2119
        %v2122 = vadd.f32 %v2082, %v2120
        %s2123 = sld [smem:[#allocation10 + $0x6f]]
        %v2124 = vstv %s2123
        %v2125 = vmul.f32 %v2124, %v2095
        %v2126 = vmul.f32 %v2124, %v2096
        %v2127 = vadd.f32 %v2087, %v2125
        %v2128 = vadd.f32 %v2088, %v2126
        %s2129 = sld [smem:[#allocation10 + $0x4]]
        %v2130 = vstv %s2129
        %v2131 = vmul.f32 %v2130, %v1851
        %v2132 = vmul.f32 %v2130, %v1852
        %v2133 = vadd.f32 %v2109, %v2131
        %v2134 = vadd.f32 %v2110, %v2132
        %s2135 = sld [smem:[#allocation10 + $0x28]]
        %v2136 = vstv %s2135
        %v2137 = vmul.f32 %v2136, %v1851
        %v2138 = vmul.f32 %v2136, %v1852
        %v2139 = vadd.f32 %v2115, %v2137
        %v2140 = vadd.f32 %v2116, %v2138
        %s2141 = sld [smem:[#allocation10 + $0x4c]]
        %v2142 = vstv %s2141
        %v2143 = vmul.f32 %v2142, %v1851
        %v2144 = vmul.f32 %v2142, %v1852
        %v2145 = vadd.f32 %v2121, %v2143
        %v2146 = vadd.f32 %v2122, %v2144
        %s2147 = sld [smem:[#allocation10 + $0x70]]
        %v2148 = vstv %s2147
        %v2149 = vmul.f32 %v2148, %v1851
        %v2150 = vmul.f32 %v2148, %v1852
        %v2151 = vadd.f32 %v2127, %v2149
        %v2152 = vadd.f32 %v2128, %v2150
        %s2153 = sld [smem:[#allocation10 + $0x5]]
        %v2154 = vstv %s2153
        %v2155 = vmul.f32 %v2154, %v2103
        %v2156 = vmul.f32 %v2154, %v2104
        %v2157 = vadd.f32 %v2133, %v2155
        %v2158 = vadd.f32 %v2134, %v2156
        %s2159 = sld [smem:[#allocation10 + $0x29]]
        %v2160 = vstv %s2159
        %v2161 = vmul.f32 %v2160, %v2103
        %v2162 = vmul.f32 %v2160, %v2104
        %v2163 = vadd.f32 %v2139, %v2161
        %v2164 = vadd.f32 %v2140, %v2162
        %s2165 = sld [smem:[#allocation10 + $0x4d]]
        %v2166 = vstv %s2165
        %v2167 = vmul.f32 %v2166, %v2103
        %v2168 = vmul.f32 %v2166, %v2104
        %v2169 = vadd.f32 %v2145, %v2167
        %v2170 = vadd.f32 %v2146, %v2168
        %s2171 = sld [smem:[#allocation10 + $0x71]]
        %v2172 = vstv %s2171
        %v2173 = vmul.f32 %v2172, %v2103
        %v2174 = vmul.f32 %v2172, %v2104
        %v2175 = vadd.f32 %v2151, %v2173
        %v2176 = vadd.f32 %v2152, %v2174
        %2177 = vrot.lane.b32.xlu0 %v1955, 1
        %v2178 = vpop.permute.xlu0 %2177
        %2179 = vrot.lane.b32.xlu0 %v1956, 1
        %v2180 = vpop.permute.xlu0 %2179
        %v2181 = vsel %vm680, %v2178, %v2180
        %v2182 = vsel %vm680, %v2180, %v2178
        %v2183 = vmul.f32 %v2182, %v522
        %v2184 = vmul.f32 %v2181, %v523
        %2185 = vrot.lane.b32.xlu0 %v1955, 127
        %v2186 = vpop.permute.xlu0 %2185
        %2187 = vrot.lane.b32.xlu0 %v1956, 127
        %v2188 = vpop.permute.xlu0 %2187
        %v2189 = vsel %vm689, %v2186, %v2188
        %v2190 = vsel %vm689, %v2188, %v2186
        %v2191 = vmul.f32 %v2189, %v518
        %v2192 = vmul.f32 %v2190, %v519
        %s2193 = sld [smem:[#allocation10 + $0x6]]
        %v2194 = vstv %s2193
        %v2195 = vmul.f32 %v2194, %v2183
        %v2196 = vmul.f32 %v2194, %v2184
        %v2197 = vadd.f32 %v2157, %v2195
        %v2198 = vadd.f32 %v2158, %v2196
        %s2199 = sld [smem:[#allocation10 + $0x2a]]
        %v2200 = vstv %s2199
        %v2201 = vmul.f32 %v2200, %v2183
        %v2202 = vmul.f32 %v2200, %v2184
        %v2203 = vadd.f32 %v2163, %v2201
        %v2204 = vadd.f32 %v2164, %v2202
        %s2205 = sld [smem:[#allocation10 + $0x4e]]
        %v2206 = vstv %s2205
        %v2207 = vmul.f32 %v2206, %v2183
        %v2208 = vmul.f32 %v2206, %v2184
        %v2209 = vadd.f32 %v2169, %v2207
        %v2210 = vadd.f32 %v2170, %v2208
        %s2211 = sld [smem:[#allocation10 + $0x72]]
        %v2212 = vstv %s2211
        %v2213 = vmul.f32 %v2212, %v2183
        %v2214 = vmul.f32 %v2212, %v2184
        %v2215 = vadd.f32 %v2175, %v2213
        %v2216 = vadd.f32 %v2176, %v2214
        %s2217 = sld [smem:[#allocation10 + $0x7]]
        %v2218 = vstv %s2217
        %v2219 = vmul.f32 %v2218, %v1955
        %v2220 = vmul.f32 %v2218, %v1956
        %v2221 = vadd.f32 %v2197, %v2219
        %v2222 = vadd.f32 %v2198, %v2220
        %s2223 = sld [smem:[#allocation10 + $0x2b]]
        %v2224 = vstv %s2223
        %v2225 = vmul.f32 %v2224, %v1955
        %v2226 = vmul.f32 %v2224, %v1956
        %v2227 = vadd.f32 %v2203, %v2225
        %v2228 = vadd.f32 %v2204, %v2226
        %s2229 = sld [smem:[#allocation10 + $0x4f]]
        %v2230 = vstv %s2229
        %v2231 = vmul.f32 %v2230, %v1955
        %v2232 = vmul.f32 %v2230, %v1956
        %v2233 = vadd.f32 %v2209, %v2231
        %v2234 = vadd.f32 %v2210, %v2232
        %s2235 = sld [smem:[#allocation10 + $0x73]]
        %v2236 = vstv %s2235
        %v2237 = vmul.f32 %v2236, %v1955
        %v2238 = vmul.f32 %v2236, %v1956
        %v2239 = vadd.f32 %v2215, %v2237
        %v2240 = vadd.f32 %v2216, %v2238
        %s2241 = sld [smem:[#allocation10 + $0x8]]
        %v2242 = vstv %s2241
        %v2243 = vmul.f32 %v2242, %v2191
        %v2244 = vmul.f32 %v2242, %v2192
        %v2245 = vadd.f32 %v2221, %v2243
        %v2246 = vadd.f32 %v2222, %v2244
        %s2247 = sld [smem:[#allocation10 + $0x2c]]
        %v2248 = vstv %s2247
        %v2249 = vmul.f32 %v2248, %v2191
        %v2250 = vmul.f32 %v2248, %v2192
        %v2251 = vadd.f32 %v2227, %v2249
        %v2252 = vadd.f32 %v2228, %v2250
        %s2253 = sld [smem:[#allocation10 + $0x50]]
        %v2254 = vstv %s2253
        %v2255 = vmul.f32 %v2254, %v2191
        %v2256 = vmul.f32 %v2254, %v2192
        %v2257 = vadd.f32 %v2233, %v2255
        %v2258 = vadd.f32 %v2234, %v2256
        %s2259 = sld [smem:[#allocation10 + $0x74]]
        %v2260 = vstv %s2259
        %v2261 = vmul.f32 %v2260, %v2191
        %v2262 = vmul.f32 %v2260, %v2192
        %v2263 = vadd.f32 %v2239, %v2261
        %v2264 = vadd.f32 %v2240, %v2262
        %2265 = vrot.lane.b32.xlu0 %v1878, 16
        %v2266 = vpop.permute.xlu0 %2265
        %2267 = vrot.lane.b32.xlu0 %v1879, 16
        %v2268 = vpop.permute.xlu0 %2267
        %v2269 = vsel %vm662, %v2266, %v2268
        %v2270 = vsel %vm662, %v2268, %v2266
        %v2271 = vmul.f32 %v2270, %v530
        %v2272 = vmul.f32 %v2269, %v531
        %2273 = vrot.lane.b32.xlu0 %v1878, 112
        %v2274 = vpop.permute.xlu0 %2273
        %2275 = vrot.lane.b32.xlu0 %v1879, 112
        %v2276 = vpop.permute.xlu0 %2275
        %v2277 = vsel %vm671, %v2274, %v2276
        %v2278 = vsel %vm671, %v2276, %v2274
        %v2279 = vmul.f32 %v2277, %v526
        %v2280 = vmul.f32 %v2278, %v527
        %2281 = vrot.lane.b32.xlu0 %v2271, 1
        %v2282 = vpop.permute.xlu0 %2281
        %2283 = vrot.lane.b32.xlu0 %v2272, 1
        %v2284 = vpop.permute.xlu0 %2283
        %v2285 = vsel %vm680, %v2282, %v2284
        %v2286 = vsel %vm680, %v2284, %v2282
        %v2287 = vmul.f32 %v2286, %v522
        %v2288 = vmul.f32 %v2285, %v523
        %2289 = vrot.lane.b32.xlu0 %v2271, 127
        %v2290 = vpop.permute.xlu0 %2289
        %2291 = vrot.lane.b32.xlu0 %v2272, 127
        %v2292 = vpop.permute.xlu0 %2291
        %v2293 = vsel %vm689, %v2290, %v2292
        %v2294 = vsel %vm689, %v2292, %v2290
        %v2295 = vmul.f32 %v2293, %v518
        %v2296 = vmul.f32 %v2294, %v519
        %s2297 = sld [smem:[#allocation10 + $0x9]]
        %v2298 = vstv %s2297
        %v2299 = vmul.f32 %v2298, %v2287
        %v2300 = vmul.f32 %v2298, %v2288
        %v2301 = vadd.f32 %v2245, %v2299
        %v2302 = vadd.f32 %v2246, %v2300
        %s2303 = sld [smem:[#allocation10 + $0x2d]]
        %v2304 = vstv %s2303
        %v2305 = vmul.f32 %v2304, %v2287
        %v2306 = vmul.f32 %v2304, %v2288
        %v2307 = vadd.f32 %v2251, %v2305
        %v2308 = vadd.f32 %v2252, %v2306
        %s2309 = sld [smem:[#allocation10 + $0x51]]
        %v2310 = vstv %s2309
        %v2311 = vmul.f32 %v2310, %v2287
        %v2312 = vmul.f32 %v2310, %v2288
        %v2313 = vadd.f32 %v2257, %v2311
        %v2314 = vadd.f32 %v2258, %v2312
        %s2315 = sld [smem:[#allocation10 + $0x75]]
        %v2316 = vstv %s2315
        %v2317 = vmul.f32 %v2316, %v2287
        %v2318 = vmul.f32 %v2316, %v2288
        %v2319 = vadd.f32 %v2263, %v2317
        %v2320 = vadd.f32 %v2264, %v2318
        %s2321 = sld [smem:[#allocation10 + $0xa]]
        %v2322 = vstv %s2321
        %v2323 = vmul.f32 %v2322, %v2271
        %v2324 = vmul.f32 %v2322, %v2272
        %v2325 = vadd.f32 %v2301, %v2323
        %v2326 = vadd.f32 %v2302, %v2324
        %s2327 = sld [smem:[#allocation10 + $0x2e]]
        %v2328 = vstv %s2327
        %v2329 = vmul.f32 %v2328, %v2271
        %v2330 = vmul.f32 %v2328, %v2272
        %v2331 = vadd.f32 %v2307, %v2329
        %v2332 = vadd.f32 %v2308, %v2330
        %s2333 = sld [smem:[#allocation10 + $0x52]]
        %v2334 = vstv %s2333
        %v2335 = vmul.f32 %v2334, %v2271
        %v2336 = vmul.f32 %v2334, %v2272
        %v2337 = vadd.f32 %v2313, %v2335
        %v2338 = vadd.f32 %v2314, %v2336
        %s2339 = sld [smem:[#allocation10 + $0x76]]
        %v2340 = vstv %s2339
        %v2341 = vmul.f32 %v2340, %v2271
        %v2342 = vmul.f32 %v2340, %v2272
        %v2343 = vadd.f32 %v2319, %v2341
        %v2344 = vadd.f32 %v2320, %v2342
        %s2345 = sld [smem:[#allocation10 + $0xb]]
        %v2346 = vstv %s2345
        %v2347 = vmul.f32 %v2346, %v2295
        %v2348 = vmul.f32 %v2346, %v2296
        %v2349 = vadd.f32 %v2325, %v2347
        %v2350 = vadd.f32 %v2326, %v2348
        %s2351 = sld [smem:[#allocation10 + $0x2f]]
        %v2352 = vstv %s2351
        %v2353 = vmul.f32 %v2352, %v2295
        %v2354 = vmul.f32 %v2352, %v2296
        %v2355 = vadd.f32 %v2331, %v2353
        %v2356 = vadd.f32 %v2332, %v2354
        %s2357 = sld [smem:[#allocation10 + $0x53]]
        %v2358 = vstv %s2357
        %v2359 = vmul.f32 %v2358, %v2295
        %v2360 = vmul.f32 %v2358, %v2296
        %v2361 = vadd.f32 %v2337, %v2359
        %v2362 = vadd.f32 %v2338, %v2360
        %s2363 = sld [smem:[#allocation10 + $0x77]]
        %v2364 = vstv %s2363
        %v2365 = vmul.f32 %v2364, %v2295
        %v2366 = vmul.f32 %v2364, %v2296
        %v2367 = vadd.f32 %v2343, %v2365
        %v2368 = vadd.f32 %v2344, %v2366
        %2369 = vrot.lane.b32.xlu0 %v1878, 1
        %v2370 = vpop.permute.xlu0 %2369
        %2371 = vrot.lane.b32.xlu0 %v1879, 1
        %v2372 = vpop.permute.xlu0 %2371
        %v2373 = vsel %vm680, %v2370, %v2372
        %v2374 = vsel %vm680, %v2372, %v2370
        %v2375 = vmul.f32 %v2374, %v522
        %v2376 = vmul.f32 %v2373, %v523
        %2377 = vrot.lane.b32.xlu0 %v1878, 127
        %v2378 = vpop.permute.xlu0 %2377
        %2379 = vrot.lane.b32.xlu0 %v1879, 127
        %v2380 = vpop.permute.xlu0 %2379
        %v2381 = vsel %vm689, %v2378, %v2380
        %v2382 = vsel %vm689, %v2380, %v2378
        %v2383 = vmul.f32 %v2381, %v518
        %v2384 = vmul.f32 %v2382, %v519
        %s2385 = sld [smem:[#allocation10 + $0xc]]
        %v2386 = vstv %s2385
        %v2387 = vmul.f32 %v2386, %v2375
        %v2388 = vmul.f32 %v2386, %v2376
        %v2389 = vadd.f32 %v2349, %v2387
        %v2390 = vadd.f32 %v2350, %v2388
        %s2391 = sld [smem:[#allocation10 + $0x30]]
        %v2392 = vstv %s2391
        %v2393 = vmul.f32 %v2392, %v2375
        %v2394 = vmul.f32 %v2392, %v2376
        %v2395 = vadd.f32 %v2355, %v2393
        %v2396 = vadd.f32 %v2356, %v2394
        %s2397 = sld [smem:[#allocation10 + $0x54]]
        %v2398 = vstv %s2397
        %v2399 = vmul.f32 %v2398, %v2375
        %v2400 = vmul.f32 %v2398, %v2376
        %v2401 = vadd.f32 %v2361, %v2399
        %v2402 = vadd.f32 %v2362, %v2400
        %s2403 = sld [smem:[#allocation10 + $0x78]]
        %v2404 = vstv %s2403
        %v2405 = vmul.f32 %v2404, %v2375
        %v2406 = vmul.f32 %v2404, %v2376
        %v2407 = vadd.f32 %v2367, %v2405
        %v2408 = vadd.f32 %v2368, %v2406
        %s2409 = sld [smem:[#allocation10 + $0xd]]
        %v2410 = vstv %s2409
        %v2411 = vmul.f32 %v2410, %v1878
        %v2412 = vmul.f32 %v2410, %v1879
        %v2413 = vadd.f32 %v2389, %v2411
        %v2414 = vadd.f32 %v2390, %v2412
        %s2415 = sld [smem:[#allocation10 + $0x31]]
        %v2416 = vstv %s2415
        %v2417 = vmul.f32 %v2416, %v1878
        %v2418 = vmul.f32 %v2416, %v1879
        %v2419 = vadd.f32 %v2395, %v2417
        %v2420 = vadd.f32 %v2396, %v2418
        %s2421 = sld [smem:[#allocation10 + $0x55]]
        %v2422 = vstv %s2421
        %v2423 = vmul.f32 %v2422, %v1878
        %v2424 = vmul.f32 %v2422, %v1879
        %v2425 = vadd.f32 %v2401, %v2423
        %v2426 = vadd.f32 %v2402, %v2424
        %s2427 = sld [smem:[#allocation10 + $0x79]]
        %v2428 = vstv %s2427
        %v2429 = vmul.f32 %v2428, %v1878
        %v2430 = vmul.f32 %v2428, %v1879
        %v2431 = vadd.f32 %v2407, %v2429
        %v2432 = vadd.f32 %v2408, %v2430
        %s2433 = sld [smem:[#allocation10 + $0xe]]
        %v2434 = vstv %s2433
        %v2435 = vmul.f32 %v2434, %v2383
        %v2436 = vmul.f32 %v2434, %v2384
        %v2437 = vadd.f32 %v2413, %v2435
        %v2438 = vadd.f32 %v2414, %v2436
        %s2439 = sld [smem:[#allocation10 + $0x32]]
        %v2440 = vstv %s2439
        %v2441 = vmul.f32 %v2440, %v2383
        %v2442 = vmul.f32 %v2440, %v2384
        %v2443 = vadd.f32 %v2419, %v2441
        %v2444 = vadd.f32 %v2420, %v2442
        %s2445 = sld [smem:[#allocation10 + $0x56]]
        %v2446 = vstv %s2445
        %v2447 = vmul.f32 %v2446, %v2383
        %v2448 = vmul.f32 %v2446, %v2384
        %v2449 = vadd.f32 %v2425, %v2447
        %v2450 = vadd.f32 %v2426, %v2448
        %s2451 = sld [smem:[#allocation10 + $0x7a]]
        %v2452 = vstv %s2451
        %v2453 = vmul.f32 %v2452, %v2383
        %v2454 = vmul.f32 %v2452, %v2384
        %v2455 = vadd.f32 %v2431, %v2453
        %v2456 = vadd.f32 %v2432, %v2454
        %2457 = vrot.lane.b32.xlu0 %v2279, 1
        %v2458 = vpop.permute.xlu0 %2457
        %2459 = vrot.lane.b32.xlu0 %v2280, 1
        %v2460 = vpop.permute.xlu0 %2459
        %v2461 = vsel %vm680, %v2458, %v2460
        %v2462 = vsel %vm680, %v2460, %v2458
        %v2463 = vmul.f32 %v2462, %v522
        %v2464 = vmul.f32 %v2461, %v523
        %2465 = vrot.lane.b32.xlu0 %v2279, 127
        %v2466 = vpop.permute.xlu0 %2465
        %2467 = vrot.lane.b32.xlu0 %v2280, 127
        %v2468 = vpop.permute.xlu0 %2467
        %v2469 = vsel %vm689, %v2466, %v2468
        %v2470 = vsel %vm689, %v2468, %v2466
        %v2471 = vmul.f32 %v2469, %v518
        %v2472 = vmul.f32 %v2470, %v519
        %s2473 = sld [smem:[#allocation10 + $0xf]]
        %v2474 = vstv %s2473
        %v2475 = vmul.f32 %v2474, %v2463
        %v2476 = vmul.f32 %v2474, %v2464
        %v2477 = vadd.f32 %v2437, %v2475
        %v2478 = vadd.f32 %v2438, %v2476
        %s2479 = sld [smem:[#allocation10 + $0x33]]
        %v2480 = vstv %s2479
        %v2481 = vmul.f32 %v2480, %v2463
        %v2482 = vmul.f32 %v2480, %v2464
        %v2483 = vadd.f32 %v2443, %v2481
        %v2484 = vadd.f32 %v2444, %v2482
        %s2485 = sld [smem:[#allocation10 + $0x57]]
        %v2486 = vstv %s2485
        %v2487 = vmul.f32 %v2486, %v2463
        %v2488 = vmul.f32 %v2486, %v2464
        %v2489 = vadd.f32 %v2449, %v2487
        %v2490 = vadd.f32 %v2450, %v2488
        %s2491 = sld [smem:[#allocation10 + $0x7b]]
        %v2492 = vstv %s2491
        %v2493 = vmul.f32 %v2492, %v2463
        %v2494 = vmul.f32 %v2492, %v2464
        %v2495 = vadd.f32 %v2455, %v2493
        %v2496 = vadd.f32 %v2456, %v2494
        %s2497 = sld [smem:[#allocation10 + $0x10]]
        %v2498 = vstv %s2497
        %v2499 = vmul.f32 %v2498, %v2279
        %v2500 = vmul.f32 %v2498, %v2280
        %v2501 = vadd.f32 %v2477, %v2499
        %v2502 = vadd.f32 %v2478, %v2500
        %s2503 = sld [smem:[#allocation10 + $0x34]]
        %v2504 = vstv %s2503
        %v2505 = vmul.f32 %v2504, %v2279
        %v2506 = vmul.f32 %v2504, %v2280
        %v2507 = vadd.f32 %v2483, %v2505
        %v2508 = vadd.f32 %v2484, %v2506
        %s2509 = sld [smem:[#allocation10 + $0x58]]
        %v2510 = vstv %s2509
        %v2511 = vmul.f32 %v2510, %v2279
        %v2512 = vmul.f32 %v2510, %v2280
        %v2513 = vadd.f32 %v2489, %v2511
        %v2514 = vadd.f32 %v2490, %v2512
        %s2515 = sld [smem:[#allocation10 + $0x7c]]
        %v2516 = vstv %s2515
        %v2517 = vmul.f32 %v2516, %v2279
        %v2518 = vmul.f32 %v2516, %v2280
        %v2519 = vadd.f32 %v2495, %v2517
        %v2520 = vadd.f32 %v2496, %v2518
        %s2521 = sld [smem:[#allocation10 + $0x11]]
        %v2522 = vstv %s2521
        %v2523 = vmul.f32 %v2522, %v2471
        %v2524 = vmul.f32 %v2522, %v2472
        %v2525 = vadd.f32 %v2501, %v2523
        %v2526 = vadd.f32 %v2502, %v2524
        %s2527 = sld [smem:[#allocation10 + $0x35]]
        %v2528 = vstv %s2527
        %v2529 = vmul.f32 %v2528, %v2471
        %v2530 = vmul.f32 %v2528, %v2472
        %v2531 = vadd.f32 %v2507, %v2529
        %v2532 = vadd.f32 %v2508, %v2530
        %s2533 = sld [smem:[#allocation10 + $0x59]]
        %v2534 = vstv %s2533
        %v2535 = vmul.f32 %v2534, %v2471
        %v2536 = vmul.f32 %v2534, %v2472
        %v2537 = vadd.f32 %v2513, %v2535
        %v2538 = vadd.f32 %v2514, %v2536
        %s2539 = sld [smem:[#allocation10 + $0x7d]]
        %v2540 = vstv %s2539
        %v2541 = vmul.f32 %v2540, %v2471
        %v2542 = vmul.f32 %v2540, %v2472
        %v2543 = vadd.f32 %v2519, %v2541
        %v2544 = vadd.f32 %v2520, %v2542
        %2545 = vrot.lane.b32.xlu0 %v1905, 16
        %v2546 = vpop.permute.xlu0 %2545
        %2547 = vrot.lane.b32.xlu0 %v1906, 16
        %v2548 = vpop.permute.xlu0 %2547
        %v2549 = vsel %vm662, %v2546, %v2548
        %v2550 = vsel %vm662, %v2548, %v2546
        %v2551 = vmul.f32 %v2550, %v530
        %v2552 = vmul.f32 %v2549, %v531
        %2553 = vrot.lane.b32.xlu0 %v1905, 112
        %v2554 = vpop.permute.xlu0 %2553
        %2555 = vrot.lane.b32.xlu0 %v1906, 112
        %v2556 = vpop.permute.xlu0 %2555
        %v2557 = vsel %vm671, %v2554, %v2556
        %v2558 = vsel %vm671, %v2556, %v2554
        %v2559 = vmul.f32 %v2557, %v526
        %v2560 = vmul.f32 %v2558, %v527
        %2561 = vrot.lane.b32.xlu0 %v2551, 1
        %v2562 = vpop.permute.xlu0 %2561
        %2563 = vrot.lane.b32.xlu0 %v2552, 1
        %v2564 = vpop.permute.xlu0 %2563
        %v2565 = vsel %vm680, %v2562, %v2564
        %v2566 = vsel %vm680, %v2564, %v2562
        %v2567 = vmul.f32 %v2566, %v522
        %v2568 = vmul.f32 %v2565, %v523
        %2569 = vrot.lane.b32.xlu0 %v2551, 127
        %v2570 = vpop.permute.xlu0 %2569
        %2571 = vrot.lane.b32.xlu0 %v2552, 127
        %v2572 = vpop.permute.xlu0 %2571
        %v2573 = vsel %vm689, %v2570, %v2572
        %v2574 = vsel %vm689, %v2572, %v2570
        %v2575 = vmul.f32 %v2573, %v518
        %v2576 = vmul.f32 %v2574, %v519
        %s2577 = sld [smem:[#allocation10 + $0x12]]
        %v2578 = vstv %s2577
        %v2579 = vmul.f32 %v2578, %v2567
        %v2580 = vmul.f32 %v2578, %v2568
        %v2581 = vadd.f32 %v2525, %v2579
        %v2582 = vadd.f32 %v2526, %v2580
        %s2583 = sld [smem:[#allocation10 + $0x36]]
        %v2584 = vstv %s2583
        %v2585 = vmul.f32 %v2584, %v2567
        %v2586 = vmul.f32 %v2584, %v2568
        %v2587 = vadd.f32 %v2531, %v2585
        %v2588 = vadd.f32 %v2532, %v2586
        %s2589 = sld [smem:[#allocation10 + $0x5a]]
        %v2590 = vstv %s2589
        %v2591 = vmul.f32 %v2590, %v2567
        %v2592 = vmul.f32 %v2590, %v2568
        %v2593 = vadd.f32 %v2537, %v2591
        %v2594 = vadd.f32 %v2538, %v2592
        %s2595 = sld [smem:[#allocation10 + $0x7e]]
        %v2596 = vstv %s2595
        %v2597 = vmul.f32 %v2596, %v2567
        %v2598 = vmul.f32 %v2596, %v2568
        %v2599 = vadd.f32 %v2543, %v2597
        %v2600 = vadd.f32 %v2544, %v2598
        %s2601 = sld [smem:[#allocation10 + $0x13]]
        %v2602 = vstv %s2601
        %v2603 = vmul.f32 %v2602, %v2551
        %v2604 = vmul.f32 %v2602, %v2552
        %v2605 = vadd.f32 %v2581, %v2603
        %v2606 = vadd.f32 %v2582, %v2604
        %s2607 = sld [smem:[#allocation10 + $0x37]]
        %v2608 = vstv %s2607
        %v2609 = vmul.f32 %v2608, %v2551
        %v2610 = vmul.f32 %v2608, %v2552
        %v2611 = vadd.f32 %v2587, %v2609
        %v2612 = vadd.f32 %v2588, %v2610
        %s2613 = sld [smem:[#allocation10 + $0x5b]]
        %v2614 = vstv %s2613
        %v2615 = vmul.f32 %v2614, %v2551
        %v2616 = vmul.f32 %v2614, %v2552
        %v2617 = vadd.f32 %v2593, %v2615
        %v2618 = vadd.f32 %v2594, %v2616
        %s2619 = sld [smem:[#allocation10 + $0x7f]]
        %v2620 = vstv %s2619
        %v2621 = vmul.f32 %v2620, %v2551
        %v2622 = vmul.f32 %v2620, %v2552
        %v2623 = vadd.f32 %v2599, %v2621
        %v2624 = vadd.f32 %v2600, %v2622
        %s2625 = sld [smem:[#allocation10 + $0x14]]
        %v2626 = vstv %s2625
        %v2627 = vmul.f32 %v2626, %v2575
        %v2628 = vmul.f32 %v2626, %v2576
        %v2629 = vadd.f32 %v2605, %v2627
        %v2630 = vadd.f32 %v2606, %v2628
        %s2631 = sld [smem:[#allocation10 + $0x38]]
        %v2632 = vstv %s2631
        %v2633 = vmul.f32 %v2632, %v2575
        %v2634 = vmul.f32 %v2632, %v2576
        %v2635 = vadd.f32 %v2611, %v2633
        %v2636 = vadd.f32 %v2612, %v2634
        %s2637 = sld [smem:[#allocation10 + $0x5c]]
        %v2638 = vstv %s2637
        %v2639 = vmul.f32 %v2638, %v2575
        %v2640 = vmul.f32 %v2638, %v2576
        %v2641 = vadd.f32 %v2617, %v2639
        %v2642 = vadd.f32 %v2618, %v2640
        %s2643 = sld [smem:[#allocation10 + $0x80]]
        %v2644 = vstv %s2643
        %v2645 = vmul.f32 %v2644, %v2575
        %v2646 = vmul.f32 %v2644, %v2576
        %v2647 = vadd.f32 %v2623, %v2645
        %v2648 = vadd.f32 %v2624, %v2646
        %2649 = vrot.lane.b32.xlu0 %v1905, 1
        %v2650 = vpop.permute.xlu0 %2649
        %2651 = vrot.lane.b32.xlu0 %v1906, 1
        %v2652 = vpop.permute.xlu0 %2651
        %v2653 = vsel %vm680, %v2650, %v2652
        %v2654 = vsel %vm680, %v2652, %v2650
        %v2655 = vmul.f32 %v2654, %v522
        %v2656 = vmul.f32 %v2653, %v523
        %2657 = vrot.lane.b32.xlu0 %v1905, 127
        %v2658 = vpop.permute.xlu0 %2657
        %2659 = vrot.lane.b32.xlu0 %v1906, 127
        %v2660 = vpop.permute.xlu0 %2659
        %v2661 = vsel %vm689, %v2658, %v2660
        %v2662 = vsel %vm689, %v2660, %v2658
        %v2663 = vmul.f32 %v2661, %v518
        %v2664 = vmul.f32 %v2662, %v519
        %s2665 = sld [smem:[#allocation10 + $0x15]]
        %v2666 = vstv %s2665
        %v2667 = vmul.f32 %v2666, %v2655
        %v2668 = vmul.f32 %v2666, %v2656
        %v2669 = vadd.f32 %v2629, %v2667
        %v2670 = vadd.f32 %v2630, %v2668
        %s2671 = sld [smem:[#allocation10 + $0x39]]
        %v2672 = vstv %s2671
        %v2673 = vmul.f32 %v2672, %v2655
        %v2674 = vmul.f32 %v2672, %v2656
        %v2675 = vadd.f32 %v2635, %v2673
        %v2676 = vadd.f32 %v2636, %v2674
        %s2677 = sld [smem:[#allocation10 + $0x5d]]
        %v2678 = vstv %s2677
        %v2679 = vmul.f32 %v2678, %v2655
        %v2680 = vmul.f32 %v2678, %v2656
        %v2681 = vadd.f32 %v2641, %v2679
        %v2682 = vadd.f32 %v2642, %v2680
        %s2683 = sld [smem:[#allocation10 + $0x81]]
        %v2684 = vstv %s2683
        %v2685 = vmul.f32 %v2684, %v2655
        %v2686 = vmul.f32 %v2684, %v2656
        %v2687 = vadd.f32 %v2647, %v2685
        %v2688 = vadd.f32 %v2648, %v2686
        %s2689 = sld [smem:[#allocation10 + $0x16]]
        %v2690 = vstv %s2689
        %v2691 = vmul.f32 %v2690, %v1905
        %v2692 = vmul.f32 %v2690, %v1906
        %v2693 = vadd.f32 %v2669, %v2691
        %v2694 = vadd.f32 %v2670, %v2692
        %s2695 = sld [smem:[#allocation10 + $0x3a]]
        %v2696 = vstv %s2695
        %v2697 = vmul.f32 %v2696, %v1905
        %v2698 = vmul.f32 %v2696, %v1906
        %v2699 = vadd.f32 %v2675, %v2697
        %v2700 = vadd.f32 %v2676, %v2698
        %s2701 = sld [smem:[#allocation10 + $0x5e]]
        %v2702 = vstv %s2701
        %v2703 = vmul.f32 %v2702, %v1905
        %v2704 = vmul.f32 %v2702, %v1906
        %v2705 = vadd.f32 %v2681, %v2703
        %v2706 = vadd.f32 %v2682, %v2704
        %s2707 = sld [smem:[#allocation10 + $0x82]]
        %v2708 = vstv %s2707
        %v2709 = vmul.f32 %v2708, %v1905
        %v2710 = vmul.f32 %v2708, %v1906
        %v2711 = vadd.f32 %v2687, %v2709
        %v2712 = vadd.f32 %v2688, %v2710
        %s2713 = sld [smem:[#allocation10 + $0x17]]
        %v2714 = vstv %s2713
        %v2715 = vmul.f32 %v2714, %v2663
        %v2716 = vmul.f32 %v2714, %v2664
        %v2717 = vadd.f32 %v2693, %v2715
        %v2718 = vadd.f32 %v2694, %v2716
        %s2719 = sld [smem:[#allocation10 + $0x3b]]
        %v2720 = vstv %s2719
        %v2721 = vmul.f32 %v2720, %v2663
        %v2722 = vmul.f32 %v2720, %v2664
        %v2723 = vadd.f32 %v2699, %v2721
        %v2724 = vadd.f32 %v2700, %v2722
        %s2725 = sld [smem:[#allocation10 + $0x5f]]
        %v2726 = vstv %s2725
        %v2727 = vmul.f32 %v2726, %v2663
        %v2728 = vmul.f32 %v2726, %v2664
        %v2729 = vadd.f32 %v2705, %v2727
        %v2730 = vadd.f32 %v2706, %v2728
        %s2731 = sld [smem:[#allocation10 + $0x83]]
        %v2732 = vstv %s2731
        %v2733 = vmul.f32 %v2732, %v2663
        %v2734 = vmul.f32 %v2732, %v2664
        %v2735 = vadd.f32 %v2711, %v2733
        %v2736 = vadd.f32 %v2712, %v2734
        %2737 = vrot.lane.b32.xlu0 %v2559, 1
        %v2738 = vpop.permute.xlu0 %2737
        %2739 = vrot.lane.b32.xlu0 %v2560, 1
        %v2740 = vpop.permute.xlu0 %2739
        %v2741 = vsel %vm680, %v2738, %v2740
        %v2742 = vsel %vm680, %v2740, %v2738
        %v2743 = vmul.f32 %v2742, %v522
        %v2744 = vmul.f32 %v2741, %v523
        %2745 = vrot.lane.b32.xlu0 %v2559, 127
        %v2746 = vpop.permute.xlu0 %2745
        %2747 = vrot.lane.b32.xlu0 %v2560, 127
        %v2748 = vpop.permute.xlu0 %2747
        %v2749 = vsel %vm689, %v2746, %v2748
        %v2750 = vsel %vm689, %v2748, %v2746
        %v2751 = vmul.f32 %v2749, %v518
        %v2752 = vmul.f32 %v2750, %v519
        %s2753 = sld [smem:[#allocation10 + $0x18]]
        %v2754 = vstv %s2753
        %v2755 = vmul.f32 %v2754, %v2743
        %v2756 = vmul.f32 %v2754, %v2744
        %v2757 = vadd.f32 %v2717, %v2755
        %v2758 = vadd.f32 %v2718, %v2756
        %s2759 = sld [smem:[#allocation10 + $0x3c]]
        %v2760 = vstv %s2759
        %v2761 = vmul.f32 %v2760, %v2743
        %v2762 = vmul.f32 %v2760, %v2744
        %v2763 = vadd.f32 %v2723, %v2761
        %v2764 = vadd.f32 %v2724, %v2762
        %s2765 = sld [smem:[#allocation10 + $0x60]]
        %v2766 = vstv %s2765
        %v2767 = vmul.f32 %v2766, %v2743
        %v2768 = vmul.f32 %v2766, %v2744
        %v2769 = vadd.f32 %v2729, %v2767
        %v2770 = vadd.f32 %v2730, %v2768
        %s2771 = sld [smem:[#allocation10 + $0x84]]
        %v2772 = vstv %s2771
        %v2773 = vmul.f32 %v2772, %v2743
        %v2774 = vmul.f32 %v2772, %v2744
        %v2775 = vadd.f32 %v2735, %v2773
        %v2776 = vadd.f32 %v2736, %v2774
        %s2777 = sld [smem:[#allocation10 + $0x19]]
        %v2778 = vstv %s2777
        %v2779 = vmul.f32 %v2778, %v2559
        %v2780 = vmul.f32 %v2778, %v2560
        %v2781 = vadd.f32 %v2757, %v2779
        %v2782 = vadd.f32 %v2758, %v2780
        %s2783 = sld [smem:[#allocation10 + $0x3d]]
        %v2784 = vstv %s2783
        %v2785 = vmul.f32 %v2784, %v2559
        %v2786 = vmul.f32 %v2784, %v2560
        %v2787 = vadd.f32 %v2763, %v2785
        %v2788 = vadd.f32 %v2764, %v2786
        %s2789 = sld [smem:[#allocation10 + $0x61]]
        %v2790 = vstv %s2789
        %v2791 = vmul.f32 %v2790, %v2559
        %v2792 = vmul.f32 %v2790, %v2560
        %v2793 = vadd.f32 %v2769, %v2791
        %v2794 = vadd.f32 %v2770, %v2792
        %s2795 = sld [smem:[#allocation10 + $0x85]]
        %v2796 = vstv %s2795
        %v2797 = vmul.f32 %v2796, %v2559
        %v2798 = vmul.f32 %v2796, %v2560
        %v2799 = vadd.f32 %v2775, %v2797
        %v2800 = vadd.f32 %v2776, %v2798
        %s2801 = sld [smem:[#allocation10 + $0x1a]]
        %v2802 = vstv %s2801
        %v2803 = vmul.f32 %v2802, %v2751
        %v2804 = vmul.f32 %v2802, %v2752
        %v2805 = vadd.f32 %v2781, %v2803
        %v2806 = vadd.f32 %v2782, %v2804
        %s2807 = sld [smem:[#allocation10 + $0x3e]]
        %v2808 = vstv %s2807
        %v2809 = vmul.f32 %v2808, %v2751
        %v2810 = vmul.f32 %v2808, %v2752
        %v2811 = vadd.f32 %v2787, %v2809
        %v2812 = vadd.f32 %v2788, %v2810
        %s2813 = sld [smem:[#allocation10 + $0x62]]
        %v2814 = vstv %s2813
        %v2815 = vmul.f32 %v2814, %v2751
        %v2816 = vmul.f32 %v2814, %v2752
        %v2817 = vadd.f32 %v2793, %v2815
        %v2818 = vadd.f32 %v2794, %v2816
        %s2819 = sld [smem:[#allocation10 + $0x86]]
        %v2820 = vstv %s2819
        %v2821 = vmul.f32 %v2820, %v2751
        %v2822 = vmul.f32 %v2820, %v2752
        %v2823 = vadd.f32 %v2799, %v2821
        %v2824 = vadd.f32 %v2800, %v2822
        %2825 = vrot.lane.b32.xlu0 %v1932, 16
        %v2826 = vpop.permute.xlu0 %2825
        %2827 = vrot.lane.b32.xlu0 %v1933, 16
        %v2828 = vpop.permute.xlu0 %2827
        %v2829 = vsel %vm662, %v2826, %v2828
        %v2830 = vsel %vm662, %v2828, %v2826
        %v2831 = vmul.f32 %v2830, %v530
        %v2832 = vmul.f32 %v2829, %v531
        %2833 = vrot.lane.b32.xlu0 %v1932, 112
        %v2834 = vpop.permute.xlu0 %2833
        %2835 = vrot.lane.b32.xlu0 %v1933, 112
        %v2836 = vpop.permute.xlu0 %2835
        %v2837 = vsel %vm671, %v2834, %v2836
        %v2838 = vsel %vm671, %v2836, %v2834
        %v2839 = vmul.f32 %v2837, %v526
        %v2840 = vmul.f32 %v2838, %v527
        %2841 = vrot.lane.b32.xlu0 %v2831, 1
        %v2842 = vpop.permute.xlu0 %2841
        %2843 = vrot.lane.b32.xlu0 %v2832, 1
        %v2844 = vpop.permute.xlu0 %2843
        %v2845 = vsel %vm680, %v2842, %v2844
        %v2846 = vsel %vm680, %v2844, %v2842
        %v2847 = vmul.f32 %v2846, %v522
        %v2848 = vmul.f32 %v2845, %v523
        %2849 = vrot.lane.b32.xlu0 %v2831, 127
        %v2850 = vpop.permute.xlu0 %2849
        %2851 = vrot.lane.b32.xlu0 %v2832, 127
        %v2852 = vpop.permute.xlu0 %2851
        %v2853 = vsel %vm689, %v2850, %v2852
        %v2854 = vsel %vm689, %v2852, %v2850
        %v2855 = vmul.f32 %v2853, %v518
        %v2856 = vmul.f32 %v2854, %v519
        %s2857 = sld [smem:[#allocation10 + $0x1b]]
        %v2858 = vstv %s2857
        %v2859 = vmul.f32 %v2858, %v2847
        %v2860 = vmul.f32 %v2858, %v2848
        %v2861 = vadd.f32 %v2805, %v2859
        %v2862 = vadd.f32 %v2806, %v2860
        %s2863 = sld [smem:[#allocation10 + $0x3f]]
        %v2864 = vstv %s2863
        %v2865 = vmul.f32 %v2864, %v2847
        %v2866 = vmul.f32 %v2864, %v2848
        %v2867 = vadd.f32 %v2811, %v2865
        %v2868 = vadd.f32 %v2812, %v2866
        %s2869 = sld [smem:[#allocation10 + $0x63]]
        %v2870 = vstv %s2869
        %v2871 = vmul.f32 %v2870, %v2847
        %v2872 = vmul.f32 %v2870, %v2848
        %v2873 = vadd.f32 %v2817, %v2871
        %v2874 = vadd.f32 %v2818, %v2872
        %s2875 = sld [smem:[#allocation10 + $0x87]]
        %v2876 = vstv %s2875
        %v2877 = vmul.f32 %v2876, %v2847
        %v2878 = vmul.f32 %v2876, %v2848
        %v2879 = vadd.f32 %v2823, %v2877
        %v2880 = vadd.f32 %v2824, %v2878
        %s2881 = sld [smem:[#allocation10 + $0x1c]]
        %v2882 = vstv %s2881
        %v2883 = vmul.f32 %v2882, %v2831
        %v2884 = vmul.f32 %v2882, %v2832
        %v2885 = vadd.f32 %v2861, %v2883
        %v2886 = vadd.f32 %v2862, %v2884
        %s2887 = sld [smem:[#allocation10 + $0x40]]
        %v2888 = vstv %s2887
        %v2889 = vmul.f32 %v2888, %v2831
        %v2890 = vmul.f32 %v2888, %v2832
        %v2891 = vadd.f32 %v2867, %v2889
        %v2892 = vadd.f32 %v2868, %v2890
        %s2893 = sld [smem:[#allocation10 + $0x64]]
        %v2894 = vstv %s2893
        %v2895 = vmul.f32 %v2894, %v2831
        %v2896 = vmul.f32 %v2894, %v2832
        %v2897 = vadd.f32 %v2873, %v2895
        %v2898 = vadd.f32 %v2874, %v2896
        %s2899 = sld [smem:[#allocation10 + $0x88]]
        %v2900 = vstv %s2899
        %v2901 = vmul.f32 %v2900, %v2831
        %v2902 = vmul.f32 %v2900, %v2832
        %v2903 = vadd.f32 %v2879, %v2901
        %v2904 = vadd.f32 %v2880, %v2902
        %s2905 = sld [smem:[#allocation10 + $0x1d]]
        %v2906 = vstv %s2905
        %v2907 = vmul.f32 %v2906, %v2855
        %v2908 = vmul.f32 %v2906, %v2856
        %v2909 = vadd.f32 %v2885, %v2907
        %v2910 = vadd.f32 %v2886, %v2908
        %s2911 = sld [smem:[#allocation10 + $0x41]]
        %v2912 = vstv %s2911
        %v2913 = vmul.f32 %v2912, %v2855
        %v2914 = vmul.f32 %v2912, %v2856
        %v2915 = vadd.f32 %v2891, %v2913
        %v2916 = vadd.f32 %v2892, %v2914
        %s2917 = sld [smem:[#allocation10 + $0x65]]
        %v2918 = vstv %s2917
        %v2919 = vmul.f32 %v2918, %v2855
        %v2920 = vmul.f32 %v2918, %v2856
        %v2921 = vadd.f32 %v2897, %v2919
        %v2922 = vadd.f32 %v2898, %v2920
        %s2923 = sld [smem:[#allocation10 + $0x89]]
        %v2924 = vstv %s2923
        %v2925 = vmul.f32 %v2924, %v2855
        %v2926 = vmul.f32 %v2924, %v2856
        %v2927 = vadd.f32 %v2903, %v2925
        %v2928 = vadd.f32 %v2904, %v2926
        %2929 = vrot.lane.b32.xlu0 %v1932, 1
        %v2930 = vpop.permute.xlu0 %2929
        %2931 = vrot.lane.b32.xlu0 %v1933, 1
        %v2932 = vpop.permute.xlu0 %2931
        %v2933 = vsel %vm680, %v2930, %v2932
        %v2934 = vsel %vm680, %v2932, %v2930
        %v2935 = vmul.f32 %v2934, %v522
        %v2936 = vmul.f32 %v2933, %v523
        %2937 = vrot.lane.b32.xlu0 %v1932, 127
        %v2938 = vpop.permute.xlu0 %2937
        %2939 = vrot.lane.b32.xlu0 %v1933, 127
        %v2940 = vpop.permute.xlu0 %2939
        %v2941 = vsel %vm689, %v2938, %v2940
        %v2942 = vsel %vm689, %v2940, %v2938
        %v2943 = vmul.f32 %v2941, %v518
        %v2944 = vmul.f32 %v2942, %v519
        %s2945 = sld [smem:[#allocation10 + $0x1e]]
        %v2946 = vstv %s2945
        %v2947 = vmul.f32 %v2946, %v2935
        %v2948 = vmul.f32 %v2946, %v2936
        %v2949 = vadd.f32 %v2909, %v2947
        %v2950 = vadd.f32 %v2910, %v2948
        %s2951 = sld [smem:[#allocation10 + $0x42]]
        %v2952 = vstv %s2951
        %v2953 = vmul.f32 %v2952, %v2935
        %v2954 = vmul.f32 %v2952, %v2936
        %v2955 = vadd.f32 %v2915, %v2953
        %v2956 = vadd.f32 %v2916, %v2954
        %s2957 = sld [smem:[#allocation10 + $0x66]]
        %v2958 = vstv %s2957
        %v2959 = vmul.f32 %v2958, %v2935
        %v2960 = vmul.f32 %v2958, %v2936
        %v2961 = vadd.f32 %v2921, %v2959
        %v2962 = vadd.f32 %v2922, %v2960
        %s2963 = sld [smem:[#allocation10 + $0x8a]]
        %v2964 = vstv %s2963
        %v2965 = vmul.f32 %v2964, %v2935
        %v2966 = vmul.f32 %v2964, %v2936
        %v2967 = vadd.f32 %v2927, %v2965
        %v2968 = vadd.f32 %v2928, %v2966
        %s2969 = sld [smem:[#allocation10 + $0x1f]]
        %v2970 = vstv %s2969
        %v2971 = vmul.f32 %v2970, %v1932
        %v2972 = vmul.f32 %v2970, %v1933
        %v2973 = vadd.f32 %v2949, %v2971
        %v2974 = vadd.f32 %v2950, %v2972
        %s2975 = sld [smem:[#allocation10 + $0x43]]
        %v2976 = vstv %s2975
        %v2977 = vmul.f32 %v2976, %v1932
        %v2978 = vmul.f32 %v2976, %v1933
        %v2979 = vadd.f32 %v2955, %v2977
        %v2980 = vadd.f32 %v2956, %v2978
        %s2981 = sld [smem:[#allocation10 + $0x67]]
        %v2982 = vstv %s2981
        %v2983 = vmul.f32 %v2982, %v1932
        %v2984 = vmul.f32 %v2982, %v1933
        %v2985 = vadd.f32 %v2961, %v2983
        %v2986 = vadd.f32 %v2962, %v2984
        %s2987 = sld [smem:[#allocation10 + $0x8b]]
        %v2988 = vstv %s2987
        %v2989 = vmul.f32 %v2988, %v1932
        %v2990 = vmul.f32 %v2988, %v1933
        %v2991 = vadd.f32 %v2967, %v2989
        %v2992 = vadd.f32 %v2968, %v2990
        %s2993 = sld [smem:[#allocation10 + $0x20]]
        %v2994 = vstv %s2993
        %v2995 = vmul.f32 %v2994, %v2943
        %v2996 = vmul.f32 %v2994, %v2944
        %v2997 = vadd.f32 %v2973, %v2995
        %v2998 = vadd.f32 %v2974, %v2996
        %s2999 = sld [smem:[#allocation10 + $0x44]]
        %v3000 = vstv %s2999
        %v3001 = vmul.f32 %v3000, %v2943
        %v3002 = vmul.f32 %v3000, %v2944
        %v3003 = vadd.f32 %v2979, %v3001
        %v3004 = vadd.f32 %v2980, %v3002
        %s3005 = sld [smem:[#allocation10 + $0x68]]
        %v3006 = vstv %s3005
        %v3007 = vmul.f32 %v3006, %v2943
        %v3008 = vmul.f32 %v3006, %v2944
        %v3009 = vadd.f32 %v2985, %v3007
        %v3010 = vadd.f32 %v2986, %v3008
        %s3011 = sld [smem:[#allocation10 + $0x8c]]
        %v3012 = vstv %s3011
        %v3013 = vmul.f32 %v3012, %v2943
        %v3014 = vmul.f32 %v3012, %v2944
        %v3015 = vadd.f32 %v2991, %v3013
        %v3016 = vadd.f32 %v2992, %v3014
        %3017 = vrot.lane.b32.xlu0 %v2839, 1
        %v3018 = vpop.permute.xlu0 %3017
        %3019 = vrot.lane.b32.xlu0 %v2840, 1
        %v3020 = vpop.permute.xlu0 %3019
        %v3021 = vsel %vm680, %v3018, %v3020
        %v3022 = vsel %vm680, %v3020, %v3018
        %v3023 = vmul.f32 %v3022, %v522
        %v3024 = vmul.f32 %v3021, %v523
        %3025 = vrot.lane.b32.xlu0 %v2839, 127
        %v3026 = vpop.permute.xlu0 %3025
        %3027 = vrot.lane.b32.xlu0 %v2840, 127
        %v3028 = vpop.permute.xlu0 %3027
        %v3029 = vsel %vm689, %v3026, %v3028
        %v3030 = vsel %vm689, %v3028, %v3026
        %v3031 = vmul.f32 %v3029, %v518
        %v3032 = vmul.f32 %v3030, %v519
        %s3033 = sld [smem:[#allocation10 + $0x21]]
        %v3034 = vstv %s3033
        %v3035 = vmul.f32 %v3034, %v3023
        %v3036 = vmul.f32 %v3034, %v3024
        %v3037 = vadd.f32 %v2997, %v3035
        %v3038 = vadd.f32 %v2998, %v3036
        %s3039 = sld [smem:[#allocation10 + $0x45]]
        %v3040 = vstv %s3039
        %v3041 = vmul.f32 %v3040, %v3023
        %v3042 = vmul.f32 %v3040, %v3024
        %v3043 = vadd.f32 %v3003, %v3041
        %v3044 = vadd.f32 %v3004, %v3042
        %s3045 = sld [smem:[#allocation10 + $0x69]]
        %v3046 = vstv %s3045
        %v3047 = vmul.f32 %v3046, %v3023
        %v3048 = vmul.f32 %v3046, %v3024
        %v3049 = vadd.f32 %v3009, %v3047
        %v3050 = vadd.f32 %v3010, %v3048
        %s3051 = sld [smem:[#allocation10 + $0x8d]]
        %v3052 = vstv %s3051
        %v3053 = vmul.f32 %v3052, %v3023
        %v3054 = vmul.f32 %v3052, %v3024
        %v3055 = vadd.f32 %v3015, %v3053
        %v3056 = vadd.f32 %v3016, %v3054
        %s3057 = sld [smem:[#allocation10 + $0x22]]
        %v3058 = vstv %s3057
        %v3059 = vmul.f32 %v3058, %v2839
        %v3060 = vmul.f32 %v3058, %v2840
        %v3061 = vadd.f32 %v3037, %v3059
        %v3062 = vadd.f32 %v3038, %v3060
        %s3063 = sld [smem:[#allocation10 + $0x46]]
        %v3064 = vstv %s3063
        %v3065 = vmul.f32 %v3064, %v2839
        %v3066 = vmul.f32 %v3064, %v2840
        %v3067 = vadd.f32 %v3043, %v3065
        %v3068 = vadd.f32 %v3044, %v3066
        %s3069 = sld [smem:[#allocation10 + $0x6a]]
        %v3070 = vstv %s3069
        %v3071 = vmul.f32 %v3070, %v2839
        %v3072 = vmul.f32 %v3070, %v2840
        %v3073 = vadd.f32 %v3049, %v3071
        %v3074 = vadd.f32 %v3050, %v3072
        %s3075 = sld [smem:[#allocation10 + $0x8e]]
        %v3076 = vstv %s3075
        %v3077 = vmul.f32 %v3076, %v2839
        %v3078 = vmul.f32 %v3076, %v2840
        %v3079 = vadd.f32 %v3055, %v3077
        %v3080 = vadd.f32 %v3056, %v3078
        %s3081 = sld [smem:[#allocation10 + $0x23]]
        %v3082 = vstv %s3081
        %v3083 = vmul.f32 %v3082, %v3031
        %v3084 = vmul.f32 %v3082, %v3032
        %v3085 = vadd.f32 %v3061, %v3083
        %v3086 = vadd.f32 %v3062, %v3084
        %s3087 = sld [smem:[#allocation10 + $0x47]]
        %v3088 = vstv %s3087
        %v3089 = vmul.f32 %v3088, %v3031
        %v3090 = vmul.f32 %v3088, %v3032
        %v3091 = vadd.f32 %v3067, %v3089
        %v3092 = vadd.f32 %v3068, %v3090
        %s3093 = sld [smem:[#allocation10 + $0x6b]]
        %v3094 = vstv %s3093
        %v3095 = vmul.f32 %v3094, %v3031
        %v3096 = vmul.f32 %v3094, %v3032
        %v3097 = vadd.f32 %v3073, %v3095
        %v3098 = vadd.f32 %v3074, %v3096
        %s3099 = sld [smem:[#allocation10 + $0x8f]]
        %v3100 = vstv %s3099
        %v3101 = vmul.f32 %v3100, %v3031
        %v3102 = vmul.f32 %v3100, %v3032
        %v3103 = vadd.f32 %v3079, %v3101
        %v3104 = vadd.f32 %v3080, %v3102
        %v3105 = vadd.f32 %v3085, %v3086
        %3106 = vadd.xlane.f32.xlu0 %v3105
        %v3107 = vpop.xlane.xlu0 %3106
        %v3108 = vmul.f32 %v3085, %v3085
        %v3109 = vmul.f32 %v3086, %v3086
        %v3110 = vadd.f32 %v3108, %v3109
        %3111 = vadd.xlane.f32.xlu0 %v3110
        %v3112 = vpop.xlane.xlu0 %3111
        %v3113 = vmul.f32 %v3107, 0.00390625
        %v3114 = vmul.f32 %v3112, 0.00390625
        %v3115 = vmul.f32 %v3113, %v3113
        %v3116 = vsub.f32 %v3114, %v3115
        %v3117 = vadd.f32 %v3116, 1e-05
        %v3118 = vrsqrt.pop %v3117
        %s3119 = sld [smem:[#allocation12]]
        %v3120 = vstv %s3119
        %v3121 = vmul.f32 %v3118, %v3120
        %s3122 = sld [smem:[#allocation13]]
        %v3123 = vmul.f32 %v3113, %v3121
        %v3124 = vstv %s3122
        %v3125 = vsub.f32 %v3124, %v3123
        %v3126 = vmul.f32 %v3085, %v3121
        %v3127 = vmul.f32 %v3086, %v3121
        %v3128 = vadd.f32 %v3126, %v3125
        %v3129 = vadd.f32 %v3127, %v3125
        %v3130 = vadd.f32 %v3091, %v3092
        %3131 = vadd.xlane.f32.xlu0 %v3130
        %v3132 = vpop.xlane.xlu0 %3131
        %v3133 = vmul.f32 %v3091, %v3091
        %v3134 = vmul.f32 %v3092, %v3092
        %v3135 = vadd.f32 %v3133, %v3134
        %3136 = vadd.xlane.f32.xlu0 %v3135
        %v3137 = vpop.xlane.xlu0 %3136
        %v3138 = vmul.f32 %v3132, 0.00390625
        %v3139 = vmul.f32 %v3137, 0.00390625
        %v3140 = vmul.f32 %v3138, %v3138
        %v3141 = vsub.f32 %v3139, %v3140
        %v3142 = vadd.f32 %v3141, 1e-05
        %v3143 = vrsqrt.pop %v3142
        %s3144 = sld [smem:[#allocation12 + $0x1]]
        %v3145 = vstv %s3144
        %v3146 = vmul.f32 %v3143, %v3145
        %s3147 = sld [smem:[#allocation13 + $0x1]]
        %v3148 = vmul.f32 %v3138, %v3146
        %v3149 = vstv %s3147
        %v3150 = vsub.f32 %v3149, %v3148
        %v3151 = vmul.f32 %v3091, %v3146
        %v3152 = vmul.f32 %v3092, %v3146
        %v3153 = vadd.f32 %v3151, %v3150
        %v3154 = vadd.f32 %v3152, %v3150
        %v3155 = vadd.f32 %v3097, %v3098
        %3156 = vadd.xlane.f32.xlu0 %v3155
        %v3157 = vpop.xlane.xlu0 %3156
        %v3158 = vmul.f32 %v3097, %v3097
        %v3159 = vmul.f32 %v3098, %v3098
        %v3160 = vadd.f32 %v3158, %v3159
        %3161 = vadd.xlane.f32.xlu0 %v3160
        %v3162 = vpop.xlane.xlu0 %3161
        %v3163 = vmul.f32 %v3157, 0.00390625
        %v3164 = vmul.f32 %v3162, 0.00390625
        %v3165 = vmul.f32 %v3163, %v3163
        %v3166 = vsub.f32 %v3164, %v3165
        %v3167 = vadd.f32 %v3166, 1e-05
        %v3168 = vrsqrt.pop %v3167
        %s3169 = sld [smem:[#allocation12 + $0x2]]
        %v3170 = vstv %s3169
        %v3171 = vmul.f32 %v3168, %v3170
        %s3172 = sld [smem:[#allocation13 + $0x2]]
        %v3173 = vmul.f32 %v3163, %v3171
        %v3174 = vstv %s3172
        %v3175 = vsub.f32 %v3174, %v3173
        %v3176 = vmul.f32 %v3097, %v3171
        %v3177 = vmul.f32 %v3098, %v3171
        %v3178 = vadd.f32 %v3176, %v3175
        %v3179 = vadd.f32 %v3177, %v3175
        %v3180 = vadd.f32 %v3103, %v3104
        %3181 = vadd.xlane.f32.xlu0 %v3180
        %v3182 = vpop.xlane.xlu0 %3181
        %v3183 = vmul.f32 %v3103, %v3103
        %v3184 = vmul.f32 %v3104, %v3104
        %v3185 = vadd.f32 %v3183, %v3184
        %3186 = vadd.xlane.f32.xlu0 %v3185
        %v3187 = vpop.xlane.xlu0 %3186
        %v3188 = vmul.f32 %v3182, 0.00390625
        %v3189 = vmul.f32 %v3187, 0.00390625
        %v3190 = vmul.f32 %v3188, %v3188
        %v3191 = vsub.f32 %v3189, %v3190
        %v3192 = vadd.f32 %v3191, 1e-05
        %v3193 = vrsqrt.pop %v3192
        %s3194 = sld [smem:[#allocation12 + $0x3]]
        %v3195 = vstv %s3194
        %v3196 = vmul.f32 %v3193, %v3195
        %s3197 = sld [smem:[#allocation13 + $0x3]]
        %v3198 = vmul.f32 %v3188, %v3196
        %v3199 = vstv %s3197
        %v3200 = vsub.f32 %v3199, %v3198
        %v3201 = vmul.f32 %v3103, %v3196
        %v3202 = vmul.f32 %v3104, %v3196
        %v3203 = vadd.f32 %v3201, %v3200
        %v3204 = vadd.f32 %v3202, %v3200
        %3205 = vst [vmem:[%s488] sm:$0xff] %v3128
        %3206 = vst [vmem:[%s488 + $0x8] sm:$0xff] %v3129
        %s3207 = scalar_lea.vmem %s488, 16
        %3208 = vst [vmem:[%s3207] sm:$0xff] %v3153
        %3209 = vst [vmem:[%s3207 + $0x8] sm:$0xff] %v3154
        %s3210 = scalar_lea.vmem %s488, 32
        %3211 = vst [vmem:[%s3210] sm:$0xff] %v3178
        %3212 = vst [vmem:[%s3210 + $0x8] sm:$0xff] %v3179
        %s3213 = scalar_lea.vmem %s488, 48
        %3214 = vst [vmem:[%s3213] sm:$0xff] %v3203
        %3215 = vst [vmem:[%s3213 + $0x8] sm:$0xff] %v3204
        %p3216 = scmp.lt.s32.totalorder %s27, 1
        %s3217 = scalar_select %p3216, %s27, 1
        %s3218 = smul.addr %s3217, 8
        %s3219 = smul.addr %s3218, 8
        %s3220 = scalar_lea.vmem %s11, %s3219
        // Predicated region
        $region97: #{odefunc_forward.1} parent=63 // pred_check
          %p3221 = pneg %p281
        $region98: #{odefunc_forward.1} parent=63 // pred_check_branch
          %3223 = sbr.rel (%p3221) target = $region100
        $region99: #{odefunc_forward.1} parent=63 // pred_region
          _
        $region100: #{odefunc_forward.1} parent=63 // pred_fallthru
          _
      $region64: #{odefunc_forward.1} parent=5 // pred_fallthru
        _
      %p3224 = scmp.le.s32.totalorder 2, %s22
      // Predicated region
      $region101: #{odefunc_forward.1} parent=5 // pred_check
        %p3225 = pneg %p3224
      $region102: #{odefunc_forward.1} parent=5 // pred_check_branch
        %3227 = sbr.rel (%p3225) target = $region104
      $region103: #{odefunc_forward.1} parent=5 // pred_region
        %s3228 = ssub.s32 %s22, 2
        // Predicated region
        $region105: #{odefunc_forward.1} parent=103 // pred_check
          %p3229 = pneg %p287
        $region106: #{odefunc_forward.1} parent=103 // pred_check_branch
          %3231 = sbr.rel (%p3229) target = $region108
        $region107: #{odefunc_forward.1} parent=103 // pred_region
          %p3232 = scmp.lt.s32.totalorder %s28, 1
          %s3233 = scalar_select %p3232, %s28, 1
          %s3234 = smul.addr %s3233, 8
          %s3235 = smul.addr %s3234, 8
          %s3236 = scalar_lea.vmem %s11, %s3235
        $region108: #{odefunc_forward.1} parent=103 // pred_fallthru
          _
      $region104: #{odefunc_forward.1} parent=5 // pred_fallthru
        _
    $region6: #{odefunc_forward.1} parent=1 // loop_footer
      %s26 = sadd.s32 1, %s22
    $region7: #{odefunc_forward.1} parent=1 // loop_footer_branch
      %21 = sbr.rel target = $region3
    $region8: #{odefunc_forward.1} parent=1 // loop_exit
      _
    %3237 = vsyncpa [#allocation3], 1
    %s3238 = scalar_lea.sflag [#allocation3], 1
    %3239 = vsyncpa %s3238, 1
    %3240 = vsyncpa [#allocation5], 1
    %3241 = vsyncpa [#allocation8], 1
    %3242 = vsyncpa [#allocation11], 1
    %3243 = vsyncpa [#allocation14], 1

</llo_original>
